<compile_context>
chip_gen: v7x
topology: tpu7x:2x2x1
jax: 0.10.0
libtpu: 0.0.40
codegen_flags: <defaults>
</compile_context>

<pallas_src>
import jax
import jax.numpy as jnp
from jax.experimental import pallas as pl
from jax.experimental.pallas import tpu as pltpu


# ------------------------------ Fused kernel ------------------------------ #

def _make_convlstm_kernel(num_layers, T, Bp, H):
    H4 = 4 * H

    def kernel(*refs):
        # refs: patches, [w_in_l, b_in_l, whhT_l] * num_layers, out, 2x gates scratch
        patches_ref = refs[0]
        layer_refs = refs[1:1 + 3 * num_layers]
        out_ref = refs[1 + 3 * num_layers]
        gates = (refs[2 + 3 * num_layers], refs[3 + 3 * num_layers])  # ping/pong

        # Hoisted lane->gate select constants (broadcasts are not CSE'd, so
        # never rebuild them inside the time loop). Gate order is [i,f,g,o];
        # block 2 (g) uses tanh, the rest sigmoid = 0.5*(tanh(x/2)+1).
        lane = jax.lax.broadcasted_iota(jnp.int32, (Bp, H4), 1)
        is_g = jnp.logical_and(lane >= 2 * H, lane < 3 * H)
        gscale = jnp.where(is_g, 1.0, 0.5).astype(jnp.float32)
        goff = jnp.where(is_g, 0.0, 0.5).astype(jnp.float32)

        # Layer-0 time-parallel input projection (Conv1d folded in): one MXU
        # GEMM over all timesteps, written straight into tile-aligned scratch.
        gates[0][...] = (
            jnp.dot(patches_ref[...], layer_refs[0][...],
                    preferred_element_type=jnp.float32)
            + layer_refs[1][...]
        )

        for l in range(num_layers):
            whh_t = layer_refs[3 * l + 2][...]                  # (H, 4H)
            g_cur = gates[l % 2]
            last = l == num_layers - 1
            if last:
                w_nxt = b_nxt = g_nxt = None
            else:
                w_nxt = layer_refs[3 * (l + 1)][...]            # (H, 4H)
                b_nxt = jnp.broadcast_to(
                    layer_refs[3 * (l + 1) + 1][...], (Bp, H4))  # hoisted bcast
                g_nxt = gates[(l + 1) % 2]

            def step(t, carry, whh_t=whh_t, g_cur=g_cur, last=last,
                     w_nxt=w_nxt, b_nxt=b_nxt, g_nxt=g_nxt):
                h, c = carry
                row = pl.multiple_of(t * Bp, Bp)   # 8-sublane aligned slab
                # Only h @ W_hh^T sits on the serial critical path.
                z = g_cur[pl.ds(row, Bp), :] + jnp.dot(
                    h, whh_t, preferred_element_type=jnp.float32)  # (Bp, 4H)
                # One full-width EUP pass for all four gates.
                th = jnp.tanh(z * gscale)
                act = th * gscale + goff
                i_g = act[:, 0 * H:1 * H]
                f_g = act[:, 1 * H:2 * H]
                g_g = act[:, 2 * H:3 * H]
                o_g = act[:, 3 * H:4 * H]
                c = f_g * c + i_g * g_g
                h = o_g * jnp.tanh(c)
                if not last:
                    # Software pipeline: next layer's input projection hides
                    # in the recurrence's idle MXU cycles.
                    g_nxt[pl.ds(row, Bp), :] = (
                        jnp.dot(h, w_nxt, preferred_element_type=jnp.float32)
                        + b_nxt)
                return h, c

            h0 = jnp.zeros((Bp, H), jnp.float32)
            h, _ = jax.lax.fori_loop(0, T, step, (h0, h0), unroll=True)

            if last:
                out_ref[...] = h            # (Bp, H); real rows sliced outside

    return kernel


# ------------------------------ Full forward ------------------------------ #

def conv_lstm_forward(params, x):
    # x: (B, Cin, L)  ->  (B, hidden)
    conv_w, conv_b, stride = params["conv_w"], params["conv_b"], params["stride"]
    B, Cin, L = x.shape
    Cout, _, K = conv_w.shape
    T = (L - K) // stride + 1
    H = params["lstm"][0]["whh"].shape[1]
    num_layers = len(params["lstm"])
    H4 = 4 * H
    Bp = ((B + 7) // 8) * 8      # pad batch to the 8-sublane tile

    # TODO(synk): im2col gather stays in plain JAX (data-dependent gather has
    # no clean BlockSpec form at this size); rows ordered (t, b_padded).
    idx = (jnp.arange(T) * stride)[:, None] + jnp.arange(K)[None, :]      # (T, K)
    patches = jnp.transpose(x[:, :, idx], (2, 0, 1, 3)).reshape(T, B, Cin * K)
    patches = jnp.pad(patches, ((0, 0), (0, Bp - B), (0, 0)))
    patches = patches.reshape(T * Bp, Cin * K)

    # Wrapper-side weight prep: transpose once; fold conv into layer-0 projection.
    conv_w2 = conv_w.reshape(Cout, Cin * K)
    weight_args, weight_specs = [], []
    for l, layer in enumerate(params["lstm"]):
        wih_t = layer["wih"].T                        # (Din_l, 4H)
        whh_t = layer["whh"].T                        # (H, 4H)
        if l == 0:
            w_in = conv_w2.T @ wih_t                  # (Cin*K, 4H) conv folded in
            b_in = conv_b @ wih_t + layer["b"]        # (4H,)
        else:
            w_in = wih_t
            b_in = layer["b"]
        weight_args += [w_in, b_in.reshape(1, H4), whh_t]
        weight_specs += [
            pl.BlockSpec(tuple(w_in.shape), lambda i: (0, 0)),
            pl.BlockSpec((1, H4), lambda i: (0, 0)),
            pl.BlockSpec((H, H4), lambda i: (0, 0)),
        ]

    # TODO(synk): for real shapes on v6e/v7x, cast the GEMM operands/weights to
    # bf16 (keep f32 accumulation + gate math) and add a leading batch-parallel
    # grid axis so v7x's 2 TensorCores are both used; unnecessary at B=2/H=32.
    kernel = _make_convlstm_kernel(num_layers, T, Bp, H)
    out = pl.pallas_call(
        kernel,
        out_shape=jax.ShapeDtypeStruct((Bp, H), jnp.float32),
        grid=(1,),
        in_specs=[pl.BlockSpec((T * Bp, Cin * K), lambda i: (0, 0))] + weight_specs,
        out_specs=pl.BlockSpec((Bp, H), lambda i: (0, 0)),
        scratch_shapes=[
            pltpu.VMEM((T * Bp, H4), jnp.float32),   # gates ping (layer l)
            pltpu.VMEM((T * Bp, H4), jnp.float32),   # gates pong (layer l+1)
        ],
        compiler_params=pltpu.CompilerParams(dimension_semantics=("arbitrary",)),
    )(patches, *weight_args)
    return out[:B]


# --------------------------- Deterministic init ---------------------------- #

def init_params(key, cfg):
    Cin, Cout, K = cfg["input_dim"], cfg["out_channels"], cfg["kernel_size"]
    H, n_layers = cfg["lstm_hidden_dim"], cfg["lstm_num_layers"]

    keys = jax.random.split(key, 2 + 4 * n_layers)
    kconv_w, kconv_b = keys[0], keys[1]

    conv_bound = 1.0 / jnp.sqrt(Cin * K)
    params = {
        "stride": cfg["stride"],
        "conv_w": jax.random.uniform(kconv_w, (Cout, Cin, K), jnp.float32,
                                     -conv_bound, conv_bound),
        "conv_b": jax.random.uniform(kconv_b, (Cout,), jnp.float32,
                                     -conv_bound, conv_bound),
        "lstm": [],
    }
    lstm_bound = 1.0 / jnp.sqrt(H)
    for layer in range(n_layers):
        Din = Cout if layer == 0 else H
        k0, k1, k2, k3 = keys[2 + 4 * layer: 2 + 4 * (layer + 1)]
        wih = jax.random.uniform(k0, (4 * H, Din), jnp.float32, -lstm_bound, lstm_bound)
        whh = jax.random.uniform(k1, (4 * H, H), jnp.float32, -lstm_bound, lstm_bound)
        b_ih = jax.random.uniform(k2, (4 * H,), jnp.float32, -lstm_bound, lstm_bound)
        b_hh = jax.random.uniform(k3, (4 * H,), jnp.float32, -lstm_bound, lstm_bound)
        params["lstm"].append({"wih": wih, "whh": whh, "b": b_ih + b_hh})
    return params


# ----------------------------- Pure-JAX reference -------------------------- #

def reference_forward(params, x):
    B, Cin, L = x.shape
    Cout, _, K = params["conv_w"].shape
    stride = params["stride"]
    Lout = (L - K) // stride + 1
    idx = (jnp.arange(Lout) * stride)[:, None] + jnp.arange(K)[None, :]
    patches = jnp.transpose(x[:, :, idx], (0, 2, 1, 3)).reshape(B * Lout, Cin * K)
    conv = patches @ params["conv_w"].reshape(Cout, Cin * K).T + params["conv_b"]
    seq = conv.reshape(B, Lout, Cout).transpose(1, 0, 2)  # (T, B, Cout)

    for layer in params["lstm"]:
        H = layer["whh"].shape[1]

        def step(carry, x_t, layer=layer, H=H):
            h, c = carry
            gates = x_t @ layer["wih"].T + h @ layer["whh"].T + layer["b"]
            i = jax.nn.sigmoid(gates[:, 0:H])
            f = jax.nn.sigmoid(gates[:, H:2 * H])
            g = jnp.tanh(gates[:, 2 * H:3 * H])
            o = jax.nn.sigmoid(gates[:, 3 * H:4 * H])
            c = f * c + i * g
            h = o * jnp.tanh(c)
            return (h, c), h

        h0 = jnp.zeros((B, H), jnp.float32)
        (_, _), seq = jax.lax.scan(step, (h0, h0), seq)
    return seq[-1]


# ----------------------------------- Main ---------------------------------- #

if __name__ == "__main__":
    cfg = {
        "input_dim": 4,
        "out_channels": 8,
        "kernel_size": 3,
        "stride": 1,
        "lstm_hidden_dim": 32,
        "lstm_num_layers": 2,
    }
    key = jax.random.PRNGKey(0)
    kx, kp = jax.random.split(key)

    x = jax.random.normal(kx, (2, cfg["input_dim"], 16), jnp.float32)  # (B, Cin, L)
    params = init_params(kp, cfg)

    out = conv_lstm_forward(params, x)
    out = jax.block_until_ready(out)
    assert out.shape == (2, cfg["lstm_hidden_dim"]), out.shape

    ref = jax.block_until_ready(reference_forward(params, x))
    assert jnp.allclose(out, ref, atol=1e-3, rtol=1e-3), (
        float(jnp.max(jnp.abs(out - ref)))
    )

    print("KERNEL_OK")
</pallas_src>

<mosaic_0001>
module attributes {stable_mosaic.version = 11 : i64} {
  func.func @kernel(%arg0: i32, %arg1: memref<112x12xf32, #tpu.memory_space<vmem>>, %arg2: memref<12x128xf32, #tpu.memory_space<vmem>>, %arg3: memref<1x128xf32, #tpu.memory_space<vmem>>, %arg4: memref<32x128xf32, #tpu.memory_space<vmem>>, %arg5: memref<32x128xf32, #tpu.memory_space<vmem>>, %arg6: memref<1x128xf32, #tpu.memory_space<vmem>>, %arg7: memref<32x128xf32, #tpu.memory_space<vmem>>, %arg8: memref<8x32xf32, #tpu.memory_space<vmem>>, %arg9: memref<112x128xf32, #tpu.memory_space<vmem>>, %arg10: memref<112x128xf32, #tpu.memory_space<vmem>>) attributes {dimension_semantics = [#tpu.dimension_semantics<arbitrary>], iteration_bounds = array<i64: 1>, scalar_prefetch = 0 : i64, scratch_operands = 2 : i64, tpu.core_type = #tpu.core_type<tc>, window_params = [{pipeline_mode = #tpu.pipeline_mode<synchronous>, transform_indices = @transform_0, window_bounds = array<i64: 112, 12>}, {pipeline_mode = #tpu.pipeline_mode<synchronous>, transform_indices = @transform_1, window_bounds = array<i64: 12, 128>}, {pipeline_mode = #tpu.pipeline_mode<synchronous>, transform_indices = @transform_2, window_bounds = array<i64: 1, 128>}, {pipeline_mode = #tpu.pipeline_mode<synchronous>, transform_indices = @transform_3, window_bounds = array<i64: 32, 128>}, {pipeline_mode = #tpu.pipeline_mode<synchronous>, transform_indices = @transform_4, window_bounds = array<i64: 32, 128>}, {pipeline_mode = #tpu.pipeline_mode<synchronous>, transform_indices = @transform_5, window_bounds = array<i64: 1, 128>}, {pipeline_mode = #tpu.pipeline_mode<synchronous>, transform_indices = @transform_6, window_bounds = array<i64: 32, 128>}, {pipeline_mode = #tpu.pipeline_mode<synchronous>, transform_indices = @transform_7, window_bounds = array<i64: 8, 32>}]} {
    %0 = tpu.iota {dimensions = array<i32: 1>} : vector<8x128xi32>
    %c64_i32 = arith.constant 64 : i32
    %1 = vector.broadcast %c64_i32 : i32 to vector<8x128xi32>
    %2 = arith.cmpi sge, %0, %1 : vector<8x128xi32>
    %c96_i32 = arith.constant 96 : i32
    %3 = vector.broadcast %c96_i32 : i32 to vector<8x128xi32>
    %4 = arith.cmpi slt, %0, %3 : vector<8x128xi32>
    %5 = arith.andi %2, %4 : vector<8x128xi1>
    %cst = arith.constant 1.000000e+00 : f32
    %cst_0 = arith.constant 5.000000e-01 : f32
    %6 = vector.broadcast %cst : f32 to vector<8x128xf32>
    %7 = vector.broadcast %cst_0 : f32 to vector<8x128xf32>
    %8 = arith.select %5, %6, %7 : vector<8x128xi1>, vector<8x128xf32>
    %cst_1 = arith.constant 0.000000e+00 : f32
    %cst_2 = arith.constant 5.000000e-01 : f32
    %9 = vector.broadcast %cst_1 : f32 to vector<8x128xf32>
    %10 = vector.broadcast %cst_2 : f32 to vector<8x128xf32>
    %11 = arith.select %5, %9, %10 : vector<8x128xi1>, vector<8x128xf32>
    %c0 = arith.constant 0 : index
    %c0_3 = arith.constant 0 : index
    %12 = vector.load %arg1[%c0, %c0_3] : memref<112x12xf32, #tpu.memory_space<vmem>>, vector<112x12xf32>
    %c0_4 = arith.constant 0 : index
    %c0_5 = arith.constant 0 : index
    %13 = vector.load %arg2[%c0_4, %c0_5] : memref<12x128xf32, #tpu.memory_space<vmem>>, vector<12x128xf32>
    %cst_6 = arith.constant dense<0.000000e+00> : vector<112x128xf32>
    %14 = tpu.matmul %12, %13, %cst_6 {dimension_numbers = #tpu.dot_dimension_numbers<[1], [0], [0], [1], [0, 0, 1, 1], [], []>} : vector<112x12xf32>, vector<12x128xf32>, vector<112x128xf32> -> vector<112x128xf32>
    %c0_7 = arith.constant 0 : index
    %c0_8 = arith.constant 0 : index
    %15 = vector.load %arg3[%c0_7, %c0_8] : memref<1x128xf32, #tpu.memory_space<vmem>>, vector<1x128xf32>
    %16 = vector.broadcast %15 : vector<1x128xf32> to vector<112x128xf32>
    %17 = arith.addf %14, %16 : vector<112x128xf32>
    %c0_9 = arith.constant 0 : index
    %c0_10 = arith.constant 0 : index
    %18 = vector.load %arg9[%c0_9, %c0_10] : memref<112x128xf32, #tpu.memory_space<vmem>>, vector<112x128xf32>
    tpu.vector_store %arg9[%c0_9, %c0_10], %17 {strides = array<i32>} : memref<112x128xf32, #tpu.memory_space<vmem>>, vector<112x128xf32>,
    %c0_11 = arith.constant 0 : index
    %c0_12 = arith.constant 0 : index
    %19 = vector.load %arg4[%c0_11, %c0_12] : memref<32x128xf32, #tpu.memory_space<vmem>>, vector<32x128xf32>
    %c0_13 = arith.constant 0 : index
    %c0_14 = arith.constant 0 : index
    %20 = vector.load %arg5[%c0_13, %c0_14] : memref<32x128xf32, #tpu.memory_space<vmem>>, vector<32x128xf32>
    %c0_15 = arith.constant 0 : index
    %c0_16 = arith.constant 0 : index
    %21 = vector.load %arg6[%c0_15, %c0_16] : memref<1x128xf32, #tpu.memory_space<vmem>>, vector<1x128xf32>
    %22 = vector.shape_cast %21 : vector<1x128xf32> to vector<1x128xf32>
    %23 = vector.broadcast %22 : vector<1x128xf32> to vector<8x128xf32>
    %cst_17 = arith.constant 0.000000e+00 : f32
    %24 = vector.broadcast %cst_17 : f32 to vector<8x32xf32>
    %c0_i32 = arith.constant 0 : i32
    %c8_i32 = arith.constant 8 : i32
    %25 = arith.muli %c0_i32, %c8_i32 : i32
    %26 = tpu.assume_multiple %25, 8 : i32
    %27 = arith.index_cast %26 : i32 to index
    %c0_18 = arith.constant 0 : index
    %28 = vector.load %arg9[%27, %c0_18] : memref<112x128xf32, #tpu.memory_space<vmem>>, vector<8x128xf32>
    %cst_19 = arith.constant dense<0.000000e+00> : vector<8x128xf32>
    %29 = tpu.matmul %24, %19, %cst_19 {dimension_numbers = #tpu.dot_dimension_numbers<[1], [0], [0], [1], [0, 0, 1, 1], [], []>} : vector<8x32xf32>, vector<32x128xf32>, vector<8x128xf32> -> vector<8x128xf32>
    %30 = arith.addf %28, %29 : vector<8x128xf32>
    %31 = arith.mulf %30, %8 : vector<8x128xf32>
    %32 = math.tanh %31 : vector<8x128xf32>
    %33 = arith.mulf %32, %8 : vector<8x128xf32>
    %34 = arith.addf %33, %11 : vector<8x128xf32>
    %35 = vector.extract_strided_slice %34 {offsets = [0, 0], sizes = [8, 32], strides = [1, 1]} : vector<8x128xf32> to vector<8x32xf32>
    %36 = vector.extract_strided_slice %34 {offsets = [0, 32], sizes = [8, 32], strides = [1, 1]} : vector<8x128xf32> to vector<8x32xf32>
    %37 = vector.extract_strided_slice %34 {offsets = [0, 64], sizes = [8, 32], strides = [1, 1]} : vector<8x128xf32> to vector<8x32xf32>
    %38 = vector.extract_strided_slice %34 {offsets = [0, 96], sizes = [8, 32], strides = [1, 1]} : vector<8x128xf32> to vector<8x32xf32>
    %39 = arith.mulf %36, %24 : vector<8x32xf32>
    %40 = arith.mulf %35, %37 : vector<8x32xf32>
    %41 = arith.addf %39, %40 : vector<8x32xf32>
    %42 = math.tanh %41 : vector<8x32xf32>
    %43 = arith.mulf %38, %42 : vector<8x32xf32>
    %cst_20 = arith.constant dense<0.000000e+00> : vector<8x128xf32>
    %44 = tpu.matmul %43, %20, %cst_20 {dimension_numbers = #tpu.dot_dimension_numbers<[1], [0], [0], [1], [0, 0, 1, 1], [], []>} : vector<8x32xf32>, vector<32x128xf32>, vector<8x128xf32> -> vector<8x128xf32>
    %45 = arith.addf %44, %23 : vector<8x128xf32>
    %46 = arith.index_cast %26 : i32 to index
    %c0_21 = arith.constant 0 : index
    %47 = vector.load %arg10[%46, %c0_21] : memref<112x128xf32, #tpu.memory_space<vmem>>, vector<8x128xf32>
    tpu.vector_store %arg10[%46, %c0_21], %45 {strides = array<i32>} : memref<112x128xf32, #tpu.memory_space<vmem>>, vector<8x128xf32>,
    %c1_i32 = arith.constant 1 : i32
    %c8_i32_22 = arith.constant 8 : i32
    %48 = arith.muli %c1_i32, %c8_i32_22 : i32
    %49 = tpu.assume_multiple %48, 8 : i32
    %50 = arith.index_cast %49 : i32 to index
    %c0_23 = arith.constant 0 : index
    %51 = vector.load %arg9[%50, %c0_23] : memref<112x128xf32, #tpu.memory_space<vmem>>, vector<8x128xf32>
    %cst_24 = arith.constant dense<0.000000e+00> : vector<8x128xf32>
    %52 = tpu.matmul %43, %19, %cst_24 {dimension_numbers = #tpu.dot_dimension_numbers<[1], [0], [0], [1], [0, 0, 1, 1], [], []>} : vector<8x32xf32>, vector<32x128xf32>, vector<8x128xf32> -> vector<8x128xf32>
    %53 = arith.addf %51, %52 : vector<8x128xf32>
    %54 = arith.mulf %53, %8 : vector<8x128xf32>
    %55 = math.tanh %54 : vector<8x128xf32>
    %56 = arith.mulf %55, %8 : vector<8x128xf32>
    %57 = arith.addf %56, %11 : vector<8x128xf32>
    %58 = vector.extract_strided_slice %57 {offsets = [0, 0], sizes = [8, 32], strides = [1, 1]} : vector<8x128xf32> to vector<8x32xf32>
    %59 = vector.extract_strided_slice %57 {offsets = [0, 32], sizes = [8, 32], strides = [1, 1]} : vector<8x128xf32> to vector<8x32xf32>
    %60 = vector.extract_strided_slice %57 {offsets = [0, 64], sizes = [8, 32], strides = [1, 1]} : vector<8x128xf32> to vector<8x32xf32>
    %61 = vector.extract_strided_slice %57 {offsets = [0, 96], sizes = [8, 32], strides = [1, 1]} : vector<8x128xf32> to vector<8x32xf32>
    %62 = arith.mulf %59, %41 : vector<8x32xf32>
    %63 = arith.mulf %58, %60 : vector<8x32xf32>
    %64 = arith.addf %62, %63 : vector<8x32xf32>
    %65 = math.tanh %64 : vector<8x32xf32>
    %66 = arith.mulf %61, %65 : vector<8x32xf32>
    %cst_25 = arith.constant dense<0.000000e+00> : vector<8x128xf32>
    %67 = tpu.matmul %66, %20, %cst_25 {dimension_numbers = #tpu.dot_dimension_numbers<[1], [0], [0], [1], [0, 0, 1, 1], [], []>} : vector<8x32xf32>, vector<32x128xf32>, vector<8x128xf32> -> vector<8x128xf32>
    %68 = arith.addf %67, %23 : vector<8x128xf32>
    %69 = arith.index_cast %49 : i32 to index
    %c0_26 = arith.constant 0 : index
    %70 = vector.load %arg10[%69, %c0_26] : memref<112x128xf32, #tpu.memory_space<vmem>>, vector<8x128xf32>
    tpu.vector_store %arg10[%69, %c0_26], %68 {strides = array<i32>} : memref<112x128xf32, #tpu.memory_space<vmem>>, vector<8x128xf32>,
    %c2_i32 = arith.constant 2 : i32
    %c8_i32_27 = arith.constant 8 : i32
    %71 = arith.muli %c2_i32, %c8_i32_27 : i32
    %72 = tpu.assume_multiple %71, 8 : i32
    %73 = arith.index_cast %72 : i32 to index
    %c0_28 = arith.constant 0 : index
    %74 = vector.load %arg9[%73, %c0_28] : memref<112x128xf32, #tpu.memory_space<vmem>>, vector<8x128xf32>
    %cst_29 = arith.constant dense<0.000000e+00> : vector<8x128xf32>
    %75 = tpu.matmul %66, %19, %cst_29 {dimension_numbers = #tpu.dot_dimension_numbers<[1], [0], [0], [1], [0, 0, 1, 1], [], []>} : vector<8x32xf32>, vector<32x128xf32>, vector<8x128xf32> -> vector<8x128xf32>
    %76 = arith.addf %74, %75 : vector<8x128xf32>
    %77 = arith.mulf %76, %8 : vector<8x128xf32>
    %78 = math.tanh %77 : vector<8x128xf32>
    %79 = arith.mulf %78, %8 : vector<8x128xf32>
    %80 = arith.addf %79, %11 : vector<8x128xf32>
    %81 = vector.extract_strided_slice %80 {offsets = [0, 0], sizes = [8, 32], strides = [1, 1]} : vector<8x128xf32> to vector<8x32xf32>
    %82 = vector.extract_strided_slice %80 {offsets = [0, 32], sizes = [8, 32], strides = [1, 1]} : vector<8x128xf32> to vector<8x32xf32>
    %83 = vector.extract_strided_slice %80 {offsets = [0, 64], sizes = [8, 32], strides = [1, 1]} : vector<8x128xf32> to vector<8x32xf32>
    %84 = vector.extract_strided_slice %80 {offsets = [0, 96], sizes = [8, 32], strides = [1, 1]} : vector<8x128xf32> to vector<8x32xf32>
    %85 = arith.mulf %82, %64 : vector<8x32xf32>
    %86 = arith.mulf %81, %83 : vector<8x32xf32>
    %87 = arith.addf %85, %86 : vector<8x32xf32>
    %88 = math.tanh %87 : vector<8x32xf32>
    %89 = arith.mulf %84, %88 : vector<8x32xf32>
    %cst_30 = arith.constant dense<0.000000e+00> : vector<8x128xf32>
    %90 = tpu.matmul %89, %20, %cst_30 {dimension_numbers = #tpu.dot_dimension_numbers<[1], [0], [0], [1], [0, 0, 1, 1], [], []>} : vector<8x32xf32>, vector<32x128xf32>, vector<8x128xf32> -> vector<8x128xf32>
    %91 = arith.addf %90, %23 : vector<8x128xf32>
    %92 = arith.index_cast %72 : i32 to index
    %c0_31 = arith.constant 0 : index
    %93 = vector.load %arg10[%92, %c0_31] : memref<112x128xf32, #tpu.memory_space<vmem>>, vector<8x128xf32>
    tpu.vector_store %arg10[%92, %c0_31], %91 {strides = array<i32>} : memref<112x128xf32, #tpu.memory_space<vmem>>, vector<8x128xf32>,
    %c3_i32 = arith.constant 3 : i32
    %c8_i32_32 = arith.constant 8 : i32
    %94 = arith.muli %c3_i32, %c8_i32_32 : i32
    %95 = tpu.assume_multiple %94, 8 : i32
    %96 = arith.index_cast %95 : i32 to index
    %c0_33 = arith.constant 0 : index
    %97 = vector.load %arg9[%96, %c0_33] : memref<112x128xf32, #tpu.memory_space<vmem>>, vector<8x128xf32>
    %cst_34 = arith.constant dense<0.000000e+00> : vector<8x128xf32>
    %98 = tpu.matmul %89, %19, %cst_34 {dimension_numbers = #tpu.dot_dimension_numbers<[1], [0], [0], [1], [0, 0, 1, 1], [], []>} : vector<8x32xf32>, vector<32x128xf32>, vector<8x128xf32> -> vector<8x128xf32>
    %99 = arith.addf %97, %98 : vector<8x128xf32>
    %100 = arith.mulf %99, %8 : vector<8x128xf32>
    %101 = math.tanh %100 : vector<8x128xf32>
    %102 = arith.mulf %101, %8 : vector<8x128xf32>
    %103 = arith.addf %102, %11 : vector<8x128xf32>
    %104 = vector.extract_strided_slice %103 {offsets = [0, 0], sizes = [8, 32], strides = [1, 1]} : vector<8x128xf32> to vector<8x32xf32>
    %105 = vector.extract_strided_slice %103 {offsets = [0, 32], sizes = [8, 32], strides = [1, 1]} : vector<8x128xf32> to vector<8x32xf32>
    %106 = vector.extract_strided_slice %103 {offsets = [0, 64], sizes = [8, 32], strides = [1, 1]} : vector<8x128xf32> to vector<8x32xf32>
    %107 = vector.extract_strided_slice %103 {offsets = [0, 96], sizes = [8, 32], strides = [1, 1]} : vector<8x128xf32> to vector<8x32xf32>
    %108 = arith.mulf %105, %87 : vector<8x32xf32>
    %109 = arith.mulf %104, %106 : vector<8x32xf32>
    %110 = arith.addf %108, %109 : vector<8x32xf32>
    %111 = math.tanh %110 : vector<8x32xf32>
    %112 = arith.mulf %107, %111 : vector<8x32xf32>
    %cst_35 = arith.constant dense<0.000000e+00> : vector<8x128xf32>
    %113 = tpu.matmul %112, %20, %cst_35 {dimension_numbers = #tpu.dot_dimension_numbers<[1], [0], [0], [1], [0, 0, 1, 1], [], []>} : vector<8x32xf32>, vector<32x128xf32>, vector<8x128xf32> -> vector<8x128xf32>
    %114 = arith.addf %113, %23 : vector<8x128xf32>
    %115 = arith.index_cast %95 : i32 to index
    %c0_36 = arith.constant 0 : index
    %116 = vector.load %arg10[%115, %c0_36] : memref<112x128xf32, #tpu.memory_space<vmem>>, vector<8x128xf32>
    tpu.vector_store %arg10[%115, %c0_36], %114 {strides = array<i32>} : memref<112x128xf32, #tpu.memory_space<vmem>>, vector<8x128xf32>,
    %c4_i32 = arith.constant 4 : i32
    %c8_i32_37 = arith.constant 8 : i32
    %117 = arith.muli %c4_i32, %c8_i32_37 : i32
    %118 = tpu.assume_multiple %117, 8 : i32
    %119 = arith.index_cast %118 : i32 to index
    %c0_38 = arith.constant 0 : index
    %120 = vector.load %arg9[%119, %c0_38] : memref<112x128xf32, #tpu.memory_space<vmem>>, vector<8x128xf32>
    %cst_39 = arith.constant dense<0.000000e+00> : vector<8x128xf32>
    %121 = tpu.matmul %112, %19, %cst_39 {dimension_numbers = #tpu.dot_dimension_numbers<[1], [0], [0], [1], [0, 0, 1, 1], [], []>} : vector<8x32xf32>, vector<32x128xf32>, vector<8x128xf32> -> vector<8x128xf32>
    %122 = arith.addf %120, %121 : vector<8x128xf32>
    %123 = arith.mulf %122, %8 : vector<8x128xf32>
    %124 = math.tanh %123 : vector<8x128xf32>
    %125 = arith.mulf %124, %8 : vector<8x128xf32>
    %126 = arith.addf %125, %11 : vector<8x128xf32>
    %127 = vector.extract_strided_slice %126 {offsets = [0, 0], sizes = [8, 32], strides = [1, 1]} : vector<8x128xf32> to vector<8x32xf32>
    %128 = vector.extract_strided_slice %126 {offsets = [0, 32], sizes = [8, 32], strides = [1, 1]} : vector<8x128xf32> to vector<8x32xf32>
    %129 = vector.extract_strided_slice %126 {offsets = [0, 64], sizes = [8, 32], strides = [1, 1]} : vector<8x128xf32> to vector<8x32xf32>
    %130 = vector.extract_strided_slice %126 {offsets = [0, 96], sizes = [8, 32], strides = [1, 1]} : vector<8x128xf32> to vector<8x32xf32>
    %131 = arith.mulf %128, %110 : vector<8x32xf32>
    %132 = arith.mulf %127, %129 : vector<8x32xf32>
    %133 = arith.addf %131, %132 : vector<8x32xf32>
    %134 = math.tanh %133 : vector<8x32xf32>
    %135 = arith.mulf %130, %134 : vector<8x32xf32>
    %cst_40 = arith.constant dense<0.000000e+00> : vector<8x128xf32>
    %136 = tpu.matmul %135, %20, %cst_40 {dimension_numbers = #tpu.dot_dimension_numbers<[1], [0], [0], [1], [0, 0, 1, 1], [], []>} : vector<8x32xf32>, vector<32x128xf32>, vector<8x128xf32> -> vector<8x128xf32>
    %137 = arith.addf %136, %23 : vector<8x128xf32>
    %138 = arith.index_cast %118 : i32 to index
    %c0_41 = arith.constant 0 : index
    %139 = vector.load %arg10[%138, %c0_41] : memref<112x128xf32, #tpu.memory_space<vmem>>, vector<8x128xf32>
    tpu.vector_store %arg10[%138, %c0_41], %137 {strides = array<i32>} : memref<112x128xf32, #tpu.memory_space<vmem>>, vector<8x128xf32>,
    %c5_i32 = arith.constant 5 : i32
    %c8_i32_42 = arith.constant 8 : i32
    %140 = arith.muli %c5_i32, %c8_i32_42 : i32
    %141 = tpu.assume_multiple %140, 8 : i32
    %142 = arith.index_cast %141 : i32 to index
    %c0_43 = arith.constant 0 : index
    %143 = vector.load %arg9[%142, %c0_43] : memref<112x128xf32, #tpu.memory_space<vmem>>, vector<8x128xf32>
    %cst_44 = arith.constant dense<0.000000e+00> : vector<8x128xf32>
    %144 = tpu.matmul %135, %19, %cst_44 {dimension_numbers = #tpu.dot_dimension_numbers<[1], [0], [0], [1], [0, 0, 1, 1], [], []>} : vector<8x32xf32>, vector<32x128xf32>, vector<8x128xf32> -> vector<8x128xf32>
    %145 = arith.addf %143, %144 : vector<8x128xf32>
    %146 = arith.mulf %145, %8 : vector<8x128xf32>
    %147 = math.tanh %146 : vector<8x128xf32>
    %148 = arith.mulf %147, %8 : vector<8x128xf32>
    %149 = arith.addf %148, %11 : vector<8x128xf32>
    %150 = vector.extract_strided_slice %149 {offsets = [0, 0], sizes = [8, 32], strides = [1, 1]} : vector<8x128xf32> to vector<8x32xf32>
    %151 = vector.extract_strided_slice %149 {offsets = [0, 32], sizes = [8, 32], strides = [1, 1]} : vector<8x128xf32> to vector<8x32xf32>
    %152 = vector.extract_strided_slice %149 {offsets = [0, 64], sizes = [8, 32], strides = [1, 1]} : vector<8x128xf32> to vector<8x32xf32>
    %153 = vector.extract_strided_slice %149 {offsets = [0, 96], sizes = [8, 32], strides = [1, 1]} : vector<8x128xf32> to vector<8x32xf32>
    %154 = arith.mulf %151, %133 : vector<8x32xf32>
    %155 = arith.mulf %150, %152 : vector<8x32xf32>
    %156 = arith.addf %154, %155 : vector<8x32xf32>
    %157 = math.tanh %156 : vector<8x32xf32>
    %158 = arith.mulf %153, %157 : vector<8x32xf32>
    %cst_45 = arith.constant dense<0.000000e+00> : vector<8x128xf32>
    %159 = tpu.matmul %158, %20, %cst_45 {dimension_numbers = #tpu.dot_dimension_numbers<[1], [0], [0], [1], [0, 0, 1, 1], [], []>} : vector<8x32xf32>, vector<32x128xf32>, vector<8x128xf32> -> vector<8x128xf32>
    %160 = arith.addf %159, %23 : vector<8x128xf32>
    %161 = arith.index_cast %141 : i32 to index
    %c0_46 = arith.constant 0 : index
    %162 = vector.load %arg10[%161, %c0_46] : memref<112x128xf32, #tpu.memory_space<vmem>>, vector<8x128xf32>
    tpu.vector_store %arg10[%161, %c0_46], %160 {strides = array<i32>} : memref<112x128xf32, #tpu.memory_space<vmem>>, vector<8x128xf32>,
    %c6_i32 = arith.constant 6 : i32
    %c8_i32_47 = arith.constant 8 : i32
    %163 = arith.muli %c6_i32, %c8_i32_47 : i32
    %164 = tpu.assume_multiple %163, 8 : i32
    %165 = arith.index_cast %164 : i32 to index
    %c0_48 = arith.constant 0 : index
    %166 = vector.load %arg9[%165, %c0_48] : memref<112x128xf32, #tpu.memory_space<vmem>>, vector<8x128xf32>
    %cst_49 = arith.constant dense<0.000000e+00> : vector<8x128xf32>
    %167 = tpu.matmul %158, %19, %cst_49 {dimension_numbers = #tpu.dot_dimension_numbers<[1], [0], [0], [1], [0, 0, 1, 1], [], []>} : vector<8x32xf32>, vector<32x128xf32>, vector<8x128xf32> -> vector<8x128xf32>
    %168 = arith.addf %166, %167 : vector<8x128xf32>
    %169 = arith.mulf %168, %8 : vector<8x128xf32>
    %170 = math.tanh %169 : vector<8x128xf32>
    %171 = arith.mulf %170, %8 : vector<8x128xf32>
    %172 = arith.addf %171, %11 : vector<8x128xf32>
    %173 = vector.extract_strided_slice %172 {offsets = [0, 0], sizes = [8, 32], strides = [1, 1]} : vector<8x128xf32> to vector<8x32xf32>
    %174 = vector.extract_strided_slice %172 {offsets = [0, 32], sizes = [8, 32], strides = [1, 1]} : vector<8x128xf32> to vector<8x32xf32>
    %175 = vector.extract_strided_slice %172 {offsets = [0, 64], sizes = [8, 32], strides = [1, 1]} : vector<8x128xf32> to vector<8x32xf32>
    %176 = vector.extract_strided_slice %172 {offsets = [0, 96], sizes = [8, 32], strides = [1, 1]} : vector<8x128xf32> to vector<8x32xf32>
    %177 = arith.mulf %174, %156 : vector<8x32xf32>
    %178 = arith.mulf %173, %175 : vector<8x32xf32>
    %179 = arith.addf %177, %178 : vector<8x32xf32>
    %180 = math.tanh %179 : vector<8x32xf32>
    %181 = arith.mulf %176, %180 : vector<8x32xf32>
    %cst_50 = arith.constant dense<0.000000e+00> : vector<8x128xf32>
    %182 = tpu.matmul %181, %20, %cst_50 {dimension_numbers = #tpu.dot_dimension_numbers<[1], [0], [0], [1], [0, 0, 1, 1], [], []>} : vector<8x32xf32>, vector<32x128xf32>, vector<8x128xf32> -> vector<8x128xf32>
    %183 = arith.addf %182, %23 : vector<8x128xf32>
    %184 = arith.index_cast %164 : i32 to index
    %c0_51 = arith.constant 0 : index
    %185 = vector.load %arg10[%184, %c0_51] : memref<112x128xf32, #tpu.memory_space<vmem>>, vector<8x128xf32>
    tpu.vector_store %arg10[%184, %c0_51], %183 {strides = array<i32>} : memref<112x128xf32, #tpu.memory_space<vmem>>, vector<8x128xf32>,
    %c7_i32 = arith.constant 7 : i32
    %c8_i32_52 = arith.constant 8 : i32
    %186 = arith.muli %c7_i32, %c8_i32_52 : i32
    %187 = tpu.assume_multiple %186, 8 : i32
    %188 = arith.index_cast %187 : i32 to index
    %c0_53 = arith.constant 0 : index
    %189 = vector.load %arg9[%188, %c0_53] : memref<112x128xf32, #tpu.memory_space<vmem>>, vector<8x128xf32>
    %cst_54 = arith.constant dense<0.000000e+00> : vector<8x128xf32>
    %190 = tpu.matmul %181, %19, %cst_54 {dimension_numbers = #tpu.dot_dimension_numbers<[1], [0], [0], [1], [0, 0, 1, 1], [], []>} : vector<8x32xf32>, vector<32x128xf32>, vector<8x128xf32> -> vector<8x128xf32>
    %191 = arith.addf %189, %190 : vector<8x128xf32>
    %192 = arith.mulf %191, %8 : vector<8x128xf32>
    %193 = math.tanh %192 : vector<8x128xf32>
    %194 = arith.mulf %193, %8 : vector<8x128xf32>
    %195 = arith.addf %194, %11 : vector<8x128xf32>
    %196 = vector.extract_strided_slice %195 {offsets = [0, 0], sizes = [8, 32], strides = [1, 1]} : vector<8x128xf32> to vector<8x32xf32>
    %197 = vector.extract_strided_slice %195 {offsets = [0, 32], sizes = [8, 32], strides = [1, 1]} : vector<8x128xf32> to vector<8x32xf32>
    %198 = vector.extract_strided_slice %195 {offsets = [0, 64], sizes = [8, 32], strides = [1, 1]} : vector<8x128xf32> to vector<8x32xf32>
    %199 = vector.extract_strided_slice %195 {offsets = [0, 96], sizes = [8, 32], strides = [1, 1]} : vector<8x128xf32> to vector<8x32xf32>
    %200 = arith.mulf %197, %179 : vector<8x32xf32>
    %201 = arith.mulf %196, %198 : vector<8x32xf32>
    %202 = arith.addf %200, %201 : vector<8x32xf32>
    %203 = math.tanh %202 : vector<8x32xf32>
    %204 = arith.mulf %199, %203 : vector<8x32xf32>
    %cst_55 = arith.constant dense<0.000000e+00> : vector<8x128xf32>
    %205 = tpu.matmul %204, %20, %cst_55 {dimension_numbers = #tpu.dot_dimension_numbers<[1], [0], [0], [1], [0, 0, 1, 1], [], []>} : vector<8x32xf32>, vector<32x128xf32>, vector<8x128xf32> -> vector<8x128xf32>
    %206 = arith.addf %205, %23 : vector<8x128xf32>
    %207 = arith.index_cast %187 : i32 to index
    %c0_56 = arith.constant 0 : index
    %208 = vector.load %arg10[%207, %c0_56] : memref<112x128xf32, #tpu.memory_space<vmem>>, vector<8x128xf32>
    tpu.vector_store %arg10[%207, %c0_56], %206 {strides = array<i32>} : memref<112x128xf32, #tpu.memory_space<vmem>>, vector<8x128xf32>,
    %c8_i32_57 = arith.constant 8 : i32
    %c8_i32_58 = arith.constant 8 : i32
    %209 = arith.muli %c8_i32_57, %c8_i32_58 : i32
    %210 = tpu.assume_multiple %209, 8 : i32
    %211 = arith.index_cast %210 : i32 to index
    %c0_59 = arith.constant 0 : index
    %212 = vector.load %arg9[%211, %c0_59] : memref<112x128xf32, #tpu.memory_space<vmem>>, vector<8x128xf32>
    %cst_60 = arith.constant dense<0.000000e+00> : vector<8x128xf32>
    %213 = tpu.matmul %204, %19, %cst_60 {dimension_numbers = #tpu.dot_dimension_numbers<[1], [0], [0], [1], [0, 0, 1, 1], [], []>} : vector<8x32xf32>, vector<32x128xf32>, vector<8x128xf32> -> vector<8x128xf32>
    %214 = arith.addf %212, %213 : vector<8x128xf32>
    %215 = arith.mulf %214, %8 : vector<8x128xf32>
    %216 = math.tanh %215 : vector<8x128xf32>
    %217 = arith.mulf %216, %8 : vector<8x128xf32>
    %218 = arith.addf %217, %11 : vector<8x128xf32>
    %219 = vector.extract_strided_slice %218 {offsets = [0, 0], sizes = [8, 32], strides = [1, 1]} : vector<8x128xf32> to vector<8x32xf32>
    %220 = vector.extract_strided_slice %218 {offsets = [0, 32], sizes = [8, 32], strides = [1, 1]} : vector<8x128xf32> to vector<8x32xf32>
    %221 = vector.extract_strided_slice %218 {offsets = [0, 64], sizes = [8, 32], strides = [1, 1]} : vector<8x128xf32> to vector<8x32xf32>
    %222 = vector.extract_strided_slice %218 {offsets = [0, 96], sizes = [8, 32], strides = [1, 1]} : vector<8x128xf32> to vector<8x32xf32>
    %223 = arith.mulf %220, %202 : vector<8x32xf32>
    %224 = arith.mulf %219, %221 : vector<8x32xf32>
    %225 = arith.addf %223, %224 : vector<8x32xf32>
    %226 = math.tanh %225 : vector<8x32xf32>
    %227 = arith.mulf %222, %226 : vector<8x32xf32>
    %cst_61 = arith.constant dense<0.000000e+00> : vector<8x128xf32>
    %228 = tpu.matmul %227, %20, %cst_61 {dimension_numbers = #tpu.dot_dimension_numbers<[1], [0], [0], [1], [0, 0, 1, 1], [], []>} : vector<8x32xf32>, vector<32x128xf32>, vector<8x128xf32> -> vector<8x128xf32>
    %229 = arith.addf %228, %23 : vector<8x128xf32>
    %230 = arith.index_cast %210 : i32 to index
    %c0_62 = arith.constant 0 : index
    %231 = vector.load %arg10[%230, %c0_62] : memref<112x128xf32, #tpu.memory_space<vmem>>, vector<8x128xf32>
    tpu.vector_store %arg10[%230, %c0_62], %229 {strides = array<i32>} : memref<112x128xf32, #tpu.memory_space<vmem>>, vector<8x128xf32>,
    %c9_i32 = arith.constant 9 : i32
    %c8_i32_63 = arith.constant 8 : i32
    %232 = arith.muli %c9_i32, %c8_i32_63 : i32
    %233 = tpu.assume_multiple %232, 8 : i32
    %234 = arith.index_cast %233 : i32 to index
    %c0_64 = arith.constant 0 : index
    %235 = vector.load %arg9[%234, %c0_64] : memref<112x128xf32, #tpu.memory_space<vmem>>, vector<8x128xf32>
    %cst_65 = arith.constant dense<0.000000e+00> : vector<8x128xf32>
    %236 = tpu.matmul %227, %19, %cst_65 {dimension_numbers = #tpu.dot_dimension_numbers<[1], [0], [0], [1], [0, 0, 1, 1], [], []>} : vector<8x32xf32>, vector<32x128xf32>, vector<8x128xf32> -> vector<8x128xf32>
    %237 = arith.addf %235, %236 : vector<8x128xf32>
    %238 = arith.mulf %237, %8 : vector<8x128xf32>
    %239 = math.tanh %238 : vector<8x128xf32>
    %240 = arith.mulf %239, %8 : vector<8x128xf32>
    %241 = arith.addf %240, %11 : vector<8x128xf32>
    %242 = vector.extract_strided_slice %241 {offsets = [0, 0], sizes = [8, 32], strides = [1, 1]} : vector<8x128xf32> to vector<8x32xf32>
    %243 = vector.extract_strided_slice %241 {offsets = [0, 32], sizes = [8, 32], strides = [1, 1]} : vector<8x128xf32> to vector<8x32xf32>
    %244 = vector.extract_strided_slice %241 {offsets = [0, 64], sizes = [8, 32], strides = [1, 1]} : vector<8x128xf32> to vector<8x32xf32>
    %245 = vector.extract_strided_slice %241 {offsets = [0, 96], sizes = [8, 32], strides = [1, 1]} : vector<8x128xf32> to vector<8x32xf32>
    %246 = arith.mulf %243, %225 : vector<8x32xf32>
    %247 = arith.mulf %242, %244 : vector<8x32xf32>
    %248 = arith.addf %246, %247 : vector<8x32xf32>
    %249 = math.tanh %248 : vector<8x32xf32>
    %250 = arith.mulf %245, %249 : vector<8x32xf32>
    %cst_66 = arith.constant dense<0.000000e+00> : vector<8x128xf32>
    %251 = tpu.matmul %250, %20, %cst_66 {dimension_numbers = #tpu.dot_dimension_numbers<[1], [0], [0], [1], [0, 0, 1, 1], [], []>} : vector<8x32xf32>, vector<32x128xf32>, vector<8x128xf32> -> vector<8x128xf32>
    %252 = arith.addf %251, %23 : vector<8x128xf32>
    %253 = arith.index_cast %233 : i32 to index
    %c0_67 = arith.constant 0 : index
    %254 = vector.load %arg10[%253, %c0_67] : memref<112x128xf32, #tpu.memory_space<vmem>>, vector<8x128xf32>
    tpu.vector_store %arg10[%253, %c0_67], %252 {strides = array<i32>} : memref<112x128xf32, #tpu.memory_space<vmem>>, vector<8x128xf32>,
    %c10_i32 = arith.constant 10 : i32
    %c8_i32_68 = arith.constant 8 : i32
    %255 = arith.muli %c10_i32, %c8_i32_68 : i32
    %256 = tpu.assume_multiple %255, 8 : i32
    %257 = arith.index_cast %256 : i32 to index
    %c0_69 = arith.constant 0 : index
    %258 = vector.load %arg9[%257, %c0_69] : memref<112x128xf32, #tpu.memory_space<vmem>>, vector<8x128xf32>
    %cst_70 = arith.constant dense<0.000000e+00> : vector<8x128xf32>
    %259 = tpu.matmul %250, %19, %cst_70 {dimension_numbers = #tpu.dot_dimension_numbers<[1], [0], [0], [1], [0, 0, 1, 1], [], []>} : vector<8x32xf32>, vector<32x128xf32>, vector<8x128xf32> -> vector<8x128xf32>
    %260 = arith.addf %258, %259 : vector<8x128xf32>
    %261 = arith.mulf %260, %8 : vector<8x128xf32>
    %262 = math.tanh %261 : vector<8x128xf32>
    %263 = arith.mulf %262, %8 : vector<8x128xf32>
    %264 = arith.addf %263, %11 : vector<8x128xf32>
    %265 = vector.extract_strided_slice %264 {offsets = [0, 0], sizes = [8, 32], strides = [1, 1]} : vector<8x128xf32> to vector<8x32xf32>
    %266 = vector.extract_strided_slice %264 {offsets = [0, 32], sizes = [8, 32], strides = [1, 1]} : vector<8x128xf32> to vector<8x32xf32>
    %267 = vector.extract_strided_slice %264 {offsets = [0, 64], sizes = [8, 32], strides = [1, 1]} : vector<8x128xf32> to vector<8x32xf32>
    %268 = vector.extract_strided_slice %264 {offsets = [0, 96], sizes = [8, 32], strides = [1, 1]} : vector<8x128xf32> to vector<8x32xf32>
    %269 = arith.mulf %266, %248 : vector<8x32xf32>
    %270 = arith.mulf %265, %267 : vector<8x32xf32>
    %271 = arith.addf %269, %270 : vector<8x32xf32>
    %272 = math.tanh %271 : vector<8x32xf32>
    %273 = arith.mulf %268, %272 : vector<8x32xf32>
    %cst_71 = arith.constant dense<0.000000e+00> : vector<8x128xf32>
    %274 = tpu.matmul %273, %20, %cst_71 {dimension_numbers = #tpu.dot_dimension_numbers<[1], [0], [0], [1], [0, 0, 1, 1], [], []>} : vector<8x32xf32>, vector<32x128xf32>, vector<8x128xf32> -> vector<8x128xf32>
    %275 = arith.addf %274, %23 : vector<8x128xf32>
    %276 = arith.index_cast %256 : i32 to index
    %c0_72 = arith.constant 0 : index
    %277 = vector.load %arg10[%276, %c0_72] : memref<112x128xf32, #tpu.memory_space<vmem>>, vector<8x128xf32>
    tpu.vector_store %arg10[%276, %c0_72], %275 {strides = array<i32>} : memref<112x128xf32, #tpu.memory_space<vmem>>, vector<8x128xf32>,
    %c11_i32 = arith.constant 11 : i32
    %c8_i32_73 = arith.constant 8 : i32
    %278 = arith.muli %c11_i32, %c8_i32_73 : i32
    %279 = tpu.assume_multiple %278, 8 : i32
    %280 = arith.index_cast %279 : i32 to index
    %c0_74 = arith.constant 0 : index
    %281 = vector.load %arg9[%280, %c0_74] : memref<112x128xf32, #tpu.memory_space<vmem>>, vector<8x128xf32>
    %cst_75 = arith.constant dense<0.000000e+00> : vector<8x128xf32>
    %282 = tpu.matmul %273, %19, %cst_75 {dimension_numbers = #tpu.dot_dimension_numbers<[1], [0], [0], [1], [0, 0, 1, 1], [], []>} : vector<8x32xf32>, vector<32x128xf32>, vector<8x128xf32> -> vector<8x128xf32>
    %283 = arith.addf %281, %282 : vector<8x128xf32>
    %284 = arith.mulf %283, %8 : vector<8x128xf32>
    %285 = math.tanh %284 : vector<8x128xf32>
    %286 = arith.mulf %285, %8 : vector<8x128xf32>
    %287 = arith.addf %286, %11 : vector<8x128xf32>
    %288 = vector.extract_strided_slice %287 {offsets = [0, 0], sizes = [8, 32], strides = [1, 1]} : vector<8x128xf32> to vector<8x32xf32>
    %289 = vector.extract_strided_slice %287 {offsets = [0, 32], sizes = [8, 32], strides = [1, 1]} : vector<8x128xf32> to vector<8x32xf32>
    %290 = vector.extract_strided_slice %287 {offsets = [0, 64], sizes = [8, 32], strides = [1, 1]} : vector<8x128xf32> to vector<8x32xf32>
    %291 = vector.extract_strided_slice %287 {offsets = [0, 96], sizes = [8, 32], strides = [1, 1]} : vector<8x128xf32> to vector<8x32xf32>
    %292 = arith.mulf %289, %271 : vector<8x32xf32>
    %293 = arith.mulf %288, %290 : vector<8x32xf32>
    %294 = arith.addf %292, %293 : vector<8x32xf32>
    %295 = math.tanh %294 : vector<8x32xf32>
    %296 = arith.mulf %291, %295 : vector<8x32xf32>
    %cst_76 = arith.constant dense<0.000000e+00> : vector<8x128xf32>
    %297 = tpu.matmul %296, %20, %cst_76 {dimension_numbers = #tpu.dot_dimension_numbers<[1], [0], [0], [1], [0, 0, 1, 1], [], []>} : vector<8x32xf32>, vector<32x128xf32>, vector<8x128xf32> -> vector<8x128xf32>
    %298 = arith.addf %297, %23 : vector<8x128xf32>
    %299 = arith.index_cast %279 : i32 to index
    %c0_77 = arith.constant 0 : index
    %300 = vector.load %arg10[%299, %c0_77] : memref<112x128xf32, #tpu.memory_space<vmem>>, vector<8x128xf32>
    tpu.vector_store %arg10[%299, %c0_77], %298 {strides = array<i32>} : memref<112x128xf32, #tpu.memory_space<vmem>>, vector<8x128xf32>,
    %c12_i32 = arith.constant 12 : i32
    %c8_i32_78 = arith.constant 8 : i32
    %301 = arith.muli %c12_i32, %c8_i32_78 : i32
    %302 = tpu.assume_multiple %301, 8 : i32
    %303 = arith.index_cast %302 : i32 to index
    %c0_79 = arith.constant 0 : index
    %304 = vector.load %arg9[%303, %c0_79] : memref<112x128xf32, #tpu.memory_space<vmem>>, vector<8x128xf32>
    %cst_80 = arith.constant dense<0.000000e+00> : vector<8x128xf32>
    %305 = tpu.matmul %296, %19, %cst_80 {dimension_numbers = #tpu.dot_dimension_numbers<[1], [0], [0], [1], [0, 0, 1, 1], [], []>} : vector<8x32xf32>, vector<32x128xf32>, vector<8x128xf32> -> vector<8x128xf32>
    %306 = arith.addf %304, %305 : vector<8x128xf32>
    %307 = arith.mulf %306, %8 : vector<8x128xf32>
    %308 = math.tanh %307 : vector<8x128xf32>
    %309 = arith.mulf %308, %8 : vector<8x128xf32>
    %310 = arith.addf %309, %11 : vector<8x128xf32>
    %311 = vector.extract_strided_slice %310 {offsets = [0, 0], sizes = [8, 32], strides = [1, 1]} : vector<8x128xf32> to vector<8x32xf32>
    %312 = vector.extract_strided_slice %310 {offsets = [0, 32], sizes = [8, 32], strides = [1, 1]} : vector<8x128xf32> to vector<8x32xf32>
    %313 = vector.extract_strided_slice %310 {offsets = [0, 64], sizes = [8, 32], strides = [1, 1]} : vector<8x128xf32> to vector<8x32xf32>
    %314 = vector.extract_strided_slice %310 {offsets = [0, 96], sizes = [8, 32], strides = [1, 1]} : vector<8x128xf32> to vector<8x32xf32>
    %315 = arith.mulf %312, %294 : vector<8x32xf32>
    %316 = arith.mulf %311, %313 : vector<8x32xf32>
    %317 = arith.addf %315, %316 : vector<8x32xf32>
    %318 = math.tanh %317 : vector<8x32xf32>
    %319 = arith.mulf %314, %318 : vector<8x32xf32>
    %cst_81 = arith.constant dense<0.000000e+00> : vector<8x128xf32>
    %320 = tpu.matmul %319, %20, %cst_81 {dimension_numbers = #tpu.dot_dimension_numbers<[1], [0], [0], [1], [0, 0, 1, 1], [], []>} : vector<8x32xf32>, vector<32x128xf32>, vector<8x128xf32> -> vector<8x128xf32>
    %321 = arith.addf %320, %23 : vector<8x128xf32>
    %322 = arith.index_cast %302 : i32 to index
    %c0_82 = arith.constant 0 : index
    %323 = vector.load %arg10[%322, %c0_82] : memref<112x128xf32, #tpu.memory_space<vmem>>, vector<8x128xf32>
    tpu.vector_store %arg10[%322, %c0_82], %321 {strides = array<i32>} : memref<112x128xf32, #tpu.memory_space<vmem>>, vector<8x128xf32>,
    %c13_i32 = arith.constant 13 : i32
    %c8_i32_83 = arith.constant 8 : i32
    %324 = arith.muli %c13_i32, %c8_i32_83 : i32
    %325 = tpu.assume_multiple %324, 8 : i32
    %326 = arith.index_cast %325 : i32 to index
    %c0_84 = arith.constant 0 : index
    %327 = vector.load %arg9[%326, %c0_84] : memref<112x128xf32, #tpu.memory_space<vmem>>, vector<8x128xf32>
    %cst_85 = arith.constant dense<0.000000e+00> : vector<8x128xf32>
    %328 = tpu.matmul %319, %19, %cst_85 {dimension_numbers = #tpu.dot_dimension_numbers<[1], [0], [0], [1], [0, 0, 1, 1], [], []>} : vector<8x32xf32>, vector<32x128xf32>, vector<8x128xf32> -> vector<8x128xf32>
    %329 = arith.addf %327, %328 : vector<8x128xf32>
    %330 = arith.mulf %329, %8 : vector<8x128xf32>
    %331 = math.tanh %330 : vector<8x128xf32>
    %332 = arith.mulf %331, %8 : vector<8x128xf32>
    %333 = arith.addf %332, %11 : vector<8x128xf32>
    %334 = vector.extract_strided_slice %333 {offsets = [0, 0], sizes = [8, 32], strides = [1, 1]} : vector<8x128xf32> to vector<8x32xf32>
    %335 = vector.extract_strided_slice %333 {offsets = [0, 32], sizes = [8, 32], strides = [1, 1]} : vector<8x128xf32> to vector<8x32xf32>
    %336 = vector.extract_strided_slice %333 {offsets = [0, 64], sizes = [8, 32], strides = [1, 1]} : vector<8x128xf32> to vector<8x32xf32>
    %337 = vector.extract_strided_slice %333 {offsets = [0, 96], sizes = [8, 32], strides = [1, 1]} : vector<8x128xf32> to vector<8x32xf32>
    %338 = arith.mulf %335, %317 : vector<8x32xf32>
    %339 = arith.mulf %334, %336 : vector<8x32xf32>
    %340 = arith.addf %338, %339 : vector<8x32xf32>
    %341 = math.tanh %340 : vector<8x32xf32>
    %342 = arith.mulf %337, %341 : vector<8x32xf32>
    %cst_86 = arith.constant dense<0.000000e+00> : vector<8x128xf32>
    %343 = tpu.matmul %342, %20, %cst_86 {dimension_numbers = #tpu.dot_dimension_numbers<[1], [0], [0], [1], [0, 0, 1, 1], [], []>} : vector<8x32xf32>, vector<32x128xf32>, vector<8x128xf32> -> vector<8x128xf32>
    %344 = arith.addf %343, %23 : vector<8x128xf32>
    %345 = arith.index_cast %325 : i32 to index
    %c0_87 = arith.constant 0 : index
    %346 = vector.load %arg10[%345, %c0_87] : memref<112x128xf32, #tpu.memory_space<vmem>>, vector<8x128xf32>
    tpu.vector_store %arg10[%345, %c0_87], %344 {strides = array<i32>} : memref<112x128xf32, #tpu.memory_space<vmem>>, vector<8x128xf32>,
    %c14_i32 = arith.constant 14 : i32
    %c0_88 = arith.constant 0 : index
    %c0_89 = arith.constant 0 : index
    %347 = vector.load %arg7[%c0_88, %c0_89] : memref<32x128xf32, #tpu.memory_space<vmem>>, vector<32x128xf32>
    %cst_90 = arith.constant 0.000000e+00 : f32
    %348 = vector.broadcast %cst_90 : f32 to vector<8x32xf32>
    %c0_i32_91 = arith.constant 0 : i32
    %c8_i32_92 = arith.constant 8 : i32
    %349 = arith.muli %c0_i32_91, %c8_i32_92 : i32
    %350 = tpu.assume_multiple %349, 8 : i32
    %351 = arith.index_cast %350 : i32 to index
    %c0_93 = arith.constant 0 : index
    %352 = vector.load %arg10[%351, %c0_93] : memref<112x128xf32, #tpu.memory_space<vmem>>, vector<8x128xf32>
    %cst_94 = arith.constant dense<0.000000e+00> : vector<8x128xf32>
    %353 = tpu.matmul %348, %347, %cst_94 {dimension_numbers = #tpu.dot_dimension_numbers<[1], [0], [0], [1], [0, 0, 1, 1], [], []>} : vector<8x32xf32>, vector<32x128xf32>, vector<8x128xf32> -> vector<8x128xf32>
    %354 = arith.addf %352, %353 : vector<8x128xf32>
    %355 = arith.mulf %354, %8 : vector<8x128xf32>
    %356 = math.tanh %355 : vector<8x128xf32>
    %357 = arith.mulf %356, %8 : vector<8x128xf32>
    %358 = arith.addf %357, %11 : vector<8x128xf32>
    %359 = vector.extract_strided_slice %358 {offsets = [0, 0], sizes = [8, 32], strides = [1, 1]} : vector<8x128xf32> to vector<8x32xf32>
    %360 = vector.extract_strided_slice %358 {offsets = [0, 32], sizes = [8, 32], strides = [1, 1]} : vector<8x128xf32> to vector<8x32xf32>
    %361 = vector.extract_strided_slice %358 {offsets = [0, 64], sizes = [8, 32], strides = [1, 1]} : vector<8x128xf32> to vector<8x32xf32>
    %362 = vector.extract_strided_slice %358 {offsets = [0, 96], sizes = [8, 32], strides = [1, 1]} : vector<8x128xf32> to vector<8x32xf32>
    %363 = arith.mulf %360, %348 : vector<8x32xf32>
    %364 = arith.mulf %359, %361 : vector<8x32xf32>
    %365 = arith.addf %363, %364 : vector<8x32xf32>
    %366 = math.tanh %365 : vector<8x32xf32>
    %367 = arith.mulf %362, %366 : vector<8x32xf32>
    %c1_i32_95 = arith.constant 1 : i32
    %c8_i32_96 = arith.constant 8 : i32
    %368 = arith.muli %c1_i32_95, %c8_i32_96 : i32
    %369 = tpu.assume_multiple %368, 8 : i32
    %370 = arith.index_cast %369 : i32 to index
    %c0_97 = arith.constant 0 : index
    %371 = vector.load %arg10[%370, %c0_97] : memref<112x128xf32, #tpu.memory_space<vmem>>, vector<8x128xf32>
    %cst_98 = arith.constant dense<0.000000e+00> : vector<8x128xf32>
    %372 = tpu.matmul %367, %347, %cst_98 {dimension_numbers = #tpu.dot_dimension_numbers<[1], [0], [0], [1], [0, 0, 1, 1], [], []>} : vector<8x32xf32>, vector<32x128xf32>, vector<8x128xf32> -> vector<8x128xf32>
    %373 = arith.addf %371, %372 : vector<8x128xf32>
    %374 = arith.mulf %373, %8 : vector<8x128xf32>
    %375 = math.tanh %374 : vector<8x128xf32>
    %376 = arith.mulf %375, %8 : vector<8x128xf32>
    %377 = arith.addf %376, %11 : vector<8x128xf32>
    %378 = vector.extract_strided_slice %377 {offsets = [0, 0], sizes = [8, 32], strides = [1, 1]} : vector<8x128xf32> to vector<8x32xf32>
    %379 = vector.extract_strided_slice %377 {offsets = [0, 32], sizes = [8, 32], strides = [1, 1]} : vector<8x128xf32> to vector<8x32xf32>
    %380 = vector.extract_strided_slice %377 {offsets = [0, 64], sizes = [8, 32], strides = [1, 1]} : vector<8x128xf32> to vector<8x32xf32>
    %381 = vector.extract_strided_slice %377 {offsets = [0, 96], sizes = [8, 32], strides = [1, 1]} : vector<8x128xf32> to vector<8x32xf32>
    %382 = arith.mulf %379, %365 : vector<8x32xf32>
    %383 = arith.mulf %378, %380 : vector<8x32xf32>
    %384 = arith.addf %382, %383 : vector<8x32xf32>
    %385 = math.tanh %384 : vector<8x32xf32>
    %386 = arith.mulf %381, %385 : vector<8x32xf32>
    %c2_i32_99 = arith.constant 2 : i32
    %c8_i32_100 = arith.constant 8 : i32
    %387 = arith.muli %c2_i32_99, %c8_i32_100 : i32
    %388 = tpu.assume_multiple %387, 8 : i32
    %389 = arith.index_cast %388 : i32 to index
    %c0_101 = arith.constant 0 : index
    %390 = vector.load %arg10[%389, %c0_101] : memref<112x128xf32, #tpu.memory_space<vmem>>, vector<8x128xf32>
    %cst_102 = arith.constant dense<0.000000e+00> : vector<8x128xf32>
    %391 = tpu.matmul %386, %347, %cst_102 {dimension_numbers = #tpu.dot_dimension_numbers<[1], [0], [0], [1], [0, 0, 1, 1], [], []>} : vector<8x32xf32>, vector<32x128xf32>, vector<8x128xf32> -> vector<8x128xf32>
    %392 = arith.addf %390, %391 : vector<8x128xf32>
    %393 = arith.mulf %392, %8 : vector<8x128xf32>
    %394 = math.tanh %393 : vector<8x128xf32>
    %395 = arith.mulf %394, %8 : vector<8x128xf32>
    %396 = arith.addf %395, %11 : vector<8x128xf32>
    %397 = vector.extract_strided_slice %396 {offsets = [0, 0], sizes = [8, 32], strides = [1, 1]} : vector<8x128xf32> to vector<8x32xf32>
    %398 = vector.extract_strided_slice %396 {offsets = [0, 32], sizes = [8, 32], strides = [1, 1]} : vector<8x128xf32> to vector<8x32xf32>
    %399 = vector.extract_strided_slice %396 {offsets = [0, 64], sizes = [8, 32], strides = [1, 1]} : vector<8x128xf32> to vector<8x32xf32>
    %400 = vector.extract_strided_slice %396 {offsets = [0, 96], sizes = [8, 32], strides = [1, 1]} : vector<8x128xf32> to vector<8x32xf32>
    %401 = arith.mulf %398, %384 : vector<8x32xf32>
    %402 = arith.mulf %397, %399 : vector<8x32xf32>
    %403 = arith.addf %401, %402 : vector<8x32xf32>
    %404 = math.tanh %403 : vector<8x32xf32>
    %405 = arith.mulf %400, %404 : vector<8x32xf32>
    %c3_i32_103 = arith.constant 3 : i32
    %c8_i32_104 = arith.constant 8 : i32
    %406 = arith.muli %c3_i32_103, %c8_i32_104 : i32
    %407 = tpu.assume_multiple %406, 8 : i32
    %408 = arith.index_cast %407 : i32 to index
    %c0_105 = arith.constant 0 : index
    %409 = vector.load %arg10[%408, %c0_105] : memref<112x128xf32, #tpu.memory_space<vmem>>, vector<8x128xf32>
    %cst_106 = arith.constant dense<0.000000e+00> : vector<8x128xf32>
    %410 = tpu.matmul %405, %347, %cst_106 {dimension_numbers = #tpu.dot_dimension_numbers<[1], [0], [0], [1], [0, 0, 1, 1], [], []>} : vector<8x32xf32>, vector<32x128xf32>, vector<8x128xf32> -> vector<8x128xf32>
    %411 = arith.addf %409, %410 : vector<8x128xf32>
    %412 = arith.mulf %411, %8 : vector<8x128xf32>
    %413 = math.tanh %412 : vector<8x128xf32>
    %414 = arith.mulf %413, %8 : vector<8x128xf32>
    %415 = arith.addf %414, %11 : vector<8x128xf32>
    %416 = vector.extract_strided_slice %415 {offsets = [0, 0], sizes = [8, 32], strides = [1, 1]} : vector<8x128xf32> to vector<8x32xf32>
    %417 = vector.extract_strided_slice %415 {offsets = [0, 32], sizes = [8, 32], strides = [1, 1]} : vector<8x128xf32> to vector<8x32xf32>
    %418 = vector.extract_strided_slice %415 {offsets = [0, 64], sizes = [8, 32], strides = [1, 1]} : vector<8x128xf32> to vector<8x32xf32>
    %419 = vector.extract_strided_slice %415 {offsets = [0, 96], sizes = [8, 32], strides = [1, 1]} : vector<8x128xf32> to vector<8x32xf32>
    %420 = arith.mulf %417, %403 : vector<8x32xf32>
    %421 = arith.mulf %416, %418 : vector<8x32xf32>
    %422 = arith.addf %420, %421 : vector<8x32xf32>
    %423 = math.tanh %422 : vector<8x32xf32>
    %424 = arith.mulf %419, %423 : vector<8x32xf32>
    %c4_i32_107 = arith.constant 4 : i32
    %c8_i32_108 = arith.constant 8 : i32
    %425 = arith.muli %c4_i32_107, %c8_i32_108 : i32
    %426 = tpu.assume_multiple %425, 8 : i32
    %427 = arith.index_cast %426 : i32 to index
    %c0_109 = arith.constant 0 : index
    %428 = vector.load %arg10[%427, %c0_109] : memref<112x128xf32, #tpu.memory_space<vmem>>, vector<8x128xf32>
    %cst_110 = arith.constant dense<0.000000e+00> : vector<8x128xf32>
    %429 = tpu.matmul %424, %347, %cst_110 {dimension_numbers = #tpu.dot_dimension_numbers<[1], [0], [0], [1], [0, 0, 1, 1], [], []>} : vector<8x32xf32>, vector<32x128xf32>, vector<8x128xf32> -> vector<8x128xf32>
    %430 = arith.addf %428, %429 : vector<8x128xf32>
    %431 = arith.mulf %430, %8 : vector<8x128xf32>
    %432 = math.tanh %431 : vector<8x128xf32>
    %433 = arith.mulf %432, %8 : vector<8x128xf32>
    %434 = arith.addf %433, %11 : vector<8x128xf32>
    %435 = vector.extract_strided_slice %434 {offsets = [0, 0], sizes = [8, 32], strides = [1, 1]} : vector<8x128xf32> to vector<8x32xf32>
    %436 = vector.extract_strided_slice %434 {offsets = [0, 32], sizes = [8, 32], strides = [1, 1]} : vector<8x128xf32> to vector<8x32xf32>
    %437 = vector.extract_strided_slice %434 {offsets = [0, 64], sizes = [8, 32], strides = [1, 1]} : vector<8x128xf32> to vector<8x32xf32>
    %438 = vector.extract_strided_slice %434 {offsets = [0, 96], sizes = [8, 32], strides = [1, 1]} : vector<8x128xf32> to vector<8x32xf32>
    %439 = arith.mulf %436, %422 : vector<8x32xf32>
    %440 = arith.mulf %435, %437 : vector<8x32xf32>
    %441 = arith.addf %439, %440 : vector<8x32xf32>
    %442 = math.tanh %441 : vector<8x32xf32>
    %443 = arith.mulf %438, %442 : vector<8x32xf32>
    %c5_i32_111 = arith.constant 5 : i32
    %c8_i32_112 = arith.constant 8 : i32
    %444 = arith.muli %c5_i32_111, %c8_i32_112 : i32
    %445 = tpu.assume_multiple %444, 8 : i32
    %446 = arith.index_cast %445 : i32 to index
    %c0_113 = arith.constant 0 : index
    %447 = vector.load %arg10[%446, %c0_113] : memref<112x128xf32, #tpu.memory_space<vmem>>, vector<8x128xf32>
    %cst_114 = arith.constant dense<0.000000e+00> : vector<8x128xf32>
    %448 = tpu.matmul %443, %347, %cst_114 {dimension_numbers = #tpu.dot_dimension_numbers<[1], [0], [0], [1], [0, 0, 1, 1], [], []>} : vector<8x32xf32>, vector<32x128xf32>, vector<8x128xf32> -> vector<8x128xf32>
    %449 = arith.addf %447, %448 : vector<8x128xf32>
    %450 = arith.mulf %449, %8 : vector<8x128xf32>
    %451 = math.tanh %450 : vector<8x128xf32>
    %452 = arith.mulf %451, %8 : vector<8x128xf32>
    %453 = arith.addf %452, %11 : vector<8x128xf32>
    %454 = vector.extract_strided_slice %453 {offsets = [0, 0], sizes = [8, 32], strides = [1, 1]} : vector<8x128xf32> to vector<8x32xf32>
    %455 = vector.extract_strided_slice %453 {offsets = [0, 32], sizes = [8, 32], strides = [1, 1]} : vector<8x128xf32> to vector<8x32xf32>
    %456 = vector.extract_strided_slice %453 {offsets = [0, 64], sizes = [8, 32], strides = [1, 1]} : vector<8x128xf32> to vector<8x32xf32>
    %457 = vector.extract_strided_slice %453 {offsets = [0, 96], sizes = [8, 32], strides = [1, 1]} : vector<8x128xf32> to vector<8x32xf32>
    %458 = arith.mulf %455, %441 : vector<8x32xf32>
    %459 = arith.mulf %454, %456 : vector<8x32xf32>
    %460 = arith.addf %458, %459 : vector<8x32xf32>
    %461 = math.tanh %460 : vector<8x32xf32>
    %462 = arith.mulf %457, %461 : vector<8x32xf32>
    %c6_i32_115 = arith.constant 6 : i32
    %c8_i32_116 = arith.constant 8 : i32
    %463 = arith.muli %c6_i32_115, %c8_i32_116 : i32
    %464 = tpu.assume_multiple %463, 8 : i32
    %465 = arith.index_cast %464 : i32 to index
    %c0_117 = arith.constant 0 : index
    %466 = vector.load %arg10[%465, %c0_117] : memref<112x128xf32, #tpu.memory_space<vmem>>, vector<8x128xf32>
    %cst_118 = arith.constant dense<0.000000e+00> : vector<8x128xf32>
    %467 = tpu.matmul %462, %347, %cst_118 {dimension_numbers = #tpu.dot_dimension_numbers<[1], [0], [0], [1], [0, 0, 1, 1], [], []>} : vector<8x32xf32>, vector<32x128xf32>, vector<8x128xf32> -> vector<8x128xf32>
    %468 = arith.addf %466, %467 : vector<8x128xf32>
    %469 = arith.mulf %468, %8 : vector<8x128xf32>
    %470 = math.tanh %469 : vector<8x128xf32>
    %471 = arith.mulf %470, %8 : vector<8x128xf32>
    %472 = arith.addf %471, %11 : vector<8x128xf32>
    %473 = vector.extract_strided_slice %472 {offsets = [0, 0], sizes = [8, 32], strides = [1, 1]} : vector<8x128xf32> to vector<8x32xf32>
    %474 = vector.extract_strided_slice %472 {offsets = [0, 32], sizes = [8, 32], strides = [1, 1]} : vector<8x128xf32> to vector<8x32xf32>
    %475 = vector.extract_strided_slice %472 {offsets = [0, 64], sizes = [8, 32], strides = [1, 1]} : vector<8x128xf32> to vector<8x32xf32>
    %476 = vector.extract_strided_slice %472 {offsets = [0, 96], sizes = [8, 32], strides = [1, 1]} : vector<8x128xf32> to vector<8x32xf32>
    %477 = arith.mulf %474, %460 : vector<8x32xf32>
    %478 = arith.mulf %473, %475 : vector<8x32xf32>
    %479 = arith.addf %477, %478 : vector<8x32xf32>
    %480 = math.tanh %479 : vector<8x32xf32>
    %481 = arith.mulf %476, %480 : vector<8x32xf32>
    %c7_i32_119 = arith.constant 7 : i32
    %c8_i32_120 = arith.constant 8 : i32
    %482 = arith.muli %c7_i32_119, %c8_i32_120 : i32
    %483 = tpu.assume_multiple %482, 8 : i32
    %484 = arith.index_cast %483 : i32 to index
    %c0_121 = arith.constant 0 : index
    %485 = vector.load %arg10[%484, %c0_121] : memref<112x128xf32, #tpu.memory_space<vmem>>, vector<8x128xf32>
    %cst_122 = arith.constant dense<0.000000e+00> : vector<8x128xf32>
    %486 = tpu.matmul %481, %347, %cst_122 {dimension_numbers = #tpu.dot_dimension_numbers<[1], [0], [0], [1], [0, 0, 1, 1], [], []>} : vector<8x32xf32>, vector<32x128xf32>, vector<8x128xf32> -> vector<8x128xf32>
    %487 = arith.addf %485, %486 : vector<8x128xf32>
    %488 = arith.mulf %487, %8 : vector<8x128xf32>
    %489 = math.tanh %488 : vector<8x128xf32>
    %490 = arith.mulf %489, %8 : vector<8x128xf32>
    %491 = arith.addf %490, %11 : vector<8x128xf32>
    %492 = vector.extract_strided_slice %491 {offsets = [0, 0], sizes = [8, 32], strides = [1, 1]} : vector<8x128xf32> to vector<8x32xf32>
    %493 = vector.extract_strided_slice %491 {offsets = [0, 32], sizes = [8, 32], strides = [1, 1]} : vector<8x128xf32> to vector<8x32xf32>
    %494 = vector.extract_strided_slice %491 {offsets = [0, 64], sizes = [8, 32], strides = [1, 1]} : vector<8x128xf32> to vector<8x32xf32>
    %495 = vector.extract_strided_slice %491 {offsets = [0, 96], sizes = [8, 32], strides = [1, 1]} : vector<8x128xf32> to vector<8x32xf32>
    %496 = arith.mulf %493, %479 : vector<8x32xf32>
    %497 = arith.mulf %492, %494 : vector<8x32xf32>
    %498 = arith.addf %496, %497 : vector<8x32xf32>
    %499 = math.tanh %498 : vector<8x32xf32>
    %500 = arith.mulf %495, %499 : vector<8x32xf32>
    %c8_i32_123 = arith.constant 8 : i32
    %c8_i32_124 = arith.constant 8 : i32
    %501 = arith.muli %c8_i32_123, %c8_i32_124 : i32
    %502 = tpu.assume_multiple %501, 8 : i32
    %503 = arith.index_cast %502 : i32 to index
    %c0_125 = arith.constant 0 : index
    %504 = vector.load %arg10[%503, %c0_125] : memref<112x128xf32, #tpu.memory_space<vmem>>, vector<8x128xf32>
    %cst_126 = arith.constant dense<0.000000e+00> : vector<8x128xf32>
    %505 = tpu.matmul %500, %347, %cst_126 {dimension_numbers = #tpu.dot_dimension_numbers<[1], [0], [0], [1], [0, 0, 1, 1], [], []>} : vector<8x32xf32>, vector<32x128xf32>, vector<8x128xf32> -> vector<8x128xf32>
    %506 = arith.addf %504, %505 : vector<8x128xf32>
    %507 = arith.mulf %506, %8 : vector<8x128xf32>
    %508 = math.tanh %507 : vector<8x128xf32>
    %509 = arith.mulf %508, %8 : vector<8x128xf32>
    %510 = arith.addf %509, %11 : vector<8x128xf32>
    %511 = vector.extract_strided_slice %510 {offsets = [0, 0], sizes = [8, 32], strides = [1, 1]} : vector<8x128xf32> to vector<8x32xf32>
    %512 = vector.extract_strided_slice %510 {offsets = [0, 32], sizes = [8, 32], strides = [1, 1]} : vector<8x128xf32> to vector<8x32xf32>
    %513 = vector.extract_strided_slice %510 {offsets = [0, 64], sizes = [8, 32], strides = [1, 1]} : vector<8x128xf32> to vector<8x32xf32>
    %514 = vector.extract_strided_slice %510 {offsets = [0, 96], sizes = [8, 32], strides = [1, 1]} : vector<8x128xf32> to vector<8x32xf32>
    %515 = arith.mulf %512, %498 : vector<8x32xf32>
    %516 = arith.mulf %511, %513 : vector<8x32xf32>
    %517 = arith.addf %515, %516 : vector<8x32xf32>
    %518 = math.tanh %517 : vector<8x32xf32>
    %519 = arith.mulf %514, %518 : vector<8x32xf32>
    %c9_i32_127 = arith.constant 9 : i32
    %c8_i32_128 = arith.constant 8 : i32
    %520 = arith.muli %c9_i32_127, %c8_i32_128 : i32
    %521 = tpu.assume_multiple %520, 8 : i32
    %522 = arith.index_cast %521 : i32 to index
    %c0_129 = arith.constant 0 : index
    %523 = vector.load %arg10[%522, %c0_129] : memref<112x128xf32, #tpu.memory_space<vmem>>, vector<8x128xf32>
    %cst_130 = arith.constant dense<0.000000e+00> : vector<8x128xf32>
    %524 = tpu.matmul %519, %347, %cst_130 {dimension_numbers = #tpu.dot_dimension_numbers<[1], [0], [0], [1], [0, 0, 1, 1], [], []>} : vector<8x32xf32>, vector<32x128xf32>, vector<8x128xf32> -> vector<8x128xf32>
    %525 = arith.addf %523, %524 : vector<8x128xf32>
    %526 = arith.mulf %525, %8 : vector<8x128xf32>
    %527 = math.tanh %526 : vector<8x128xf32>
    %528 = arith.mulf %527, %8 : vector<8x128xf32>
    %529 = arith.addf %528, %11 : vector<8x128xf32>
    %530 = vector.extract_strided_slice %529 {offsets = [0, 0], sizes = [8, 32], strides = [1, 1]} : vector<8x128xf32> to vector<8x32xf32>
    %531 = vector.extract_strided_slice %529 {offsets = [0, 32], sizes = [8, 32], strides = [1, 1]} : vector<8x128xf32> to vector<8x32xf32>
    %532 = vector.extract_strided_slice %529 {offsets = [0, 64], sizes = [8, 32], strides = [1, 1]} : vector<8x128xf32> to vector<8x32xf32>
    %533 = vector.extract_strided_slice %529 {offsets = [0, 96], sizes = [8, 32], strides = [1, 1]} : vector<8x128xf32> to vector<8x32xf32>
    %534 = arith.mulf %531, %517 : vector<8x32xf32>
    %535 = arith.mulf %530, %532 : vector<8x32xf32>
    %536 = arith.addf %534, %535 : vector<8x32xf32>
    %537 = math.tanh %536 : vector<8x32xf32>
    %538 = arith.mulf %533, %537 : vector<8x32xf32>
    %c10_i32_131 = arith.constant 10 : i32
    %c8_i32_132 = arith.constant 8 : i32
    %539 = arith.muli %c10_i32_131, %c8_i32_132 : i32
    %540 = tpu.assume_multiple %539, 8 : i32
    %541 = arith.index_cast %540 : i32 to index
    %c0_133 = arith.constant 0 : index
    %542 = vector.load %arg10[%541, %c0_133] : memref<112x128xf32, #tpu.memory_space<vmem>>, vector<8x128xf32>
    %cst_134 = arith.constant dense<0.000000e+00> : vector<8x128xf32>
    %543 = tpu.matmul %538, %347, %cst_134 {dimension_numbers = #tpu.dot_dimension_numbers<[1], [0], [0], [1], [0, 0, 1, 1], [], []>} : vector<8x32xf32>, vector<32x128xf32>, vector<8x128xf32> -> vector<8x128xf32>
    %544 = arith.addf %542, %543 : vector<8x128xf32>
    %545 = arith.mulf %544, %8 : vector<8x128xf32>
    %546 = math.tanh %545 : vector<8x128xf32>
    %547 = arith.mulf %546, %8 : vector<8x128xf32>
    %548 = arith.addf %547, %11 : vector<8x128xf32>
    %549 = vector.extract_strided_slice %548 {offsets = [0, 0], sizes = [8, 32], strides = [1, 1]} : vector<8x128xf32> to vector<8x32xf32>
    %550 = vector.extract_strided_slice %548 {offsets = [0, 32], sizes = [8, 32], strides = [1, 1]} : vector<8x128xf32> to vector<8x32xf32>
    %551 = vector.extract_strided_slice %548 {offsets = [0, 64], sizes = [8, 32], strides = [1, 1]} : vector<8x128xf32> to vector<8x32xf32>
    %552 = vector.extract_strided_slice %548 {offsets = [0, 96], sizes = [8, 32], strides = [1, 1]} : vector<8x128xf32> to vector<8x32xf32>
    %553 = arith.mulf %550, %536 : vector<8x32xf32>
    %554 = arith.mulf %549, %551 : vector<8x32xf32>
    %555 = arith.addf %553, %554 : vector<8x32xf32>
    %556 = math.tanh %555 : vector<8x32xf32>
    %557 = arith.mulf %552, %556 : vector<8x32xf32>
    %c11_i32_135 = arith.constant 11 : i32
    %c8_i32_136 = arith.constant 8 : i32
    %558 = arith.muli %c11_i32_135, %c8_i32_136 : i32
    %559 = tpu.assume_multiple %558, 8 : i32
    %560 = arith.index_cast %559 : i32 to index
    %c0_137 = arith.constant 0 : index
    %561 = vector.load %arg10[%560, %c0_137] : memref<112x128xf32, #tpu.memory_space<vmem>>, vector<8x128xf32>
    %cst_138 = arith.constant dense<0.000000e+00> : vector<8x128xf32>
    %562 = tpu.matmul %557, %347, %cst_138 {dimension_numbers = #tpu.dot_dimension_numbers<[1], [0], [0], [1], [0, 0, 1, 1], [], []>} : vector<8x32xf32>, vector<32x128xf32>, vector<8x128xf32> -> vector<8x128xf32>
    %563 = arith.addf %561, %562 : vector<8x128xf32>
    %564 = arith.mulf %563, %8 : vector<8x128xf32>
    %565 = math.tanh %564 : vector<8x128xf32>
    %566 = arith.mulf %565, %8 : vector<8x128xf32>
    %567 = arith.addf %566, %11 : vector<8x128xf32>
    %568 = vector.extract_strided_slice %567 {offsets = [0, 0], sizes = [8, 32], strides = [1, 1]} : vector<8x128xf32> to vector<8x32xf32>
    %569 = vector.extract_strided_slice %567 {offsets = [0, 32], sizes = [8, 32], strides = [1, 1]} : vector<8x128xf32> to vector<8x32xf32>
    %570 = vector.extract_strided_slice %567 {offsets = [0, 64], sizes = [8, 32], strides = [1, 1]} : vector<8x128xf32> to vector<8x32xf32>
    %571 = vector.extract_strided_slice %567 {offsets = [0, 96], sizes = [8, 32], strides = [1, 1]} : vector<8x128xf32> to vector<8x32xf32>
    %572 = arith.mulf %569, %555 : vector<8x32xf32>
    %573 = arith.mulf %568, %570 : vector<8x32xf32>
    %574 = arith.addf %572, %573 : vector<8x32xf32>
    %575 = math.tanh %574 : vector<8x32xf32>
    %576 = arith.mulf %571, %575 : vector<8x32xf32>
    %c12_i32_139 = arith.constant 12 : i32
    %c8_i32_140 = arith.constant 8 : i32
    %577 = arith.muli %c12_i32_139, %c8_i32_140 : i32
    %578 = tpu.assume_multiple %577, 8 : i32
    %579 = arith.index_cast %578 : i32 to index
    %c0_141 = arith.constant 0 : index
    %580 = vector.load %arg10[%579, %c0_141] : memref<112x128xf32, #tpu.memory_space<vmem>>, vector<8x128xf32>
    %cst_142 = arith.constant dense<0.000000e+00> : vector<8x128xf32>
    %581 = tpu.matmul %576, %347, %cst_142 {dimension_numbers = #tpu.dot_dimension_numbers<[1], [0], [0], [1], [0, 0, 1, 1], [], []>} : vector<8x32xf32>, vector<32x128xf32>, vector<8x128xf32> -> vector<8x128xf32>
    %582 = arith.addf %580, %581 : vector<8x128xf32>
    %583 = arith.mulf %582, %8 : vector<8x128xf32>
    %584 = math.tanh %583 : vector<8x128xf32>
    %585 = arith.mulf %584, %8 : vector<8x128xf32>
    %586 = arith.addf %585, %11 : vector<8x128xf32>
    %587 = vector.extract_strided_slice %586 {offsets = [0, 0], sizes = [8, 32], strides = [1, 1]} : vector<8x128xf32> to vector<8x32xf32>
    %588 = vector.extract_strided_slice %586 {offsets = [0, 32], sizes = [8, 32], strides = [1, 1]} : vector<8x128xf32> to vector<8x32xf32>
    %589 = vector.extract_strided_slice %586 {offsets = [0, 64], sizes = [8, 32], strides = [1, 1]} : vector<8x128xf32> to vector<8x32xf32>
    %590 = vector.extract_strided_slice %586 {offsets = [0, 96], sizes = [8, 32], strides = [1, 1]} : vector<8x128xf32> to vector<8x32xf32>
    %591 = arith.mulf %588, %574 : vector<8x32xf32>
    %592 = arith.mulf %587, %589 : vector<8x32xf32>
    %593 = arith.addf %591, %592 : vector<8x32xf32>
    %594 = math.tanh %593 : vector<8x32xf32>
    %595 = arith.mulf %590, %594 : vector<8x32xf32>
    %c13_i32_143 = arith.constant 13 : i32
    %c8_i32_144 = arith.constant 8 : i32
    %596 = arith.muli %c13_i32_143, %c8_i32_144 : i32
    %597 = tpu.assume_multiple %596, 8 : i32
    %598 = arith.index_cast %597 : i32 to index
    %c0_145 = arith.constant 0 : index
    %599 = vector.load %arg10[%598, %c0_145] : memref<112x128xf32, #tpu.memory_space<vmem>>, vector<8x128xf32>
    %cst_146 = arith.constant dense<0.000000e+00> : vector<8x128xf32>
    %600 = tpu.matmul %595, %347, %cst_146 {dimension_numbers = #tpu.dot_dimension_numbers<[1], [0], [0], [1], [0, 0, 1, 1], [], []>} : vector<8x32xf32>, vector<32x128xf32>, vector<8x128xf32> -> vector<8x128xf32>
    %601 = arith.addf %599, %600 : vector<8x128xf32>
    %602 = arith.mulf %601, %8 : vector<8x128xf32>
    %603 = math.tanh %602 : vector<8x128xf32>
    %604 = arith.mulf %603, %8 : vector<8x128xf32>
    %605 = arith.addf %604, %11 : vector<8x128xf32>
    %606 = vector.extract_strided_slice %605 {offsets = [0, 0], sizes = [8, 32], strides = [1, 1]} : vector<8x128xf32> to vector<8x32xf32>
    %607 = vector.extract_strided_slice %605 {offsets = [0, 32], sizes = [8, 32], strides = [1, 1]} : vector<8x128xf32> to vector<8x32xf32>
    %608 = vector.extract_strided_slice %605 {offsets = [0, 64], sizes = [8, 32], strides = [1, 1]} : vector<8x128xf32> to vector<8x32xf32>
    %609 = vector.extract_strided_slice %605 {offsets = [0, 96], sizes = [8, 32], strides = [1, 1]} : vector<8x128xf32> to vector<8x32xf32>
    %610 = arith.mulf %607, %593 : vector<8x32xf32>
    %611 = arith.mulf %606, %608 : vector<8x32xf32>
    %612 = arith.addf %610, %611 : vector<8x32xf32>
    %613 = math.tanh %612 : vector<8x32xf32>
    %614 = arith.mulf %609, %613 : vector<8x32xf32>
    %c14_i32_147 = arith.constant 14 : i32
    %c0_148 = arith.constant 0 : index
    %c0_149 = arith.constant 0 : index
    %615 = vector.load %arg8[%c0_148, %c0_149] : memref<8x32xf32, #tpu.memory_space<vmem>>, vector<8x32xf32>
    tpu.vector_store %arg8[%c0_148, %c0_149], %614 {strides = array<i32>} : memref<8x32xf32, #tpu.memory_space<vmem>>, vector<8x32xf32>,
    return
  }
  func.func @transform_0(%arg0: i32) -> (i32, i32) {
    %c0_i32 = arith.constant 0 : i32
    %c0_i32_0 = arith.constant 0 : i32
    %c0_i32_1 = arith.constant 0 : i32
    return %c0_i32, %c0_i32_0 : i32, i32
  }
  func.func @transform_1(%arg0: i32) -> (i32, i32) {
    %c0_i32 = arith.constant 0 : i32
    %c0_i32_0 = arith.constant 0 : i32
    %c0_i32_1 = arith.constant 0 : i32
    return %c0_i32, %c0_i32_0 : i32, i32
  }
  func.func @transform_2(%arg0: i32) -> (i32, i32) {
    %c0_i32 = arith.constant 0 : i32
    %c0_i32_0 = arith.constant 0 : i32
    %c0_i32_1 = arith.constant 0 : i32
    return %c0_i32, %c0_i32_0 : i32, i32
  }
  func.func @transform_3(%arg0: i32) -> (i32, i32) {
    %c0_i32 = arith.constant 0 : i32
    %c0_i32_0 = arith.constant 0 : i32
    %c0_i32_1 = arith.constant 0 : i32
    return %c0_i32, %c0_i32_0 : i32, i32
  }
  func.func @transform_4(%arg0: i32) -> (i32, i32) {
    %c0_i32 = arith.constant 0 : i32
    %c0_i32_0 = arith.constant 0 : i32
    %c0_i32_1 = arith.constant 0 : i32
    return %c0_i32, %c0_i32_0 : i32, i32
  }
  func.func @transform_5(%arg0: i32) -> (i32, i32) {
    %c0_i32 = arith.constant 0 : i32
    %c0_i32_0 = arith.constant 0 : i32
    %c0_i32_1 = arith.constant 0 : i32
    return %c0_i32, %c0_i32_0 : i32, i32
  }
  func.func @transform_6(%arg0: i32) -> (i32, i32) {
    %c0_i32 = arith.constant 0 : i32
    %c0_i32_0 = arith.constant 0 : i32
    %c0_i32_1 = arith.constant 0 : i32
    return %c0_i32, %c0_i32_0 : i32, i32
  }
  func.func @transform_7(%arg0: i32) -> (i32, i32) {
    %c0_i32 = arith.constant 0 : i32
    %c0_i32_0 = arith.constant 0 : i32
    %c0_i32_1 = arith.constant 0 : i32
    return %c0_i32, %c0_i32_0 : i32, i32
  }
}

</mosaic_0001>

<llo_original>
// kernel: tpu_custom_call.1
$region0: #{tpu_custom_call.1}
  #allocation0 [shape = 'u32[]', space=smem, size = 0x4, offset = 0x4, fixed_abs, tag = 'smem constant byte address 0x4 - core index']
  #allocation1 [shape = 'u32[144,128]{1,0:T(1,128)}', space=vmem, size = 0x12000, scoped, tag = 'internal scratch']
  #allocation2 [shape = 'f32[112,128]{1,0:T(8,128)}', space=vmem, size = 0xe000, scoped, tag = 'scratch operand']
  #allocation3 [shape = 'f32[112,128]{1,0:T(8,128)}', space=vmem, size = 0xe000, scoped, tag = 'scratch operand']
  %s0 = inlined_call_operand.vmem [shape: f32[112,12], index: 0, kind: input, shape index: {}]
  %s1 = inlined_call_operand.vmem [shape: f32[12,128], index: 1, kind: input, shape index: {}]
  %s2 = inlined_call_operand.vmem [shape: f32[1,128], index: 2, kind: input, shape index: {}]
  %s3 = inlined_call_operand.vmem [shape: f32[32,128], index: 3, kind: input, shape index: {}]
  %s4 = inlined_call_operand.vmem [shape: f32[32,128], index: 4, kind: input, shape index: {}]
  %s5 = inlined_call_operand.vmem [shape: f32[1,128], index: 5, kind: input, shape index: {}]
  %s6 = inlined_call_operand.vmem [shape: f32[32,128], index: 6, kind: input, shape index: {}]
  %s7 = inlined_call_operand.hbm [shape: f32[8,32], index: 7, kind: output, shape index: {}]
  %s8 = sld [smem:[#allocation0]]
  $region38: #{tpu_custom_call.1} parent=0
    _
  %s10 = ssub.s32 1, %s8
  %s11 = scalar_select 0, %s10, %s8
  $region1: #{tpu_custom_call.1} parent=0
    #allocation4 [shape = 'u8[4096]{0}', space=vmem, size = 0x1000, scoped, tag = 'output window, operand 0, single buffered']
    #allocation5 [shape = 's32[1]{0}', space=sflag, size = 0x4, scoped, tag = 'scoped memory for tpu_custom_call.1']
    %12 = vsyncpa [#allocation5], 0
    // Predicated region
    $region2: #{tpu_custom_call.1} parent=1 // pred_check
      _
    $region3: #{tpu_custom_call.1} parent=1 // pred_check_branch
      %14 = sbr.rel (0) target = $region5
    $region4: #{tpu_custom_call.1} parent=1 // pred_region
      _
    $region5: #{tpu_custom_call.1} parent=1 // pred_fallthru
      _
    // Predicated region
    $region6: #{tpu_custom_call.1} parent=1 // pred_check
      _
    $region7: #{tpu_custom_call.1} parent=1 // pred_check_branch
      %16 = sbr.rel (0) target = $region9
    $region8: #{tpu_custom_call.1} parent=1 // pred_region
      _
    $region9: #{tpu_custom_call.1} parent=1 // pred_fallthru
      _
    // Predicated region
    $region10: #{tpu_custom_call.1} parent=1 // pred_check
      _
    $region11: #{tpu_custom_call.1} parent=1 // pred_check_branch
      %18 = sbr.rel (0) target = $region13
    $region12: #{tpu_custom_call.1} parent=1 // pred_region
      _
    $region13: #{tpu_custom_call.1} parent=1 // pred_fallthru
      _
    // Predicated region
    $region14: #{tpu_custom_call.1} parent=1 // pred_check
      _
    $region15: #{tpu_custom_call.1} parent=1 // pred_check_branch
      %20 = sbr.rel (0) target = $region17
    $region16: #{tpu_custom_call.1} parent=1 // pred_region
      _
    $region17: #{tpu_custom_call.1} parent=1 // pred_fallthru
      _
    // Predicated region
    $region18: #{tpu_custom_call.1} parent=1 // pred_check
      _
    $region19: #{tpu_custom_call.1} parent=1 // pred_check_branch
      %22 = sbr.rel (0) target = $region21
    $region20: #{tpu_custom_call.1} parent=1 // pred_region
      _
    $region21: #{tpu_custom_call.1} parent=1 // pred_fallthru
      _
    // Predicated region
    $region22: #{tpu_custom_call.1} parent=1 // pred_check
      _
    $region23: #{tpu_custom_call.1} parent=1 // pred_check_branch
      %24 = sbr.rel (0) target = $region25
    $region24: #{tpu_custom_call.1} parent=1 // pred_region
      _
    $region25: #{tpu_custom_call.1} parent=1 // pred_fallthru
      _
    // Predicated region
    $region26: #{tpu_custom_call.1} parent=1 // pred_check
      _
    $region27: #{tpu_custom_call.1} parent=1 // pred_check_branch
      %26 = sbr.rel (0) target = $region29
    $region28: #{tpu_custom_call.1} parent=1 // pred_region
      _
    $region29: #{tpu_custom_call.1} parent=1 // pred_fallthru
      _
    %v27 = vlaneseq
    %v28 = vand.u32 %v27, 127
    %vm29 = vcmp.ge.s32.totalorder %v28, 64
    %vm30 = vcmp.lt.s32.totalorder %v28, 96
    %vm31 = vmand %vm29, %vm30
    %v32 = vsel %vm31, 1.0, 0.5
    %v33 = vsel %vm31, 0.0, 0.5
    %v34 = vld [vmem:[%s0] sm:$0xff]
    %v35 = vld [vmem:[%s0 + $0x8] sm:$0xff]
    %v36 = vld [vmem:[%s0 + $0x10] sm:$0xff]
    %v37 = vld [vmem:[%s0 + $0x18] sm:$0xff]
    %v38 = vld [vmem:[%s0 + $0x20] sm:$0xff]
    %v39 = vld [vmem:[%s0 + $0x28] sm:$0xff]
    %v40 = vld [vmem:[%s0 + $0x30] sm:$0xff]
    %v41 = vld [vmem:[%s0 + $0x38] sm:$0xff]
    %v42 = vld [vmem:[%s0 + $0x40] sm:$0xff]
    %v43 = vld [vmem:[%s0 + $0x48] sm:$0xff]
    %v44 = vld [vmem:[%s0 + $0x50] sm:$0xff]
    %v45 = vld [vmem:[%s0 + $0x58] sm:$0xff]
    %v46 = vld [vmem:[%s0 + $0x60] sm:$0xff]
    %v47 = vld [vmem:[%s0 + $0x68] sm:$0xff]
    %v48 = vld [vmem:[%s1] sm:$0xff]
    %v49 = vld [vmem:[%s1 + $0x8] sm:$0xf]
    %v50 = vld [vmem:[%s2] sm:$0x1]
    %v52 = vlaneseq
    %v53 = vshrl.u32 %v52, 7
    %v54 = vsub.s32 0, %v53
    %v55 = vrot.slane %v50, %v54
    %vm57 = vcmask 97280
    %v59 = vsel %vm57, %v34, 0
    %v62 = vsel %vm57, %v35, 0
    %v65 = vsel %vm57, %v36, 0
    %v68 = vsel %vm57, %v37, 0
    %v71 = vsel %vm57, %v38, 0
    %v74 = vsel %vm57, %v39, 0
    %v77 = vsel %vm57, %v40, 0
    %v80 = vsel %vm57, %v41, 0
    %v83 = vsel %vm57, %v42, 0
    %v86 = vsel %vm57, %v43, 0
    %v89 = vsel %vm57, %v44, 0
    %v92 = vsel %vm57, %v45, 0
    %v95 = vsel %vm57, %v46, 0
    %v98 = vsel %vm57, %v47, 0
    %vm100 = vcmask 1043456
    %v102 = vsel %vm100, %v49, 0
    %104 = vmatprep.subr.mxu0 0.0
    %105 = vmatpush1.msra.mxu0 %v48
    %106 = vmatprep.subr.mxu0 0.0
    %107 = vmatpush1.msra.mxu0 %v102
    %108 = vmatprep.subr.mxu0 0.0
    %109 = vmatpush1.msra.mxu0 0.0
    %110 = vmatprep.subr.mxu0 0.0
    %111 = vmatpush1.msra.mxu0 0.0
    %112 = vmatprep.subr.mxu0 0.0
    %113 = vmatpush1.msra.mxu0 0.0
    %114 = vmatprep.subr.mxu0 0.0
    %115 = vmatpush1.msra.mxu0 0.0
    %116 = vmatprep.subr.mxu0 0.0
    %117 = vmatpush1.msra.mxu0 0.0
    %118 = vmatprep.subr.mxu0 0.0
    %119 = vmatpush1.msra.mxu0 0.0
    %120 = vmatprep.subr.mxu0 0.0
    %121 = vmatpush1.msra.mxu0 0.0
    %122 = vmatprep.subr.mxu0 0.0
    %123 = vmatpush1.msra.mxu0 0.0
    %124 = vmatprep.subr.mxu0 0.0
    %125 = vmatpush1.msra.mxu0 0.0
    %126 = vmatprep.subr.mxu0 0.0
    %127 = vmatpush1.msra.mxu0 0.0
    %128 = vmatprep.subr.mxu0 0.0
    %129 = vmatpush1.msra.mxu0 0.0
    %130 = vmatprep.subr.mxu0 0.0
    %131 = vmatpush1.msra.mxu0 0.0
    %132 = vmatprep.subr.mxu0 0.0
    %133 = vmatpush1.msra.mxu0 0.0
    %134 = vmatprep.subr.mxu0 0.0
    %135 = vmatpush1.msra.mxu0 0.0
    %136 = vmatprep.subr.mxu0 0.0
    %137 = vmatpush1.msra.mxu0 0.0
    %138 = vmatprep.subr.mxu0 0.0
    %139 = vmatpush1.msra.mxu0 0.0
    %140 = vmatprep.subr.mxu0 0.0
    %141 = vmatpush1.msra.mxu0 0.0
    %142 = vmatprep.subr.mxu0 0.0
    %143 = vmatpush1.msra.mxu0 0.0
    %144 = vmatprep.subr.mxu0 0.0
    %145 = vmatpush1.msra.mxu0 0.0
    %146 = vmatprep.subr.mxu0 0.0
    %147 = vmatpush1.msra.mxu0 0.0
    %148 = vmatprep.subr.mxu0 0.0
    %149 = vmatpush1.msra.mxu0 0.0
    %150 = vmatprep.subr.mxu0 0.0
    %151 = vmatpush1.msra.mxu0 0.0
    %152 = vmatprep.subr.mxu0 0.0
    %153 = vmatpush1.msra.mxu0 0.0
    %154 = vmatprep.subr.mxu0 0.0
    %155 = vmatpush1.msra.mxu0 0.0
    %156 = vmatprep.subr.mxu0 0.0
    %157 = vmatpush1.msra.mxu0 0.0
    %158 = vmatprep.subr.mxu0 0.0
    %159 = vmatpush1.msra.mxu0 0.0
    %160 = vmatprep.subr.mxu0 0.0
    %161 = vmatpush1.msra.mxu0 0.0
    %162 = vmatprep.subr.mxu0 0.0
    %163 = vmatpush1.msra.mxu0 0.0
    %164 = vmatprep.subr.mxu0 0.0
    %165 = vmatpush1.msra.mxu0 0.0
    %166 = vmatprep.subr.mxu0 0.0
    %167 = vmatpush1.msra.mxu0 0.0
    %168 = vmatprep.mubr.f32.mxu0 0.0
    %169 = vmatmul.mubr.f32.gmra.mrb[0].mxu0 %v59
    %v170 = vpop.f32.mrb[0].mxu0
    %v171 = vadd.f32 %v55, %v170
    %v172 = vpop.f32.mrb[0].mxu0
    %173 = vmatprep.mubr.f32.mxu0 0.0
    %174 = vmatmul.mubr.f32.gmra.mrb[0].mxu0 %v62
    %v175 = vpop.f32.mrb[0].mxu0
    %v176 = vadd.f32 %v55, %v175
    %v177 = vpop.f32.mrb[0].mxu0
    %178 = vmatprep.mubr.f32.mxu0 0.0
    %179 = vmatmul.mubr.f32.gmra.mrb[0].mxu0 %v65
    %v180 = vpop.f32.mrb[0].mxu0
    %v181 = vadd.f32 %v55, %v180
    %v182 = vpop.f32.mrb[0].mxu0
    %183 = vmatprep.mubr.f32.mxu0 0.0
    %184 = vmatmul.mubr.f32.gmra.mrb[0].mxu0 %v68
    %v185 = vpop.f32.mrb[0].mxu0
    %v186 = vadd.f32 %v55, %v185
    %v187 = vpop.f32.mrb[0].mxu0
    %188 = vmatprep.mubr.f32.mxu0 0.0
    %189 = vmatmul.mubr.f32.gmra.mrb[0].mxu0 %v71
    %v190 = vpop.f32.mrb[0].mxu0
    %v191 = vadd.f32 %v55, %v190
    %v192 = vpop.f32.mrb[0].mxu0
    %193 = vmatprep.mubr.f32.mxu0 0.0
    %194 = vmatmul.mubr.f32.gmra.mrb[0].mxu0 %v74
    %v195 = vpop.f32.mrb[0].mxu0
    %v196 = vadd.f32 %v55, %v195
    %v197 = vpop.f32.mrb[0].mxu0
    %198 = vmatprep.mubr.f32.mxu0 0.0
    %199 = vmatmul.mubr.f32.gmra.mrb[0].mxu0 %v77
    %v200 = vpop.f32.mrb[0].mxu0
    %v201 = vadd.f32 %v55, %v200
    %v202 = vpop.f32.mrb[0].mxu0
    %203 = vmatprep.mubr.f32.mxu0 0.0
    %204 = vmatmul.mubr.f32.gmra.mrb[0].mxu0 %v80
    %v205 = vpop.f32.mrb[0].mxu0
    %v206 = vadd.f32 %v55, %v205
    %v207 = vpop.f32.mrb[0].mxu0
    %208 = vmatprep.mubr.f32.mxu0 0.0
    %209 = vmatmul.mubr.f32.gmra.mrb[0].mxu0 %v83
    %v210 = vpop.f32.mrb[0].mxu0
    %v211 = vadd.f32 %v55, %v210
    %v212 = vpop.f32.mrb[0].mxu0
    %213 = vmatprep.mubr.f32.mxu0 0.0
    %214 = vmatmul.mubr.f32.gmra.mrb[0].mxu0 %v86
    %v215 = vpop.f32.mrb[0].mxu0
    %v216 = vadd.f32 %v55, %v215
    %v217 = vpop.f32.mrb[0].mxu0
    %218 = vmatprep.mubr.f32.mxu0 0.0
    %219 = vmatmul.mubr.f32.gmra.mrb[0].mxu0 %v89
    %v220 = vpop.f32.mrb[0].mxu0
    %v221 = vadd.f32 %v55, %v220
    %v222 = vpop.f32.mrb[0].mxu0
    %223 = vmatprep.mubr.f32.mxu0 0.0
    %224 = vmatmul.mubr.f32.gmra.mrb[0].mxu0 %v92
    %v225 = vpop.f32.mrb[0].mxu0
    %v226 = vadd.f32 %v55, %v225
    %v227 = vpop.f32.mrb[0].mxu0
    %228 = vmatprep.mubr.f32.mxu0 0.0
    %229 = vmatmul.mubr.f32.gmra.mrb[0].mxu0 %v95
    %v230 = vpop.f32.mrb[0].mxu0
    %v231 = vadd.f32 %v55, %v230
    %v232 = vpop.f32.mrb[0].mxu0
    %233 = vmatprep.mubr.f32.mxu0 0.0
    %234 = vmatmul.mubr.f32.gmra.mrb[0].mxu0 %v98
    %v235 = vpop.f32.mrb[0].mxu0
    %v236 = vadd.f32 %v55, %v235
    %v237 = vpop.f32.mrb[0].mxu0
    %238 = vdwg.mxu0
    %239 = vst [vmem:[#allocation2] sm:$0xff] %v171
    %240 = vst [vmem:[#allocation2 + $0x8] sm:$0xff] %v176
    %241 = vst [vmem:[#allocation2 + $0x10] sm:$0xff] %v181
    %242 = vst [vmem:[#allocation2 + $0x18] sm:$0xff] %v186
    %243 = vst [vmem:[#allocation2 + $0x20] sm:$0xff] %v191
    %244 = vst [vmem:[#allocation2 + $0x28] sm:$0xff] %v196
    %245 = vst [vmem:[#allocation2 + $0x30] sm:$0xff] %v201
    %246 = vst [vmem:[#allocation2 + $0x38] sm:$0xff] %v206
    %247 = vst [vmem:[#allocation2 + $0x40] sm:$0xff] %v211
    %248 = vst [vmem:[#allocation2 + $0x48] sm:$0xff] %v216
    %249 = vst [vmem:[#allocation2 + $0x50] sm:$0xff] %v221
    %250 = vst [vmem:[#allocation2 + $0x58] sm:$0xff] %v226
    %251 = vst [vmem:[#allocation2 + $0x60] sm:$0xff] %v231
    %252 = vst [vmem:[#allocation2 + $0x68] sm:$0xff] %v236
    %v253 = vld [vmem:[%s3] sm:$0xff]
    %v254 = vld [vmem:[%s3 + $0x8] sm:$0xff]
    %v255 = vld [vmem:[%s3 + $0x10] sm:$0xff]
    %v256 = vld [vmem:[%s3 + $0x18] sm:$0xff]
    %v257 = vld [vmem:[%s4] sm:$0xff]
    %v258 = vld [vmem:[%s4 + $0x8] sm:$0xff]
    %v259 = vld [vmem:[%s4 + $0x10] sm:$0xff]
    %v260 = vld [vmem:[%s4 + $0x18] sm:$0xff]
    %v261 = vld [vmem:[%s5] sm:$0x1]
    %v263 = vlaneseq
    %v264 = vshrl.u32 %v263, 7
    %v265 = vsub.s32 0, %v264
    %v266 = vrot.slane %v261, %v265
    %v268 = vld [vmem:[#allocation2] sm:$0xff]
    %vm269 = vcmask 261120
    %v271 = vsel %vm269, 0.0, 0
    %273 = vmatprep.subr.mxu0 0.0
    %274 = vmatpush1.msra.mxu0 %v253
    %275 = vmatprep.subr.mxu0 0.0
    %276 = vmatpush1.msra.mxu0 %v254
    %277 = vmatprep.subr.mxu0 0.0
    %278 = vmatpush1.msra.mxu0 %v255
    %279 = vmatprep.subr.mxu0 0.0
    %280 = vmatpush1.msra.mxu0 %v256
    %281 = vmatprep.subr.mxu0 0.0
    %282 = vmatpush1.msra.mxu0 0.0
    %283 = vmatprep.subr.mxu0 0.0
    %284 = vmatpush1.msra.mxu0 0.0
    %285 = vmatprep.subr.mxu0 0.0
    %286 = vmatpush1.msra.mxu0 0.0
    %287 = vmatprep.subr.mxu0 0.0
    %288 = vmatpush1.msra.mxu0 0.0
    %289 = vmatprep.subr.mxu0 0.0
    %290 = vmatpush1.msra.mxu0 0.0
    %291 = vmatprep.subr.mxu0 0.0
    %292 = vmatpush1.msra.mxu0 0.0
    %293 = vmatprep.subr.mxu0 0.0
    %294 = vmatpush1.msra.mxu0 0.0
    %295 = vmatprep.subr.mxu0 0.0
    %296 = vmatpush1.msra.mxu0 0.0
    %297 = vmatprep.subr.mxu0 0.0
    %298 = vmatpush1.msra.mxu0 0.0
    %299 = vmatprep.subr.mxu0 0.0
    %300 = vmatpush1.msra.mxu0 0.0
    %301 = vmatprep.subr.mxu0 0.0
    %302 = vmatpush1.msra.mxu0 0.0
    %303 = vmatprep.subr.mxu0 0.0
    %304 = vmatpush1.msra.mxu0 0.0
    %305 = vmatprep.subr.mxu0 0.0
    %306 = vmatpush1.msra.mxu0 0.0
    %307 = vmatprep.subr.mxu0 0.0
    %308 = vmatpush1.msra.mxu0 0.0
    %309 = vmatprep.subr.mxu0 0.0
    %310 = vmatpush1.msra.mxu0 0.0
    %311 = vmatprep.subr.mxu0 0.0
    %312 = vmatpush1.msra.mxu0 0.0
    %313 = vmatprep.subr.mxu0 0.0
    %314 = vmatpush1.msra.mxu0 0.0
    %315 = vmatprep.subr.mxu0 0.0
    %316 = vmatpush1.msra.mxu0 0.0
    %317 = vmatprep.subr.mxu0 0.0
    %318 = vmatpush1.msra.mxu0 0.0
    %319 = vmatprep.subr.mxu0 0.0
    %320 = vmatpush1.msra.mxu0 0.0
    %321 = vmatprep.subr.mxu0 0.0
    %322 = vmatpush1.msra.mxu0 0.0
    %323 = vmatprep.subr.mxu0 0.0
    %324 = vmatpush1.msra.mxu0 0.0
    %325 = vmatprep.subr.mxu0 0.0
    %326 = vmatpush1.msra.mxu0 0.0
    %327 = vmatprep.subr.mxu0 0.0
    %328 = vmatpush1.msra.mxu0 0.0
    %329 = vmatprep.subr.mxu0 0.0
    %330 = vmatpush1.msra.mxu0 0.0
    %331 = vmatprep.subr.mxu0 0.0
    %332 = vmatpush1.msra.mxu0 0.0
    %333 = vmatprep.subr.mxu0 0.0
    %334 = vmatpush1.msra.mxu0 0.0
    %335 = vmatprep.subr.mxu0 0.0
    %336 = vmatpush1.msra.mxu0 0.0
    %337 = vmatprep.mubr.f32.mxu0 0.0
    %338 = vmatmul.mubr.f32.gmra.mrb[0].mxu0 %v271
    %v339 = vpop.f32.mrb[0].mxu0
    %v340 = vadd.f32 0.0, %v339
    %v341 = vpop.f32.mrb[0].mxu0
    %342 = vdwg.mxu0
    %v343 = vadd.f32 %v268, %v340
    %v344 = vmul.f32 %v343, %v32
    %v345 = vtanh.pop %v344
    %v346 = vmul.f32 %v345, %v32
    %v347 = vadd.f32 %v346, %v33
    %v348 = vmul.f32 %v347, 0.0
    %350 = vrot.lane.b32.xlu0 %v347, 64
    %v351 = vpop.permute.xlu0 %350
    %v353 = vmul.f32 %v347, %v351
    %355 = vrot.lane.b32.xlu0 %v353, 32
    %v356 = vpop.permute.xlu0 %355
    %v358 = vadd.f32 %v348, %v356
    %v359 = vtanh.pop %v358
    %361 = vrot.lane.b32.xlu0 %v359, 64
    %v362 = vpop.permute.xlu0 %361
    %v364 = vmul.f32 %v347, %v362
    %366 = vrot.lane.b32.xlu0 %v364, 32
    %v367 = vpop.permute.xlu0 %366
    %v368 = vsel %vm269, %v367, 0
    %370 = vmatprep.subr.mxu0 0.0
    %371 = vmatpush1.msra.mxu0 %v257
    %372 = vmatprep.subr.mxu0 0.0
    %373 = vmatpush1.msra.mxu0 %v258
    %374 = vmatprep.subr.mxu0 0.0
    %375 = vmatpush1.msra.mxu0 %v259
    %376 = vmatprep.subr.mxu0 0.0
    %377 = vmatpush1.msra.mxu0 %v260
    %378 = vmatprep.subr.mxu0 0.0
    %379 = vmatpush1.msra.mxu0 0.0
    %380 = vmatprep.subr.mxu0 0.0
    %381 = vmatpush1.msra.mxu0 0.0
    %382 = vmatprep.subr.mxu0 0.0
    %383 = vmatpush1.msra.mxu0 0.0
    %384 = vmatprep.subr.mxu0 0.0
    %385 = vmatpush1.msra.mxu0 0.0
    %386 = vmatprep.subr.mxu0 0.0
    %387 = vmatpush1.msra.mxu0 0.0
    %388 = vmatprep.subr.mxu0 0.0
    %389 = vmatpush1.msra.mxu0 0.0
    %390 = vmatprep.subr.mxu0 0.0
    %391 = vmatpush1.msra.mxu0 0.0
    %392 = vmatprep.subr.mxu0 0.0
    %393 = vmatpush1.msra.mxu0 0.0
    %394 = vmatprep.subr.mxu0 0.0
    %395 = vmatpush1.msra.mxu0 0.0
    %396 = vmatprep.subr.mxu0 0.0
    %397 = vmatpush1.msra.mxu0 0.0
    %398 = vmatprep.subr.mxu0 0.0
    %399 = vmatpush1.msra.mxu0 0.0
    %400 = vmatprep.subr.mxu0 0.0
    %401 = vmatpush1.msra.mxu0 0.0
    %402 = vmatprep.subr.mxu0 0.0
    %403 = vmatpush1.msra.mxu0 0.0
    %404 = vmatprep.subr.mxu0 0.0
    %405 = vmatpush1.msra.mxu0 0.0
    %406 = vmatprep.subr.mxu0 0.0
    %407 = vmatpush1.msra.mxu0 0.0
    %408 = vmatprep.subr.mxu0 0.0
    %409 = vmatpush1.msra.mxu0 0.0
    %410 = vmatprep.subr.mxu0 0.0
    %411 = vmatpush1.msra.mxu0 0.0
    %412 = vmatprep.subr.mxu0 0.0
    %413 = vmatpush1.msra.mxu0 0.0
    %414 = vmatprep.subr.mxu0 0.0
    %415 = vmatpush1.msra.mxu0 0.0
    %416 = vmatprep.subr.mxu0 0.0
    %417 = vmatpush1.msra.mxu0 0.0
    %418 = vmatprep.subr.mxu0 0.0
    %419 = vmatpush1.msra.mxu0 0.0
    %420 = vmatprep.subr.mxu0 0.0
    %421 = vmatpush1.msra.mxu0 0.0
    %422 = vmatprep.subr.mxu0 0.0
    %423 = vmatpush1.msra.mxu0 0.0
    %424 = vmatprep.subr.mxu0 0.0
    %425 = vmatpush1.msra.mxu0 0.0
    %426 = vmatprep.subr.mxu0 0.0
    %427 = vmatpush1.msra.mxu0 0.0
    %428 = vmatprep.subr.mxu0 0.0
    %429 = vmatpush1.msra.mxu0 0.0
    %430 = vmatprep.subr.mxu0 0.0
    %431 = vmatpush1.msra.mxu0 0.0
    %432 = vmatprep.subr.mxu0 0.0
    %433 = vmatpush1.msra.mxu0 0.0
    %434 = vmatprep.mubr.f32.mxu0 0.0
    %435 = vmatmul.mubr.f32.gmra.mrb[0].mxu0 %v368
    %v436 = vpop.f32.mrb[0].mxu0
    %v437 = vadd.f32 %v266, %v436
    %v438 = vpop.f32.mrb[0].mxu0
    %439 = vdwg.mxu0
    %440 = vst [vmem:[#allocation3] sm:$0xff] %v437
    %s441 = scalar_lea.vmem [#allocation2], 8
    %v442 = vld [vmem:[%s441] sm:$0xff]
    %443 = vmatprep.subr.mxu0 0.0
    %444 = vmatpush1.msra.mxu0 %v253
    %445 = vmatprep.subr.mxu0 0.0
    %446 = vmatpush1.msra.mxu0 %v254
    %447 = vmatprep.subr.mxu0 0.0
    %448 = vmatpush1.msra.mxu0 %v255
    %449 = vmatprep.subr.mxu0 0.0
    %450 = vmatpush1.msra.mxu0 %v256
    %451 = vmatprep.subr.mxu0 0.0
    %452 = vmatpush1.msra.mxu0 0.0
    %453 = vmatprep.subr.mxu0 0.0
    %454 = vmatpush1.msra.mxu0 0.0
    %455 = vmatprep.subr.mxu0 0.0
    %456 = vmatpush1.msra.mxu0 0.0
    %457 = vmatprep.subr.mxu0 0.0
    %458 = vmatpush1.msra.mxu0 0.0
    %459 = vmatprep.subr.mxu0 0.0
    %460 = vmatpush1.msra.mxu0 0.0
    %461 = vmatprep.subr.mxu0 0.0
    %462 = vmatpush1.msra.mxu0 0.0
    %463 = vmatprep.subr.mxu0 0.0
    %464 = vmatpush1.msra.mxu0 0.0
    %465 = vmatprep.subr.mxu0 0.0
    %466 = vmatpush1.msra.mxu0 0.0
    %467 = vmatprep.subr.mxu0 0.0
    %468 = vmatpush1.msra.mxu0 0.0
    %469 = vmatprep.subr.mxu0 0.0
    %470 = vmatpush1.msra.mxu0 0.0
    %471 = vmatprep.subr.mxu0 0.0
    %472 = vmatpush1.msra.mxu0 0.0
    %473 = vmatprep.subr.mxu0 0.0
    %474 = vmatpush1.msra.mxu0 0.0
    %475 = vmatprep.subr.mxu0 0.0
    %476 = vmatpush1.msra.mxu0 0.0
    %477 = vmatprep.subr.mxu0 0.0
    %478 = vmatpush1.msra.mxu0 0.0
    %479 = vmatprep.subr.mxu0 0.0
    %480 = vmatpush1.msra.mxu0 0.0
    %481 = vmatprep.subr.mxu0 0.0
    %482 = vmatpush1.msra.mxu0 0.0
    %483 = vmatprep.subr.mxu0 0.0
    %484 = vmatpush1.msra.mxu0 0.0
    %485 = vmatprep.subr.mxu0 0.0
    %486 = vmatpush1.msra.mxu0 0.0
    %487 = vmatprep.subr.mxu0 0.0
    %488 = vmatpush1.msra.mxu0 0.0
    %489 = vmatprep.subr.mxu0 0.0
    %490 = vmatpush1.msra.mxu0 0.0
    %491 = vmatprep.subr.mxu0 0.0
    %492 = vmatpush1.msra.mxu0 0.0
    %493 = vmatprep.subr.mxu0 0.0
    %494 = vmatpush1.msra.mxu0 0.0
    %495 = vmatprep.subr.mxu0 0.0
    %496 = vmatpush1.msra.mxu0 0.0
    %497 = vmatprep.subr.mxu0 0.0
    %498 = vmatpush1.msra.mxu0 0.0
    %499 = vmatprep.subr.mxu0 0.0
    %500 = vmatpush1.msra.mxu0 0.0
    %501 = vmatprep.subr.mxu0 0.0
    %502 = vmatpush1.msra.mxu0 0.0
    %503 = vmatprep.subr.mxu0 0.0
    %504 = vmatpush1.msra.mxu0 0.0
    %505 = vmatprep.subr.mxu0 0.0
    %506 = vmatpush1.msra.mxu0 0.0
    %507 = vmatprep.mubr.f32.mxu0 0.0
    %508 = vmatmul.mubr.f32.gmra.mrb[0].mxu0 %v368
    %v509 = vpop.f32.mrb[0].mxu0
    %v510 = vadd.f32 0.0, %v509
    %v511 = vpop.f32.mrb[0].mxu0
    %512 = vdwg.mxu0
    %v513 = vadd.f32 %v442, %v510
    %v514 = vmul.f32 %v513, %v32
    %v515 = vtanh.pop %v514
    %v516 = vmul.f32 %v515, %v32
    %v517 = vadd.f32 %v516, %v33
    %v518 = vmul.f32 %v517, %v358
    %520 = vrot.lane.b32.xlu0 %v517, 64
    %v521 = vpop.permute.xlu0 %520
    %v523 = vmul.f32 %v517, %v521
    %525 = vrot.lane.b32.xlu0 %v523, 32
    %v526 = vpop.permute.xlu0 %525
    %v528 = vadd.f32 %v518, %v526
    %v529 = vtanh.pop %v528
    %531 = vrot.lane.b32.xlu0 %v529, 64
    %v532 = vpop.permute.xlu0 %531
    %v534 = vmul.f32 %v517, %v532
    %536 = vrot.lane.b32.xlu0 %v534, 32
    %v537 = vpop.permute.xlu0 %536
    %v538 = vsel %vm269, %v537, 0
    %540 = vmatprep.subr.mxu0 0.0
    %541 = vmatpush1.msra.mxu0 %v257
    %542 = vmatprep.subr.mxu0 0.0
    %543 = vmatpush1.msra.mxu0 %v258
    %544 = vmatprep.subr.mxu0 0.0
    %545 = vmatpush1.msra.mxu0 %v259
    %546 = vmatprep.subr.mxu0 0.0
    %547 = vmatpush1.msra.mxu0 %v260
    %548 = vmatprep.subr.mxu0 0.0
    %549 = vmatpush1.msra.mxu0 0.0
    %550 = vmatprep.subr.mxu0 0.0
    %551 = vmatpush1.msra.mxu0 0.0
    %552 = vmatprep.subr.mxu0 0.0
    %553 = vmatpush1.msra.mxu0 0.0
    %554 = vmatprep.subr.mxu0 0.0
    %555 = vmatpush1.msra.mxu0 0.0
    %556 = vmatprep.subr.mxu0 0.0
    %557 = vmatpush1.msra.mxu0 0.0
    %558 = vmatprep.subr.mxu0 0.0
    %559 = vmatpush1.msra.mxu0 0.0
    %560 = vmatprep.subr.mxu0 0.0
    %561 = vmatpush1.msra.mxu0 0.0
    %562 = vmatprep.subr.mxu0 0.0
    %563 = vmatpush1.msra.mxu0 0.0
    %564 = vmatprep.subr.mxu0 0.0
    %565 = vmatpush1.msra.mxu0 0.0
    %566 = vmatprep.subr.mxu0 0.0
    %567 = vmatpush1.msra.mxu0 0.0
    %568 = vmatprep.subr.mxu0 0.0
    %569 = vmatpush1.msra.mxu0 0.0
    %570 = vmatprep.subr.mxu0 0.0
    %571 = vmatpush1.msra.mxu0 0.0
    %572 = vmatprep.subr.mxu0 0.0
    %573 = vmatpush1.msra.mxu0 0.0
    %574 = vmatprep.subr.mxu0 0.0
    %575 = vmatpush1.msra.mxu0 0.0
    %576 = vmatprep.subr.mxu0 0.0
    %577 = vmatpush1.msra.mxu0 0.0
    %578 = vmatprep.subr.mxu0 0.0
    %579 = vmatpush1.msra.mxu0 0.0
    %580 = vmatprep.subr.mxu0 0.0
    %581 = vmatpush1.msra.mxu0 0.0
    %582 = vmatprep.subr.mxu0 0.0
    %583 = vmatpush1.msra.mxu0 0.0
    %584 = vmatprep.subr.mxu0 0.0
    %585 = vmatpush1.msra.mxu0 0.0
    %586 = vmatprep.subr.mxu0 0.0
    %587 = vmatpush1.msra.mxu0 0.0
    %588 = vmatprep.subr.mxu0 0.0
    %589 = vmatpush1.msra.mxu0 0.0
    %590 = vmatprep.subr.mxu0 0.0
    %591 = vmatpush1.msra.mxu0 0.0
    %592 = vmatprep.subr.mxu0 0.0
    %593 = vmatpush1.msra.mxu0 0.0
    %594 = vmatprep.subr.mxu0 0.0
    %595 = vmatpush1.msra.mxu0 0.0
    %596 = vmatprep.subr.mxu0 0.0
    %597 = vmatpush1.msra.mxu0 0.0
    %598 = vmatprep.subr.mxu0 0.0
    %599 = vmatpush1.msra.mxu0 0.0
    %600 = vmatprep.subr.mxu0 0.0
    %601 = vmatpush1.msra.mxu0 0.0
    %602 = vmatprep.subr.mxu0 0.0
    %603 = vmatpush1.msra.mxu0 0.0
    %604 = vmatprep.mubr.f32.mxu0 0.0
    %605 = vmatmul.mubr.f32.gmra.mrb[0].mxu0 %v538
    %v606 = vpop.f32.mrb[0].mxu0
    %v607 = vadd.f32 %v266, %v606
    %v608 = vpop.f32.mrb[0].mxu0
    %609 = vdwg.mxu0
    %s610 = scalar_lea.vmem [#allocation3], 8
    %611 = vst [vmem:[%s610] sm:$0xff] %v607
    %s612 = scalar_lea.vmem [#allocation2], 16
    %v613 = vld [vmem:[%s612] sm:$0xff]
    %614 = vmatprep.subr.mxu0 0.0
    %615 = vmatpush1.msra.mxu0 %v253
    %616 = vmatprep.subr.mxu0 0.0
    %617 = vmatpush1.msra.mxu0 %v254
    %618 = vmatprep.subr.mxu0 0.0
    %619 = vmatpush1.msra.mxu0 %v255
    %620 = vmatprep.subr.mxu0 0.0
    %621 = vmatpush1.msra.mxu0 %v256
    %622 = vmatprep.subr.mxu0 0.0
    %623 = vmatpush1.msra.mxu0 0.0
    %624 = vmatprep.subr.mxu0 0.0
    %625 = vmatpush1.msra.mxu0 0.0
    %626 = vmatprep.subr.mxu0 0.0
    %627 = vmatpush1.msra.mxu0 0.0
    %628 = vmatprep.subr.mxu0 0.0
    %629 = vmatpush1.msra.mxu0 0.0
    %630 = vmatprep.subr.mxu0 0.0
    %631 = vmatpush1.msra.mxu0 0.0
    %632 = vmatprep.subr.mxu0 0.0
    %633 = vmatpush1.msra.mxu0 0.0
    %634 = vmatprep.subr.mxu0 0.0
    %635 = vmatpush1.msra.mxu0 0.0
    %636 = vmatprep.subr.mxu0 0.0
    %637 = vmatpush1.msra.mxu0 0.0
    %638 = vmatprep.subr.mxu0 0.0
    %639 = vmatpush1.msra.mxu0 0.0
    %640 = vmatprep.subr.mxu0 0.0
    %641 = vmatpush1.msra.mxu0 0.0
    %642 = vmatprep.subr.mxu0 0.0
    %643 = vmatpush1.msra.mxu0 0.0
    %644 = vmatprep.subr.mxu0 0.0
    %645 = vmatpush1.msra.mxu0 0.0
    %646 = vmatprep.subr.mxu0 0.0
    %647 = vmatpush1.msra.mxu0 0.0
    %648 = vmatprep.subr.mxu0 0.0
    %649 = vmatpush1.msra.mxu0 0.0
    %650 = vmatprep.subr.mxu0 0.0
    %651 = vmatpush1.msra.mxu0 0.0
    %652 = vmatprep.subr.mxu0 0.0
    %653 = vmatpush1.msra.mxu0 0.0
    %654 = vmatprep.subr.mxu0 0.0
    %655 = vmatpush1.msra.mxu0 0.0
    %656 = vmatprep.subr.mxu0 0.0
    %657 = vmatpush1.msra.mxu0 0.0
    %658 = vmatprep.subr.mxu0 0.0
    %659 = vmatpush1.msra.mxu0 0.0
    %660 = vmatprep.subr.mxu0 0.0
    %661 = vmatpush1.msra.mxu0 0.0
    %662 = vmatprep.subr.mxu0 0.0
    %663 = vmatpush1.msra.mxu0 0.0
    %664 = vmatprep.subr.mxu0 0.0
    %665 = vmatpush1.msra.mxu0 0.0
    %666 = vmatprep.subr.mxu0 0.0
    %667 = vmatpush1.msra.mxu0 0.0
    %668 = vmatprep.subr.mxu0 0.0
    %669 = vmatpush1.msra.mxu0 0.0
    %670 = vmatprep.subr.mxu0 0.0
    %671 = vmatpush1.msra.mxu0 0.0
    %672 = vmatprep.subr.mxu0 0.0
    %673 = vmatpush1.msra.mxu0 0.0
    %674 = vmatprep.subr.mxu0 0.0
    %675 = vmatpush1.msra.mxu0 0.0
    %676 = vmatprep.subr.mxu0 0.0
    %677 = vmatpush1.msra.mxu0 0.0
    %678 = vmatprep.mubr.f32.mxu0 0.0
    %679 = vmatmul.mubr.f32.gmra.mrb[0].mxu0 %v538
    %v680 = vpop.f32.mrb[0].mxu0
    %v681 = vadd.f32 0.0, %v680
    %v682 = vpop.f32.mrb[0].mxu0
    %683 = vdwg.mxu0
    %v684 = vadd.f32 %v613, %v681
    %v685 = vmul.f32 %v684, %v32
    %v686 = vtanh.pop %v685
    %v687 = vmul.f32 %v686, %v32
    %v688 = vadd.f32 %v687, %v33
    %v689 = vmul.f32 %v688, %v528
    %691 = vrot.lane.b32.xlu0 %v688, 64
    %v692 = vpop.permute.xlu0 %691
    %v694 = vmul.f32 %v688, %v692
    %696 = vrot.lane.b32.xlu0 %v694, 32
    %v697 = vpop.permute.xlu0 %696
    %v699 = vadd.f32 %v689, %v697
    %v700 = vtanh.pop %v699
    %702 = vrot.lane.b32.xlu0 %v700, 64
    %v703 = vpop.permute.xlu0 %702
    %v705 = vmul.f32 %v688, %v703
    %707 = vrot.lane.b32.xlu0 %v705, 32
    %v708 = vpop.permute.xlu0 %707
    %v709 = vsel %vm269, %v708, 0
    %711 = vmatprep.subr.mxu0 0.0
    %712 = vmatpush1.msra.mxu0 %v257
    %713 = vmatprep.subr.mxu0 0.0
    %714 = vmatpush1.msra.mxu0 %v258
    %715 = vmatprep.subr.mxu0 0.0
    %716 = vmatpush1.msra.mxu0 %v259
    %717 = vmatprep.subr.mxu0 0.0
    %718 = vmatpush1.msra.mxu0 %v260
    %719 = vmatprep.subr.mxu0 0.0
    %720 = vmatpush1.msra.mxu0 0.0
    %721 = vmatprep.subr.mxu0 0.0
    %722 = vmatpush1.msra.mxu0 0.0
    %723 = vmatprep.subr.mxu0 0.0
    %724 = vmatpush1.msra.mxu0 0.0
    %725 = vmatprep.subr.mxu0 0.0
    %726 = vmatpush1.msra.mxu0 0.0
    %727 = vmatprep.subr.mxu0 0.0
    %728 = vmatpush1.msra.mxu0 0.0
    %729 = vmatprep.subr.mxu0 0.0
    %730 = vmatpush1.msra.mxu0 0.0
    %731 = vmatprep.subr.mxu0 0.0
    %732 = vmatpush1.msra.mxu0 0.0
    %733 = vmatprep.subr.mxu0 0.0
    %734 = vmatpush1.msra.mxu0 0.0
    %735 = vmatprep.subr.mxu0 0.0
    %736 = vmatpush1.msra.mxu0 0.0
    %737 = vmatprep.subr.mxu0 0.0
    %738 = vmatpush1.msra.mxu0 0.0
    %739 = vmatprep.subr.mxu0 0.0
    %740 = vmatpush1.msra.mxu0 0.0
    %741 = vmatprep.subr.mxu0 0.0
    %742 = vmatpush1.msra.mxu0 0.0
    %743 = vmatprep.subr.mxu0 0.0
    %744 = vmatpush1.msra.mxu0 0.0
    %745 = vmatprep.subr.mxu0 0.0
    %746 = vmatpush1.msra.mxu0 0.0
    %747 = vmatprep.subr.mxu0 0.0
    %748 = vmatpush1.msra.mxu0 0.0
    %749 = vmatprep.subr.mxu0 0.0
    %750 = vmatpush1.msra.mxu0 0.0
    %751 = vmatprep.subr.mxu0 0.0
    %752 = vmatpush1.msra.mxu0 0.0
    %753 = vmatprep.subr.mxu0 0.0
    %754 = vmatpush1.msra.mxu0 0.0
    %755 = vmatprep.subr.mxu0 0.0
    %756 = vmatpush1.msra.mxu0 0.0
    %757 = vmatprep.subr.mxu0 0.0
    %758 = vmatpush1.msra.mxu0 0.0
    %759 = vmatprep.subr.mxu0 0.0
    %760 = vmatpush1.msra.mxu0 0.0
    %761 = vmatprep.subr.mxu0 0.0
    %762 = vmatpush1.msra.mxu0 0.0
    %763 = vmatprep.subr.mxu0 0.0
    %764 = vmatpush1.msra.mxu0 0.0
    %765 = vmatprep.subr.mxu0 0.0
    %766 = vmatpush1.msra.mxu0 0.0
    %767 = vmatprep.subr.mxu0 0.0
    %768 = vmatpush1.msra.mxu0 0.0
    %769 = vmatprep.subr.mxu0 0.0
    %770 = vmatpush1.msra.mxu0 0.0
    %771 = vmatprep.subr.mxu0 0.0
    %772 = vmatpush1.msra.mxu0 0.0
    %773 = vmatprep.subr.mxu0 0.0
    %774 = vmatpush1.msra.mxu0 0.0
    %775 = vmatprep.mubr.f32.mxu0 0.0
    %776 = vmatmul.mubr.f32.gmra.mrb[0].mxu0 %v709
    %v777 = vpop.f32.mrb[0].mxu0
    %v778 = vadd.f32 %v266, %v777
    %v779 = vpop.f32.mrb[0].mxu0
    %780 = vdwg.mxu0
    %s781 = scalar_lea.vmem [#allocation3], 16
    %782 = vst [vmem:[%s781] sm:$0xff] %v778
    %s783 = scalar_lea.vmem [#allocation2], 24
    %v784 = vld [vmem:[%s783] sm:$0xff]
    %785 = vmatprep.subr.mxu0 0.0
    %786 = vmatpush1.msra.mxu0 %v253
    %787 = vmatprep.subr.mxu0 0.0
    %788 = vmatpush1.msra.mxu0 %v254
    %789 = vmatprep.subr.mxu0 0.0
    %790 = vmatpush1.msra.mxu0 %v255
    %791 = vmatprep.subr.mxu0 0.0
    %792 = vmatpush1.msra.mxu0 %v256
    %793 = vmatprep.subr.mxu0 0.0
    %794 = vmatpush1.msra.mxu0 0.0
    %795 = vmatprep.subr.mxu0 0.0
    %796 = vmatpush1.msra.mxu0 0.0
    %797 = vmatprep.subr.mxu0 0.0
    %798 = vmatpush1.msra.mxu0 0.0
    %799 = vmatprep.subr.mxu0 0.0
    %800 = vmatpush1.msra.mxu0 0.0
    %801 = vmatprep.subr.mxu0 0.0
    %802 = vmatpush1.msra.mxu0 0.0
    %803 = vmatprep.subr.mxu0 0.0
    %804 = vmatpush1.msra.mxu0 0.0
    %805 = vmatprep.subr.mxu0 0.0
    %806 = vmatpush1.msra.mxu0 0.0
    %807 = vmatprep.subr.mxu0 0.0
    %808 = vmatpush1.msra.mxu0 0.0
    %809 = vmatprep.subr.mxu0 0.0
    %810 = vmatpush1.msra.mxu0 0.0
    %811 = vmatprep.subr.mxu0 0.0
    %812 = vmatpush1.msra.mxu0 0.0
    %813 = vmatprep.subr.mxu0 0.0
    %814 = vmatpush1.msra.mxu0 0.0
    %815 = vmatprep.subr.mxu0 0.0
    %816 = vmatpush1.msra.mxu0 0.0
    %817 = vmatprep.subr.mxu0 0.0
    %818 = vmatpush1.msra.mxu0 0.0
    %819 = vmatprep.subr.mxu0 0.0
    %820 = vmatpush1.msra.mxu0 0.0
    %821 = vmatprep.subr.mxu0 0.0
    %822 = vmatpush1.msra.mxu0 0.0
    %823 = vmatprep.subr.mxu0 0.0
    %824 = vmatpush1.msra.mxu0 0.0
    %825 = vmatprep.subr.mxu0 0.0
    %826 = vmatpush1.msra.mxu0 0.0
    %827 = vmatprep.subr.mxu0 0.0
    %828 = vmatpush1.msra.mxu0 0.0
    %829 = vmatprep.subr.mxu0 0.0
    %830 = vmatpush1.msra.mxu0 0.0
    %831 = vmatprep.subr.mxu0 0.0
    %832 = vmatpush1.msra.mxu0 0.0
    %833 = vmatprep.subr.mxu0 0.0
    %834 = vmatpush1.msra.mxu0 0.0
    %835 = vmatprep.subr.mxu0 0.0
    %836 = vmatpush1.msra.mxu0 0.0
    %837 = vmatprep.subr.mxu0 0.0
    %838 = vmatpush1.msra.mxu0 0.0
    %839 = vmatprep.subr.mxu0 0.0
    %840 = vmatpush1.msra.mxu0 0.0
    %841 = vmatprep.subr.mxu0 0.0
    %842 = vmatpush1.msra.mxu0 0.0
    %843 = vmatprep.subr.mxu0 0.0
    %844 = vmatpush1.msra.mxu0 0.0
    %845 = vmatprep.subr.mxu0 0.0
    %846 = vmatpush1.msra.mxu0 0.0
    %847 = vmatprep.subr.mxu0 0.0
    %848 = vmatpush1.msra.mxu0 0.0
    %849 = vmatprep.mubr.f32.mxu0 0.0
    %850 = vmatmul.mubr.f32.gmra.mrb[0].mxu0 %v709
    %v851 = vpop.f32.mrb[0].mxu0
    %v852 = vadd.f32 0.0, %v851
    %v853 = vpop.f32.mrb[0].mxu0
    %854 = vdwg.mxu0
    %v855 = vadd.f32 %v784, %v852
    %v856 = vmul.f32 %v855, %v32
    %v857 = vtanh.pop %v856
    %v858 = vmul.f32 %v857, %v32
    %v859 = vadd.f32 %v858, %v33
    %v860 = vmul.f32 %v859, %v699
    %862 = vrot.lane.b32.xlu0 %v859, 64
    %v863 = vpop.permute.xlu0 %862
    %v865 = vmul.f32 %v859, %v863
    %867 = vrot.lane.b32.xlu0 %v865, 32
    %v868 = vpop.permute.xlu0 %867
    %v870 = vadd.f32 %v860, %v868
    %v871 = vtanh.pop %v870
    %873 = vrot.lane.b32.xlu0 %v871, 64
    %v874 = vpop.permute.xlu0 %873
    %v876 = vmul.f32 %v859, %v874
    %878 = vrot.lane.b32.xlu0 %v876, 32
    %v879 = vpop.permute.xlu0 %878
    %v880 = vsel %vm269, %v879, 0
    %882 = vmatprep.subr.mxu0 0.0
    %883 = vmatpush1.msra.mxu0 %v257
    %884 = vmatprep.subr.mxu0 0.0
    %885 = vmatpush1.msra.mxu0 %v258
    %886 = vmatprep.subr.mxu0 0.0
    %887 = vmatpush1.msra.mxu0 %v259
    %888 = vmatprep.subr.mxu0 0.0
    %889 = vmatpush1.msra.mxu0 %v260
    %890 = vmatprep.subr.mxu0 0.0
    %891 = vmatpush1.msra.mxu0 0.0
    %892 = vmatprep.subr.mxu0 0.0
    %893 = vmatpush1.msra.mxu0 0.0
    %894 = vmatprep.subr.mxu0 0.0
    %895 = vmatpush1.msra.mxu0 0.0
    %896 = vmatprep.subr.mxu0 0.0
    %897 = vmatpush1.msra.mxu0 0.0
    %898 = vmatprep.subr.mxu0 0.0
    %899 = vmatpush1.msra.mxu0 0.0
    %900 = vmatprep.subr.mxu0 0.0
    %901 = vmatpush1.msra.mxu0 0.0
    %902 = vmatprep.subr.mxu0 0.0
    %903 = vmatpush1.msra.mxu0 0.0
    %904 = vmatprep.subr.mxu0 0.0
    %905 = vmatpush1.msra.mxu0 0.0
    %906 = vmatprep.subr.mxu0 0.0
    %907 = vmatpush1.msra.mxu0 0.0
    %908 = vmatprep.subr.mxu0 0.0
    %909 = vmatpush1.msra.mxu0 0.0
    %910 = vmatprep.subr.mxu0 0.0
    %911 = vmatpush1.msra.mxu0 0.0
    %912 = vmatprep.subr.mxu0 0.0
    %913 = vmatpush1.msra.mxu0 0.0
    %914 = vmatprep.subr.mxu0 0.0
    %915 = vmatpush1.msra.mxu0 0.0
    %916 = vmatprep.subr.mxu0 0.0
    %917 = vmatpush1.msra.mxu0 0.0
    %918 = vmatprep.subr.mxu0 0.0
    %919 = vmatpush1.msra.mxu0 0.0
    %920 = vmatprep.subr.mxu0 0.0
    %921 = vmatpush1.msra.mxu0 0.0
    %922 = vmatprep.subr.mxu0 0.0
    %923 = vmatpush1.msra.mxu0 0.0
    %924 = vmatprep.subr.mxu0 0.0
    %925 = vmatpush1.msra.mxu0 0.0
    %926 = vmatprep.subr.mxu0 0.0
    %927 = vmatpush1.msra.mxu0 0.0
    %928 = vmatprep.subr.mxu0 0.0
    %929 = vmatpush1.msra.mxu0 0.0
    %930 = vmatprep.subr.mxu0 0.0
    %931 = vmatpush1.msra.mxu0 0.0
    %932 = vmatprep.subr.mxu0 0.0
    %933 = vmatpush1.msra.mxu0 0.0
    %934 = vmatprep.subr.mxu0 0.0
    %935 = vmatpush1.msra.mxu0 0.0
    %936 = vmatprep.subr.mxu0 0.0
    %937 = vmatpush1.msra.mxu0 0.0
    %938 = vmatprep.subr.mxu0 0.0
    %939 = vmatpush1.msra.mxu0 0.0
    %940 = vmatprep.subr.mxu0 0.0
    %941 = vmatpush1.msra.mxu0 0.0
    %942 = vmatprep.subr.mxu0 0.0
    %943 = vmatpush1.msra.mxu0 0.0
    %944 = vmatprep.subr.mxu0 0.0
    %945 = vmatpush1.msra.mxu0 0.0
    %946 = vmatprep.mubr.f32.mxu0 0.0
    %947 = vmatmul.mubr.f32.gmra.mrb[0].mxu0 %v880
    %v948 = vpop.f32.mrb[0].mxu0
    %v949 = vadd.f32 %v266, %v948
    %v950 = vpop.f32.mrb[0].mxu0
    %951 = vdwg.mxu0
    %s952 = scalar_lea.vmem [#allocation3], 24
    %953 = vst [vmem:[%s952] sm:$0xff] %v949
    %s954 = scalar_lea.vmem [#allocation2], 32
    %v955 = vld [vmem:[%s954] sm:$0xff]
    %956 = vmatprep.subr.mxu0 0.0
    %957 = vmatpush1.msra.mxu0 %v253
    %958 = vmatprep.subr.mxu0 0.0
    %959 = vmatpush1.msra.mxu0 %v254
    %960 = vmatprep.subr.mxu0 0.0
    %961 = vmatpush1.msra.mxu0 %v255
    %962 = vmatprep.subr.mxu0 0.0
    %963 = vmatpush1.msra.mxu0 %v256
    %964 = vmatprep.subr.mxu0 0.0
    %965 = vmatpush1.msra.mxu0 0.0
    %966 = vmatprep.subr.mxu0 0.0
    %967 = vmatpush1.msra.mxu0 0.0
    %968 = vmatprep.subr.mxu0 0.0
    %969 = vmatpush1.msra.mxu0 0.0
    %970 = vmatprep.subr.mxu0 0.0
    %971 = vmatpush1.msra.mxu0 0.0
    %972 = vmatprep.subr.mxu0 0.0
    %973 = vmatpush1.msra.mxu0 0.0
    %974 = vmatprep.subr.mxu0 0.0
    %975 = vmatpush1.msra.mxu0 0.0
    %976 = vmatprep.subr.mxu0 0.0
    %977 = vmatpush1.msra.mxu0 0.0
    %978 = vmatprep.subr.mxu0 0.0
    %979 = vmatpush1.msra.mxu0 0.0
    %980 = vmatprep.subr.mxu0 0.0
    %981 = vmatpush1.msra.mxu0 0.0
    %982 = vmatprep.subr.mxu0 0.0
    %983 = vmatpush1.msra.mxu0 0.0
    %984 = vmatprep.subr.mxu0 0.0
    %985 = vmatpush1.msra.mxu0 0.0
    %986 = vmatprep.subr.mxu0 0.0
    %987 = vmatpush1.msra.mxu0 0.0
    %988 = vmatprep.subr.mxu0 0.0
    %989 = vmatpush1.msra.mxu0 0.0
    %990 = vmatprep.subr.mxu0 0.0
    %991 = vmatpush1.msra.mxu0 0.0
    %992 = vmatprep.subr.mxu0 0.0
    %993 = vmatpush1.msra.mxu0 0.0
    %994 = vmatprep.subr.mxu0 0.0
    %995 = vmatpush1.msra.mxu0 0.0
    %996 = vmatprep.subr.mxu0 0.0
    %997 = vmatpush1.msra.mxu0 0.0
    %998 = vmatprep.subr.mxu0 0.0
    %999 = vmatpush1.msra.mxu0 0.0
    %1000 = vmatprep.subr.mxu0 0.0
    %1001 = vmatpush1.msra.mxu0 0.0
    %1002 = vmatprep.subr.mxu0 0.0
    %1003 = vmatpush1.msra.mxu0 0.0
    %1004 = vmatprep.subr.mxu0 0.0
    %1005 = vmatpush1.msra.mxu0 0.0
    %1006 = vmatprep.subr.mxu0 0.0
    %1007 = vmatpush1.msra.mxu0 0.0
    %1008 = vmatprep.subr.mxu0 0.0
    %1009 = vmatpush1.msra.mxu0 0.0
    %1010 = vmatprep.subr.mxu0 0.0
    %1011 = vmatpush1.msra.mxu0 0.0
    %1012 = vmatprep.subr.mxu0 0.0
    %1013 = vmatpush1.msra.mxu0 0.0
    %1014 = vmatprep.subr.mxu0 0.0
    %1015 = vmatpush1.msra.mxu0 0.0
    %1016 = vmatprep.subr.mxu0 0.0
    %1017 = vmatpush1.msra.mxu0 0.0
    %1018 = vmatprep.subr.mxu0 0.0
    %1019 = vmatpush1.msra.mxu0 0.0
    %1020 = vmatprep.mubr.f32.mxu0 0.0
    %1021 = vmatmul.mubr.f32.gmra.mrb[0].mxu0 %v880
    %v1022 = vpop.f32.mrb[0].mxu0
    %v1023 = vadd.f32 0.0, %v1022
    %v1024 = vpop.f32.mrb[0].mxu0
    %1025 = vdwg.mxu0
    %v1026 = vadd.f32 %v955, %v1023
    %v1027 = vmul.f32 %v1026, %v32
    %v1028 = vtanh.pop %v1027
    %v1029 = vmul.f32 %v1028, %v32
    %v1030 = vadd.f32 %v1029, %v33
    %v1031 = vmul.f32 %v1030, %v870
    %1033 = vrot.lane.b32.xlu0 %v1030, 64
    %v1034 = vpop.permute.xlu0 %1033
    %v1036 = vmul.f32 %v1030, %v1034
    %1038 = vrot.lane.b32.xlu0 %v1036, 32
    %v1039 = vpop.permute.xlu0 %1038
    %v1041 = vadd.f32 %v1031, %v1039
    %v1042 = vtanh.pop %v1041
    %1044 = vrot.lane.b32.xlu0 %v1042, 64
    %v1045 = vpop.permute.xlu0 %1044
    %v1047 = vmul.f32 %v1030, %v1045
    %1049 = vrot.lane.b32.xlu0 %v1047, 32
    %v1050 = vpop.permute.xlu0 %1049
    %v1051 = vsel %vm269, %v1050, 0
    %1053 = vmatprep.subr.mxu0 0.0
    %1054 = vmatpush1.msra.mxu0 %v257
    %1055 = vmatprep.subr.mxu0 0.0
    %1056 = vmatpush1.msra.mxu0 %v258
    %1057 = vmatprep.subr.mxu0 0.0
    %1058 = vmatpush1.msra.mxu0 %v259
    %1059 = vmatprep.subr.mxu0 0.0
    %1060 = vmatpush1.msra.mxu0 %v260
    %1061 = vmatprep.subr.mxu0 0.0
    %1062 = vmatpush1.msra.mxu0 0.0
    %1063 = vmatprep.subr.mxu0 0.0
    %1064 = vmatpush1.msra.mxu0 0.0
    %1065 = vmatprep.subr.mxu0 0.0
    %1066 = vmatpush1.msra.mxu0 0.0
    %1067 = vmatprep.subr.mxu0 0.0
    %1068 = vmatpush1.msra.mxu0 0.0
    %1069 = vmatprep.subr.mxu0 0.0
    %1070 = vmatpush1.msra.mxu0 0.0
    %1071 = vmatprep.subr.mxu0 0.0
    %1072 = vmatpush1.msra.mxu0 0.0
    %1073 = vmatprep.subr.mxu0 0.0
    %1074 = vmatpush1.msra.mxu0 0.0
    %1075 = vmatprep.subr.mxu0 0.0
    %1076 = vmatpush1.msra.mxu0 0.0
    %1077 = vmatprep.subr.mxu0 0.0
    %1078 = vmatpush1.msra.mxu0 0.0
    %1079 = vmatprep.subr.mxu0 0.0
    %1080 = vmatpush1.msra.mxu0 0.0
    %1081 = vmatprep.subr.mxu0 0.0
    %1082 = vmatpush1.msra.mxu0 0.0
    %1083 = vmatprep.subr.mxu0 0.0
    %1084 = vmatpush1.msra.mxu0 0.0
    %1085 = vmatprep.subr.mxu0 0.0
    %1086 = vmatpush1.msra.mxu0 0.0
    %1087 = vmatprep.subr.mxu0 0.0
    %1088 = vmatpush1.msra.mxu0 0.0
    %1089 = vmatprep.subr.mxu0 0.0
    %1090 = vmatpush1.msra.mxu0 0.0
    %1091 = vmatprep.subr.mxu0 0.0
    %1092 = vmatpush1.msra.mxu0 0.0
    %1093 = vmatprep.subr.mxu0 0.0
    %1094 = vmatpush1.msra.mxu0 0.0
    %1095 = vmatprep.subr.mxu0 0.0
    %1096 = vmatpush1.msra.mxu0 0.0
    %1097 = vmatprep.subr.mxu0 0.0
    %1098 = vmatpush1.msra.mxu0 0.0
    %1099 = vmatprep.subr.mxu0 0.0
    %1100 = vmatpush1.msra.mxu0 0.0
    %1101 = vmatprep.subr.mxu0 0.0
    %1102 = vmatpush1.msra.mxu0 0.0
    %1103 = vmatprep.subr.mxu0 0.0
    %1104 = vmatpush1.msra.mxu0 0.0
    %1105 = vmatprep.subr.mxu0 0.0
    %1106 = vmatpush1.msra.mxu0 0.0
    %1107 = vmatprep.subr.mxu0 0.0
    %1108 = vmatpush1.msra.mxu0 0.0
    %1109 = vmatprep.subr.mxu0 0.0
    %1110 = vmatpush1.msra.mxu0 0.0
    %1111 = vmatprep.subr.mxu0 0.0
    %1112 = vmatpush1.msra.mxu0 0.0
    %1113 = vmatprep.subr.mxu0 0.0
    %1114 = vmatpush1.msra.mxu0 0.0
    %1115 = vmatprep.subr.mxu0 0.0
    %1116 = vmatpush1.msra.mxu0 0.0
    %1117 = vmatprep.mubr.f32.mxu0 0.0
    %1118 = vmatmul.mubr.f32.gmra.mrb[0].mxu0 %v1051
    %v1119 = vpop.f32.mrb[0].mxu0
    %v1120 = vadd.f32 %v266, %v1119
    %v1121 = vpop.f32.mrb[0].mxu0
    %1122 = vdwg.mxu0
    %s1123 = scalar_lea.vmem [#allocation3], 32
    %1124 = vst [vmem:[%s1123] sm:$0xff] %v1120
    %s1125 = scalar_lea.vmem [#allocation2], 40
    %v1126 = vld [vmem:[%s1125] sm:$0xff]
    %1127 = vmatprep.subr.mxu0 0.0
    %1128 = vmatpush1.msra.mxu0 %v253
    %1129 = vmatprep.subr.mxu0 0.0
    %1130 = vmatpush1.msra.mxu0 %v254
    %1131 = vmatprep.subr.mxu0 0.0
    %1132 = vmatpush1.msra.mxu0 %v255
    %1133 = vmatprep.subr.mxu0 0.0
    %1134 = vmatpush1.msra.mxu0 %v256
    %1135 = vmatprep.subr.mxu0 0.0
    %1136 = vmatpush1.msra.mxu0 0.0
    %1137 = vmatprep.subr.mxu0 0.0
    %1138 = vmatpush1.msra.mxu0 0.0
    %1139 = vmatprep.subr.mxu0 0.0
    %1140 = vmatpush1.msra.mxu0 0.0
    %1141 = vmatprep.subr.mxu0 0.0
    %1142 = vmatpush1.msra.mxu0 0.0
    %1143 = vmatprep.subr.mxu0 0.0
    %1144 = vmatpush1.msra.mxu0 0.0
    %1145 = vmatprep.subr.mxu0 0.0
    %1146 = vmatpush1.msra.mxu0 0.0
    %1147 = vmatprep.subr.mxu0 0.0
    %1148 = vmatpush1.msra.mxu0 0.0
    %1149 = vmatprep.subr.mxu0 0.0
    %1150 = vmatpush1.msra.mxu0 0.0
    %1151 = vmatprep.subr.mxu0 0.0
    %1152 = vmatpush1.msra.mxu0 0.0
    %1153 = vmatprep.subr.mxu0 0.0
    %1154 = vmatpush1.msra.mxu0 0.0
    %1155 = vmatprep.subr.mxu0 0.0
    %1156 = vmatpush1.msra.mxu0 0.0
    %1157 = vmatprep.subr.mxu0 0.0
    %1158 = vmatpush1.msra.mxu0 0.0
    %1159 = vmatprep.subr.mxu0 0.0
    %1160 = vmatpush1.msra.mxu0 0.0
    %1161 = vmatprep.subr.mxu0 0.0
    %1162 = vmatpush1.msra.mxu0 0.0
    %1163 = vmatprep.subr.mxu0 0.0
    %1164 = vmatpush1.msra.mxu0 0.0
    %1165 = vmatprep.subr.mxu0 0.0
    %1166 = vmatpush1.msra.mxu0 0.0
    %1167 = vmatprep.subr.mxu0 0.0
    %1168 = vmatpush1.msra.mxu0 0.0
    %1169 = vmatprep.subr.mxu0 0.0
    %1170 = vmatpush1.msra.mxu0 0.0
    %1171 = vmatprep.subr.mxu0 0.0
    %1172 = vmatpush1.msra.mxu0 0.0
    %1173 = vmatprep.subr.mxu0 0.0
    %1174 = vmatpush1.msra.mxu0 0.0
    %1175 = vmatprep.subr.mxu0 0.0
    %1176 = vmatpush1.msra.mxu0 0.0
    %1177 = vmatprep.subr.mxu0 0.0
    %1178 = vmatpush1.msra.mxu0 0.0
    %1179 = vmatprep.subr.mxu0 0.0
    %1180 = vmatpush1.msra.mxu0 0.0
    %1181 = vmatprep.subr.mxu0 0.0
    %1182 = vmatpush1.msra.mxu0 0.0
    %1183 = vmatprep.subr.mxu0 0.0
    %1184 = vmatpush1.msra.mxu0 0.0
    %1185 = vmatprep.subr.mxu0 0.0
    %1186 = vmatpush1.msra.mxu0 0.0
    %1187 = vmatprep.subr.mxu0 0.0
    %1188 = vmatpush1.msra.mxu0 0.0
    %1189 = vmatprep.subr.mxu0 0.0
    %1190 = vmatpush1.msra.mxu0 0.0
    %1191 = vmatprep.mubr.f32.mxu0 0.0
    %1192 = vmatmul.mubr.f32.gmra.mrb[0].mxu0 %v1051
    %v1193 = vpop.f32.mrb[0].mxu0
    %v1194 = vadd.f32 0.0, %v1193
    %v1195 = vpop.f32.mrb[0].mxu0
    %1196 = vdwg.mxu0
    %v1197 = vadd.f32 %v1126, %v1194
    %v1198 = vmul.f32 %v1197, %v32
    %v1199 = vtanh.pop %v1198
    %v1200 = vmul.f32 %v1199, %v32
    %v1201 = vadd.f32 %v1200, %v33
    %v1202 = vmul.f32 %v1201, %v1041
    %1204 = vrot.lane.b32.xlu0 %v1201, 64
    %v1205 = vpop.permute.xlu0 %1204
    %v1207 = vmul.f32 %v1201, %v1205
    %1209 = vrot.lane.b32.xlu0 %v1207, 32
    %v1210 = vpop.permute.xlu0 %1209
    %v1212 = vadd.f32 %v1202, %v1210
    %v1213 = vtanh.pop %v1212
    %1215 = vrot.lane.b32.xlu0 %v1213, 64
    %v1216 = vpop.permute.xlu0 %1215
    %v1218 = vmul.f32 %v1201, %v1216
    %1220 = vrot.lane.b32.xlu0 %v1218, 32
    %v1221 = vpop.permute.xlu0 %1220
    %v1222 = vsel %vm269, %v1221, 0
    %1224 = vmatprep.subr.mxu0 0.0
    %1225 = vmatpush1.msra.mxu0 %v257
    %1226 = vmatprep.subr.mxu0 0.0
    %1227 = vmatpush1.msra.mxu0 %v258
    %1228 = vmatprep.subr.mxu0 0.0
    %1229 = vmatpush1.msra.mxu0 %v259
    %1230 = vmatprep.subr.mxu0 0.0
    %1231 = vmatpush1.msra.mxu0 %v260
    %1232 = vmatprep.subr.mxu0 0.0
    %1233 = vmatpush1.msra.mxu0 0.0
    %1234 = vmatprep.subr.mxu0 0.0
    %1235 = vmatpush1.msra.mxu0 0.0
    %1236 = vmatprep.subr.mxu0 0.0
    %1237 = vmatpush1.msra.mxu0 0.0
    %1238 = vmatprep.subr.mxu0 0.0
    %1239 = vmatpush1.msra.mxu0 0.0
    %1240 = vmatprep.subr.mxu0 0.0
    %1241 = vmatpush1.msra.mxu0 0.0
    %1242 = vmatprep.subr.mxu0 0.0
    %1243 = vmatpush1.msra.mxu0 0.0
    %1244 = vmatprep.subr.mxu0 0.0
    %1245 = vmatpush1.msra.mxu0 0.0
    %1246 = vmatprep.subr.mxu0 0.0
    %1247 = vmatpush1.msra.mxu0 0.0
    %1248 = vmatprep.subr.mxu0 0.0
    %1249 = vmatpush1.msra.mxu0 0.0
    %1250 = vmatprep.subr.mxu0 0.0
    %1251 = vmatpush1.msra.mxu0 0.0
    %1252 = vmatprep.subr.mxu0 0.0
    %1253 = vmatpush1.msra.mxu0 0.0
    %1254 = vmatprep.subr.mxu0 0.0
    %1255 = vmatpush1.msra.mxu0 0.0
    %1256 = vmatprep.subr.mxu0 0.0
    %1257 = vmatpush1.msra.mxu0 0.0
    %1258 = vmatprep.subr.mxu0 0.0
    %1259 = vmatpush1.msra.mxu0 0.0
    %1260 = vmatprep.subr.mxu0 0.0
    %1261 = vmatpush1.msra.mxu0 0.0
    %1262 = vmatprep.subr.mxu0 0.0
    %1263 = vmatpush1.msra.mxu0 0.0
    %1264 = vmatprep.subr.mxu0 0.0
    %1265 = vmatpush1.msra.mxu0 0.0
    %1266 = vmatprep.subr.mxu0 0.0
    %1267 = vmatpush1.msra.mxu0 0.0
    %1268 = vmatprep.subr.mxu0 0.0
    %1269 = vmatpush1.msra.mxu0 0.0
    %1270 = vmatprep.subr.mxu0 0.0
    %1271 = vmatpush1.msra.mxu0 0.0
    %1272 = vmatprep.subr.mxu0 0.0
    %1273 = vmatpush1.msra.mxu0 0.0
    %1274 = vmatprep.subr.mxu0 0.0
    %1275 = vmatpush1.msra.mxu0 0.0
    %1276 = vmatprep.subr.mxu0 0.0
    %1277 = vmatpush1.msra.mxu0 0.0
    %1278 = vmatprep.subr.mxu0 0.0
    %1279 = vmatpush1.msra.mxu0 0.0
    %1280 = vmatprep.subr.mxu0 0.0
    %1281 = vmatpush1.msra.mxu0 0.0
    %1282 = vmatprep.subr.mxu0 0.0
    %1283 = vmatpush1.msra.mxu0 0.0
    %1284 = vmatprep.subr.mxu0 0.0
    %1285 = vmatpush1.msra.mxu0 0.0
    %1286 = vmatprep.subr.mxu0 0.0
    %1287 = vmatpush1.msra.mxu0 0.0
    %1288 = vmatprep.mubr.f32.mxu0 0.0
    %1289 = vmatmul.mubr.f32.gmra.mrb[0].mxu0 %v1222
    %v1290 = vpop.f32.mrb[0].mxu0
    %v1291 = vadd.f32 %v266, %v1290
    %v1292 = vpop.f32.mrb[0].mxu0
    %1293 = vdwg.mxu0
    %s1294 = scalar_lea.vmem [#allocation3], 40
    %1295 = vst [vmem:[%s1294] sm:$0xff] %v1291
    %s1296 = scalar_lea.vmem [#allocation2], 48
    %v1297 = vld [vmem:[%s1296] sm:$0xff]
    %1298 = vmatprep.subr.mxu0 0.0
    %1299 = vmatpush1.msra.mxu0 %v253
    %1300 = vmatprep.subr.mxu0 0.0
    %1301 = vmatpush1.msra.mxu0 %v254
    %1302 = vmatprep.subr.mxu0 0.0
    %1303 = vmatpush1.msra.mxu0 %v255
    %1304 = vmatprep.subr.mxu0 0.0
    %1305 = vmatpush1.msra.mxu0 %v256
    %1306 = vmatprep.subr.mxu0 0.0
    %1307 = vmatpush1.msra.mxu0 0.0
    %1308 = vmatprep.subr.mxu0 0.0
    %1309 = vmatpush1.msra.mxu0 0.0
    %1310 = vmatprep.subr.mxu0 0.0
    %1311 = vmatpush1.msra.mxu0 0.0
    %1312 = vmatprep.subr.mxu0 0.0
    %1313 = vmatpush1.msra.mxu0 0.0
    %1314 = vmatprep.subr.mxu0 0.0
    %1315 = vmatpush1.msra.mxu0 0.0
    %1316 = vmatprep.subr.mxu0 0.0
    %1317 = vmatpush1.msra.mxu0 0.0
    %1318 = vmatprep.subr.mxu0 0.0
    %1319 = vmatpush1.msra.mxu0 0.0
    %1320 = vmatprep.subr.mxu0 0.0
    %1321 = vmatpush1.msra.mxu0 0.0
    %1322 = vmatprep.subr.mxu0 0.0
    %1323 = vmatpush1.msra.mxu0 0.0
    %1324 = vmatprep.subr.mxu0 0.0
    %1325 = vmatpush1.msra.mxu0 0.0
    %1326 = vmatprep.subr.mxu0 0.0
    %1327 = vmatpush1.msra.mxu0 0.0
    %1328 = vmatprep.subr.mxu0 0.0
    %1329 = vmatpush1.msra.mxu0 0.0
    %1330 = vmatprep.subr.mxu0 0.0
    %1331 = vmatpush1.msra.mxu0 0.0
    %1332 = vmatprep.subr.mxu0 0.0
    %1333 = vmatpush1.msra.mxu0 0.0
    %1334 = vmatprep.subr.mxu0 0.0
    %1335 = vmatpush1.msra.mxu0 0.0
    %1336 = vmatprep.subr.mxu0 0.0
    %1337 = vmatpush1.msra.mxu0 0.0
    %1338 = vmatprep.subr.mxu0 0.0
    %1339 = vmatpush1.msra.mxu0 0.0
    %1340 = vmatprep.subr.mxu0 0.0
    %1341 = vmatpush1.msra.mxu0 0.0
    %1342 = vmatprep.subr.mxu0 0.0
    %1343 = vmatpush1.msra.mxu0 0.0
    %1344 = vmatprep.subr.mxu0 0.0
    %1345 = vmatpush1.msra.mxu0 0.0
    %1346 = vmatprep.subr.mxu0 0.0
    %1347 = vmatpush1.msra.mxu0 0.0
    %1348 = vmatprep.subr.mxu0 0.0
    %1349 = vmatpush1.msra.mxu0 0.0
    %1350 = vmatprep.subr.mxu0 0.0
    %1351 = vmatpush1.msra.mxu0 0.0
    %1352 = vmatprep.subr.mxu0 0.0
    %1353 = vmatpush1.msra.mxu0 0.0
    %1354 = vmatprep.subr.mxu0 0.0
    %1355 = vmatpush1.msra.mxu0 0.0
    %1356 = vmatprep.subr.mxu0 0.0
    %1357 = vmatpush1.msra.mxu0 0.0
    %1358 = vmatprep.subr.mxu0 0.0
    %1359 = vmatpush1.msra.mxu0 0.0
    %1360 = vmatprep.subr.mxu0 0.0
    %1361 = vmatpush1.msra.mxu0 0.0
    %1362 = vmatprep.mubr.f32.mxu0 0.0
    %1363 = vmatmul.mubr.f32.gmra.mrb[0].mxu0 %v1222
    %v1364 = vpop.f32.mrb[0].mxu0
    %v1365 = vadd.f32 0.0, %v1364
    %v1366 = vpop.f32.mrb[0].mxu0
    %1367 = vdwg.mxu0
    %v1368 = vadd.f32 %v1297, %v1365
    %v1369 = vmul.f32 %v1368, %v32
    %v1370 = vtanh.pop %v1369
    %v1371 = vmul.f32 %v1370, %v32
    %v1372 = vadd.f32 %v1371, %v33
    %v1373 = vmul.f32 %v1372, %v1212
    %1375 = vrot.lane.b32.xlu0 %v1372, 64
    %v1376 = vpop.permute.xlu0 %1375
    %v1378 = vmul.f32 %v1372, %v1376
    %1380 = vrot.lane.b32.xlu0 %v1378, 32
    %v1381 = vpop.permute.xlu0 %1380
    %v1383 = vadd.f32 %v1373, %v1381
    %v1384 = vtanh.pop %v1383
    %1386 = vrot.lane.b32.xlu0 %v1384, 64
    %v1387 = vpop.permute.xlu0 %1386
    %v1389 = vmul.f32 %v1372, %v1387
    %1391 = vrot.lane.b32.xlu0 %v1389, 32
    %v1392 = vpop.permute.xlu0 %1391
    %v1393 = vsel %vm269, %v1392, 0
    %1395 = vmatprep.subr.mxu0 0.0
    %1396 = vmatpush1.msra.mxu0 %v257
    %1397 = vmatprep.subr.mxu0 0.0
    %1398 = vmatpush1.msra.mxu0 %v258
    %1399 = vmatprep.subr.mxu0 0.0
    %1400 = vmatpush1.msra.mxu0 %v259
    %1401 = vmatprep.subr.mxu0 0.0
    %1402 = vmatpush1.msra.mxu0 %v260
    %1403 = vmatprep.subr.mxu0 0.0
    %1404 = vmatpush1.msra.mxu0 0.0
    %1405 = vmatprep.subr.mxu0 0.0
    %1406 = vmatpush1.msra.mxu0 0.0
    %1407 = vmatprep.subr.mxu0 0.0
    %1408 = vmatpush1.msra.mxu0 0.0
    %1409 = vmatprep.subr.mxu0 0.0
    %1410 = vmatpush1.msra.mxu0 0.0
    %1411 = vmatprep.subr.mxu0 0.0
    %1412 = vmatpush1.msra.mxu0 0.0
    %1413 = vmatprep.subr.mxu0 0.0
    %1414 = vmatpush1.msra.mxu0 0.0
    %1415 = vmatprep.subr.mxu0 0.0
    %1416 = vmatpush1.msra.mxu0 0.0
    %1417 = vmatprep.subr.mxu0 0.0
    %1418 = vmatpush1.msra.mxu0 0.0
    %1419 = vmatprep.subr.mxu0 0.0
    %1420 = vmatpush1.msra.mxu0 0.0
    %1421 = vmatprep.subr.mxu0 0.0
    %1422 = vmatpush1.msra.mxu0 0.0
    %1423 = vmatprep.subr.mxu0 0.0
    %1424 = vmatpush1.msra.mxu0 0.0
    %1425 = vmatprep.subr.mxu0 0.0
    %1426 = vmatpush1.msra.mxu0 0.0
    %1427 = vmatprep.subr.mxu0 0.0
    %1428 = vmatpush1.msra.mxu0 0.0
    %1429 = vmatprep.subr.mxu0 0.0
    %1430 = vmatpush1.msra.mxu0 0.0
    %1431 = vmatprep.subr.mxu0 0.0
    %1432 = vmatpush1.msra.mxu0 0.0
    %1433 = vmatprep.subr.mxu0 0.0
    %1434 = vmatpush1.msra.mxu0 0.0
    %1435 = vmatprep.subr.mxu0 0.0
    %1436 = vmatpush1.msra.mxu0 0.0
    %1437 = vmatprep.subr.mxu0 0.0
    %1438 = vmatpush1.msra.mxu0 0.0
    %1439 = vmatprep.subr.mxu0 0.0
    %1440 = vmatpush1.msra.mxu0 0.0
    %1441 = vmatprep.subr.mxu0 0.0
    %1442 = vmatpush1.msra.mxu0 0.0
    %1443 = vmatprep.subr.mxu0 0.0
    %1444 = vmatpush1.msra.mxu0 0.0
    %1445 = vmatprep.subr.mxu0 0.0
    %1446 = vmatpush1.msra.mxu0 0.0
    %1447 = vmatprep.subr.mxu0 0.0
    %1448 = vmatpush1.msra.mxu0 0.0
    %1449 = vmatprep.subr.mxu0 0.0
    %1450 = vmatpush1.msra.mxu0 0.0
    %1451 = vmatprep.subr.mxu0 0.0
    %1452 = vmatpush1.msra.mxu0 0.0
    %1453 = vmatprep.subr.mxu0 0.0
    %1454 = vmatpush1.msra.mxu0 0.0
    %1455 = vmatprep.subr.mxu0 0.0
    %1456 = vmatpush1.msra.mxu0 0.0
    %1457 = vmatprep.subr.mxu0 0.0
    %1458 = vmatpush1.msra.mxu0 0.0
    %1459 = vmatprep.mubr.f32.mxu0 0.0
    %1460 = vmatmul.mubr.f32.gmra.mrb[0].mxu0 %v1393
    %v1461 = vpop.f32.mrb[0].mxu0
    %v1462 = vadd.f32 %v266, %v1461
    %v1463 = vpop.f32.mrb[0].mxu0
    %1464 = vdwg.mxu0
    %s1465 = scalar_lea.vmem [#allocation3], 48
    %1466 = vst [vmem:[%s1465] sm:$0xff] %v1462
    %s1467 = scalar_lea.vmem [#allocation2], 56
    %v1468 = vld [vmem:[%s1467] sm:$0xff]
    %1469 = vmatprep.subr.mxu0 0.0
    %1470 = vmatpush1.msra.mxu0 %v253
    %1471 = vmatprep.subr.mxu0 0.0
    %1472 = vmatpush1.msra.mxu0 %v254
    %1473 = vmatprep.subr.mxu0 0.0
    %1474 = vmatpush1.msra.mxu0 %v255
    %1475 = vmatprep.subr.mxu0 0.0
    %1476 = vmatpush1.msra.mxu0 %v256
    %1477 = vmatprep.subr.mxu0 0.0
    %1478 = vmatpush1.msra.mxu0 0.0
    %1479 = vmatprep.subr.mxu0 0.0
    %1480 = vmatpush1.msra.mxu0 0.0
    %1481 = vmatprep.subr.mxu0 0.0
    %1482 = vmatpush1.msra.mxu0 0.0
    %1483 = vmatprep.subr.mxu0 0.0
    %1484 = vmatpush1.msra.mxu0 0.0
    %1485 = vmatprep.subr.mxu0 0.0
    %1486 = vmatpush1.msra.mxu0 0.0
    %1487 = vmatprep.subr.mxu0 0.0
    %1488 = vmatpush1.msra.mxu0 0.0
    %1489 = vmatprep.subr.mxu0 0.0
    %1490 = vmatpush1.msra.mxu0 0.0
    %1491 = vmatprep.subr.mxu0 0.0
    %1492 = vmatpush1.msra.mxu0 0.0
    %1493 = vmatprep.subr.mxu0 0.0
    %1494 = vmatpush1.msra.mxu0 0.0
    %1495 = vmatprep.subr.mxu0 0.0
    %1496 = vmatpush1.msra.mxu0 0.0
    %1497 = vmatprep.subr.mxu0 0.0
    %1498 = vmatpush1.msra.mxu0 0.0
    %1499 = vmatprep.subr.mxu0 0.0
    %1500 = vmatpush1.msra.mxu0 0.0
    %1501 = vmatprep.subr.mxu0 0.0
    %1502 = vmatpush1.msra.mxu0 0.0
    %1503 = vmatprep.subr.mxu0 0.0
    %1504 = vmatpush1.msra.mxu0 0.0
    %1505 = vmatprep.subr.mxu0 0.0
    %1506 = vmatpush1.msra.mxu0 0.0
    %1507 = vmatprep.subr.mxu0 0.0
    %1508 = vmatpush1.msra.mxu0 0.0
    %1509 = vmatprep.subr.mxu0 0.0
    %1510 = vmatpush1.msra.mxu0 0.0
    %1511 = vmatprep.subr.mxu0 0.0
    %1512 = vmatpush1.msra.mxu0 0.0
    %1513 = vmatprep.subr.mxu0 0.0
    %1514 = vmatpush1.msra.mxu0 0.0
    %1515 = vmatprep.subr.mxu0 0.0
    %1516 = vmatpush1.msra.mxu0 0.0
    %1517 = vmatprep.subr.mxu0 0.0
    %1518 = vmatpush1.msra.mxu0 0.0
    %1519 = vmatprep.subr.mxu0 0.0
    %1520 = vmatpush1.msra.mxu0 0.0
    %1521 = vmatprep.subr.mxu0 0.0
    %1522 = vmatpush1.msra.mxu0 0.0
    %1523 = vmatprep.subr.mxu0 0.0
    %1524 = vmatpush1.msra.mxu0 0.0
    %1525 = vmatprep.subr.mxu0 0.0
    %1526 = vmatpush1.msra.mxu0 0.0
    %1527 = vmatprep.subr.mxu0 0.0
    %1528 = vmatpush1.msra.mxu0 0.0
    %1529 = vmatprep.subr.mxu0 0.0
    %1530 = vmatpush1.msra.mxu0 0.0
    %1531 = vmatprep.subr.mxu0 0.0
    %1532 = vmatpush1.msra.mxu0 0.0
    %1533 = vmatprep.mubr.f32.mxu0 0.0
    %1534 = vmatmul.mubr.f32.gmra.mrb[0].mxu0 %v1393
    %v1535 = vpop.f32.mrb[0].mxu0
    %v1536 = vadd.f32 0.0, %v1535
    %v1537 = vpop.f32.mrb[0].mxu0
    %1538 = vdwg.mxu0
    %v1539 = vadd.f32 %v1468, %v1536
    %v1540 = vmul.f32 %v1539, %v32
    %v1541 = vtanh.pop %v1540
    %v1542 = vmul.f32 %v1541, %v32
    %v1543 = vadd.f32 %v1542, %v33
    %v1544 = vmul.f32 %v1543, %v1383
    %1546 = vrot.lane.b32.xlu0 %v1543, 64
    %v1547 = vpop.permute.xlu0 %1546
    %v1549 = vmul.f32 %v1543, %v1547
    %1551 = vrot.lane.b32.xlu0 %v1549, 32
    %v1552 = vpop.permute.xlu0 %1551
    %v1554 = vadd.f32 %v1544, %v1552
    %v1555 = vtanh.pop %v1554
    %1557 = vrot.lane.b32.xlu0 %v1555, 64
    %v1558 = vpop.permute.xlu0 %1557
    %v1560 = vmul.f32 %v1543, %v1558
    %1562 = vrot.lane.b32.xlu0 %v1560, 32
    %v1563 = vpop.permute.xlu0 %1562
    %v1564 = vsel %vm269, %v1563, 0
    %1566 = vmatprep.subr.mxu0 0.0
    %1567 = vmatpush1.msra.mxu0 %v257
    %1568 = vmatprep.subr.mxu0 0.0
    %1569 = vmatpush1.msra.mxu0 %v258
    %1570 = vmatprep.subr.mxu0 0.0
    %1571 = vmatpush1.msra.mxu0 %v259
    %1572 = vmatprep.subr.mxu0 0.0
    %1573 = vmatpush1.msra.mxu0 %v260
    %1574 = vmatprep.subr.mxu0 0.0
    %1575 = vmatpush1.msra.mxu0 0.0
    %1576 = vmatprep.subr.mxu0 0.0
    %1577 = vmatpush1.msra.mxu0 0.0
    %1578 = vmatprep.subr.mxu0 0.0
    %1579 = vmatpush1.msra.mxu0 0.0
    %1580 = vmatprep.subr.mxu0 0.0
    %1581 = vmatpush1.msra.mxu0 0.0
    %1582 = vmatprep.subr.mxu0 0.0
    %1583 = vmatpush1.msra.mxu0 0.0
    %1584 = vmatprep.subr.mxu0 0.0
    %1585 = vmatpush1.msra.mxu0 0.0
    %1586 = vmatprep.subr.mxu0 0.0
    %1587 = vmatpush1.msra.mxu0 0.0
    %1588 = vmatprep.subr.mxu0 0.0
    %1589 = vmatpush1.msra.mxu0 0.0
    %1590 = vmatprep.subr.mxu0 0.0
    %1591 = vmatpush1.msra.mxu0 0.0
    %1592 = vmatprep.subr.mxu0 0.0
    %1593 = vmatpush1.msra.mxu0 0.0
    %1594 = vmatprep.subr.mxu0 0.0
    %1595 = vmatpush1.msra.mxu0 0.0
    %1596 = vmatprep.subr.mxu0 0.0
    %1597 = vmatpush1.msra.mxu0 0.0
    %1598 = vmatprep.subr.mxu0 0.0
    %1599 = vmatpush1.msra.mxu0 0.0
    %1600 = vmatprep.subr.mxu0 0.0
    %1601 = vmatpush1.msra.mxu0 0.0
    %1602 = vmatprep.subr.mxu0 0.0
    %1603 = vmatpush1.msra.mxu0 0.0
    %1604 = vmatprep.subr.mxu0 0.0
    %1605 = vmatpush1.msra.mxu0 0.0
    %1606 = vmatprep.subr.mxu0 0.0
    %1607 = vmatpush1.msra.mxu0 0.0
    %1608 = vmatprep.subr.mxu0 0.0
    %1609 = vmatpush1.msra.mxu0 0.0
    %1610 = vmatprep.subr.mxu0 0.0
    %1611 = vmatpush1.msra.mxu0 0.0
    %1612 = vmatprep.subr.mxu0 0.0
    %1613 = vmatpush1.msra.mxu0 0.0
    %1614 = vmatprep.subr.mxu0 0.0
    %1615 = vmatpush1.msra.mxu0 0.0
    %1616 = vmatprep.subr.mxu0 0.0
    %1617 = vmatpush1.msra.mxu0 0.0
    %1618 = vmatprep.subr.mxu0 0.0
    %1619 = vmatpush1.msra.mxu0 0.0
    %1620 = vmatprep.subr.mxu0 0.0
    %1621 = vmatpush1.msra.mxu0 0.0
    %1622 = vmatprep.subr.mxu0 0.0
    %1623 = vmatpush1.msra.mxu0 0.0
    %1624 = vmatprep.subr.mxu0 0.0
    %1625 = vmatpush1.msra.mxu0 0.0
    %1626 = vmatprep.subr.mxu0 0.0
    %1627 = vmatpush1.msra.mxu0 0.0
    %1628 = vmatprep.subr.mxu0 0.0
    %1629 = vmatpush1.msra.mxu0 0.0
    %1630 = vmatprep.mubr.f32.mxu0 0.0
    %1631 = vmatmul.mubr.f32.gmra.mrb[0].mxu0 %v1564
    %v1632 = vpop.f32.mrb[0].mxu0
    %v1633 = vadd.f32 %v266, %v1632
    %v1634 = vpop.f32.mrb[0].mxu0
    %1635 = vdwg.mxu0
    %s1636 = scalar_lea.vmem [#allocation3], 56
    %1637 = vst [vmem:[%s1636] sm:$0xff] %v1633
    %s1638 = scalar_lea.vmem [#allocation2], 64
    %v1639 = vld [vmem:[%s1638] sm:$0xff]
    %1640 = vmatprep.subr.mxu0 0.0
    %1641 = vmatpush1.msra.mxu0 %v253
    %1642 = vmatprep.subr.mxu0 0.0
    %1643 = vmatpush1.msra.mxu0 %v254
    %1644 = vmatprep.subr.mxu0 0.0
    %1645 = vmatpush1.msra.mxu0 %v255
    %1646 = vmatprep.subr.mxu0 0.0
    %1647 = vmatpush1.msra.mxu0 %v256
    %1648 = vmatprep.subr.mxu0 0.0
    %1649 = vmatpush1.msra.mxu0 0.0
    %1650 = vmatprep.subr.mxu0 0.0
    %1651 = vmatpush1.msra.mxu0 0.0
    %1652 = vmatprep.subr.mxu0 0.0
    %1653 = vmatpush1.msra.mxu0 0.0
    %1654 = vmatprep.subr.mxu0 0.0
    %1655 = vmatpush1.msra.mxu0 0.0
    %1656 = vmatprep.subr.mxu0 0.0
    %1657 = vmatpush1.msra.mxu0 0.0
    %1658 = vmatprep.subr.mxu0 0.0
    %1659 = vmatpush1.msra.mxu0 0.0
    %1660 = vmatprep.subr.mxu0 0.0
    %1661 = vmatpush1.msra.mxu0 0.0
    %1662 = vmatprep.subr.mxu0 0.0
    %1663 = vmatpush1.msra.mxu0 0.0
    %1664 = vmatprep.subr.mxu0 0.0
    %1665 = vmatpush1.msra.mxu0 0.0
    %1666 = vmatprep.subr.mxu0 0.0
    %1667 = vmatpush1.msra.mxu0 0.0
    %1668 = vmatprep.subr.mxu0 0.0
    %1669 = vmatpush1.msra.mxu0 0.0
    %1670 = vmatprep.subr.mxu0 0.0
    %1671 = vmatpush1.msra.mxu0 0.0
    %1672 = vmatprep.subr.mxu0 0.0
    %1673 = vmatpush1.msra.mxu0 0.0
    %1674 = vmatprep.subr.mxu0 0.0
    %1675 = vmatpush1.msra.mxu0 0.0
    %1676 = vmatprep.subr.mxu0 0.0
    %1677 = vmatpush1.msra.mxu0 0.0
    %1678 = vmatprep.subr.mxu0 0.0
    %1679 = vmatpush1.msra.mxu0 0.0
    %1680 = vmatprep.subr.mxu0 0.0
    %1681 = vmatpush1.msra.mxu0 0.0
    %1682 = vmatprep.subr.mxu0 0.0
    %1683 = vmatpush1.msra.mxu0 0.0
    %1684 = vmatprep.subr.mxu0 0.0
    %1685 = vmatpush1.msra.mxu0 0.0
    %1686 = vmatprep.subr.mxu0 0.0
    %1687 = vmatpush1.msra.mxu0 0.0
    %1688 = vmatprep.subr.mxu0 0.0
    %1689 = vmatpush1.msra.mxu0 0.0
    %1690 = vmatprep.subr.mxu0 0.0
    %1691 = vmatpush1.msra.mxu0 0.0
    %1692 = vmatprep.subr.mxu0 0.0
    %1693 = vmatpush1.msra.mxu0 0.0
    %1694 = vmatprep.subr.mxu0 0.0
    %1695 = vmatpush1.msra.mxu0 0.0
    %1696 = vmatprep.subr.mxu0 0.0
    %1697 = vmatpush1.msra.mxu0 0.0
    %1698 = vmatprep.subr.mxu0 0.0
    %1699 = vmatpush1.msra.mxu0 0.0
    %1700 = vmatprep.subr.mxu0 0.0
    %1701 = vmatpush1.msra.mxu0 0.0
    %1702 = vmatprep.subr.mxu0 0.0
    %1703 = vmatpush1.msra.mxu0 0.0
    %1704 = vmatprep.mubr.f32.mxu0 0.0
    %1705 = vmatmul.mubr.f32.gmra.mrb[0].mxu0 %v1564
    %v1706 = vpop.f32.mrb[0].mxu0
    %v1707 = vadd.f32 0.0, %v1706
    %v1708 = vpop.f32.mrb[0].mxu0
    %1709 = vdwg.mxu0
    %v1710 = vadd.f32 %v1639, %v1707
    %v1711 = vmul.f32 %v1710, %v32
    %v1712 = vtanh.pop %v1711
    %v1713 = vmul.f32 %v1712, %v32
    %v1714 = vadd.f32 %v1713, %v33
    %v1715 = vmul.f32 %v1714, %v1554
    %1717 = vrot.lane.b32.xlu0 %v1714, 64
    %v1718 = vpop.permute.xlu0 %1717
    %v1720 = vmul.f32 %v1714, %v1718
    %1722 = vrot.lane.b32.xlu0 %v1720, 32
    %v1723 = vpop.permute.xlu0 %1722
    %v1725 = vadd.f32 %v1715, %v1723
    %v1726 = vtanh.pop %v1725
    %1728 = vrot.lane.b32.xlu0 %v1726, 64
    %v1729 = vpop.permute.xlu0 %1728
    %v1731 = vmul.f32 %v1714, %v1729
    %1733 = vrot.lane.b32.xlu0 %v1731, 32
    %v1734 = vpop.permute.xlu0 %1733
    %v1735 = vsel %vm269, %v1734, 0
    %1737 = vmatprep.subr.mxu0 0.0
    %1738 = vmatpush1.msra.mxu0 %v257
    %1739 = vmatprep.subr.mxu0 0.0
    %1740 = vmatpush1.msra.mxu0 %v258
    %1741 = vmatprep.subr.mxu0 0.0
    %1742 = vmatpush1.msra.mxu0 %v259
    %1743 = vmatprep.subr.mxu0 0.0
    %1744 = vmatpush1.msra.mxu0 %v260
    %1745 = vmatprep.subr.mxu0 0.0
    %1746 = vmatpush1.msra.mxu0 0.0
    %1747 = vmatprep.subr.mxu0 0.0
    %1748 = vmatpush1.msra.mxu0 0.0
    %1749 = vmatprep.subr.mxu0 0.0
    %1750 = vmatpush1.msra.mxu0 0.0
    %1751 = vmatprep.subr.mxu0 0.0
    %1752 = vmatpush1.msra.mxu0 0.0
    %1753 = vmatprep.subr.mxu0 0.0
    %1754 = vmatpush1.msra.mxu0 0.0
    %1755 = vmatprep.subr.mxu0 0.0
    %1756 = vmatpush1.msra.mxu0 0.0
    %1757 = vmatprep.subr.mxu0 0.0
    %1758 = vmatpush1.msra.mxu0 0.0
    %1759 = vmatprep.subr.mxu0 0.0
    %1760 = vmatpush1.msra.mxu0 0.0
    %1761 = vmatprep.subr.mxu0 0.0
    %1762 = vmatpush1.msra.mxu0 0.0
    %1763 = vmatprep.subr.mxu0 0.0
    %1764 = vmatpush1.msra.mxu0 0.0
    %1765 = vmatprep.subr.mxu0 0.0
    %1766 = vmatpush1.msra.mxu0 0.0
    %1767 = vmatprep.subr.mxu0 0.0
    %1768 = vmatpush1.msra.mxu0 0.0
    %1769 = vmatprep.subr.mxu0 0.0
    %1770 = vmatpush1.msra.mxu0 0.0
    %1771 = vmatprep.subr.mxu0 0.0
    %1772 = vmatpush1.msra.mxu0 0.0
    %1773 = vmatprep.subr.mxu0 0.0
    %1774 = vmatpush1.msra.mxu0 0.0
    %1775 = vmatprep.subr.mxu0 0.0
    %1776 = vmatpush1.msra.mxu0 0.0
    %1777 = vmatprep.subr.mxu0 0.0
    %1778 = vmatpush1.msra.mxu0 0.0
    %1779 = vmatprep.subr.mxu0 0.0
    %1780 = vmatpush1.msra.mxu0 0.0
    %1781 = vmatprep.subr.mxu0 0.0
    %1782 = vmatpush1.msra.mxu0 0.0
    %1783 = vmatprep.subr.mxu0 0.0
    %1784 = vmatpush1.msra.mxu0 0.0
    %1785 = vmatprep.subr.mxu0 0.0
    %1786 = vmatpush1.msra.mxu0 0.0
    %1787 = vmatprep.subr.mxu0 0.0
    %1788 = vmatpush1.msra.mxu0 0.0
    %1789 = vmatprep.subr.mxu0 0.0
    %1790 = vmatpush1.msra.mxu0 0.0
    %1791 = vmatprep.subr.mxu0 0.0
    %1792 = vmatpush1.msra.mxu0 0.0
    %1793 = vmatprep.subr.mxu0 0.0
    %1794 = vmatpush1.msra.mxu0 0.0
    %1795 = vmatprep.subr.mxu0 0.0
    %1796 = vmatpush1.msra.mxu0 0.0
    %1797 = vmatprep.subr.mxu0 0.0
    %1798 = vmatpush1.msra.mxu0 0.0
    %1799 = vmatprep.subr.mxu0 0.0
    %1800 = vmatpush1.msra.mxu0 0.0
    %1801 = vmatprep.mubr.f32.mxu0 0.0
    %1802 = vmatmul.mubr.f32.gmra.mrb[0].mxu0 %v1735
    %v1803 = vpop.f32.mrb[0].mxu0
    %v1804 = vadd.f32 %v266, %v1803
    %v1805 = vpop.f32.mrb[0].mxu0
    %1806 = vdwg.mxu0
    %s1807 = scalar_lea.vmem [#allocation3], 64
    %1808 = vst [vmem:[%s1807] sm:$0xff] %v1804
    %s1809 = scalar_lea.vmem [#allocation2], 72
    %v1810 = vld [vmem:[%s1809] sm:$0xff]
    %1811 = vmatprep.subr.mxu0 0.0
    %1812 = vmatpush1.msra.mxu0 %v253
    %1813 = vmatprep.subr.mxu0 0.0
    %1814 = vmatpush1.msra.mxu0 %v254
    %1815 = vmatprep.subr.mxu0 0.0
    %1816 = vmatpush1.msra.mxu0 %v255
    %1817 = vmatprep.subr.mxu0 0.0
    %1818 = vmatpush1.msra.mxu0 %v256
    %1819 = vmatprep.subr.mxu0 0.0
    %1820 = vmatpush1.msra.mxu0 0.0
    %1821 = vmatprep.subr.mxu0 0.0
    %1822 = vmatpush1.msra.mxu0 0.0
    %1823 = vmatprep.subr.mxu0 0.0
    %1824 = vmatpush1.msra.mxu0 0.0
    %1825 = vmatprep.subr.mxu0 0.0
    %1826 = vmatpush1.msra.mxu0 0.0
    %1827 = vmatprep.subr.mxu0 0.0
    %1828 = vmatpush1.msra.mxu0 0.0
    %1829 = vmatprep.subr.mxu0 0.0
    %1830 = vmatpush1.msra.mxu0 0.0
    %1831 = vmatprep.subr.mxu0 0.0
    %1832 = vmatpush1.msra.mxu0 0.0
    %1833 = vmatprep.subr.mxu0 0.0
    %1834 = vmatpush1.msra.mxu0 0.0
    %1835 = vmatprep.subr.mxu0 0.0
    %1836 = vmatpush1.msra.mxu0 0.0
    %1837 = vmatprep.subr.mxu0 0.0
    %1838 = vmatpush1.msra.mxu0 0.0
    %1839 = vmatprep.subr.mxu0 0.0
    %1840 = vmatpush1.msra.mxu0 0.0
    %1841 = vmatprep.subr.mxu0 0.0
    %1842 = vmatpush1.msra.mxu0 0.0
    %1843 = vmatprep.subr.mxu0 0.0
    %1844 = vmatpush1.msra.mxu0 0.0
    %1845 = vmatprep.subr.mxu0 0.0
    %1846 = vmatpush1.msra.mxu0 0.0
    %1847 = vmatprep.subr.mxu0 0.0
    %1848 = vmatpush1.msra.mxu0 0.0
    %1849 = vmatprep.subr.mxu0 0.0
    %1850 = vmatpush1.msra.mxu0 0.0
    %1851 = vmatprep.subr.mxu0 0.0
    %1852 = vmatpush1.msra.mxu0 0.0
    %1853 = vmatprep.subr.mxu0 0.0
    %1854 = vmatpush1.msra.mxu0 0.0
    %1855 = vmatprep.subr.mxu0 0.0
    %1856 = vmatpush1.msra.mxu0 0.0
    %1857 = vmatprep.subr.mxu0 0.0
    %1858 = vmatpush1.msra.mxu0 0.0
    %1859 = vmatprep.subr.mxu0 0.0
    %1860 = vmatpush1.msra.mxu0 0.0
    %1861 = vmatprep.subr.mxu0 0.0
    %1862 = vmatpush1.msra.mxu0 0.0
    %1863 = vmatprep.subr.mxu0 0.0
    %1864 = vmatpush1.msra.mxu0 0.0
    %1865 = vmatprep.subr.mxu0 0.0
    %1866 = vmatpush1.msra.mxu0 0.0
    %1867 = vmatprep.subr.mxu0 0.0
    %1868 = vmatpush1.msra.mxu0 0.0
    %1869 = vmatprep.subr.mxu0 0.0
    %1870 = vmatpush1.msra.mxu0 0.0
    %1871 = vmatprep.subr.mxu0 0.0
    %1872 = vmatpush1.msra.mxu0 0.0
    %1873 = vmatprep.subr.mxu0 0.0
    %1874 = vmatpush1.msra.mxu0 0.0
    %1875 = vmatprep.mubr.f32.mxu0 0.0
    %1876 = vmatmul.mubr.f32.gmra.mrb[0].mxu0 %v1735
    %v1877 = vpop.f32.mrb[0].mxu0
    %v1878 = vadd.f32 0.0, %v1877
    %v1879 = vpop.f32.mrb[0].mxu0
    %1880 = vdwg.mxu0
    %v1881 = vadd.f32 %v1810, %v1878
    %v1882 = vmul.f32 %v1881, %v32
    %v1883 = vtanh.pop %v1882
    %v1884 = vmul.f32 %v1883, %v32
    %v1885 = vadd.f32 %v1884, %v33
    %v1886 = vmul.f32 %v1885, %v1725
    %1888 = vrot.lane.b32.xlu0 %v1885, 64
    %v1889 = vpop.permute.xlu0 %1888
    %v1891 = vmul.f32 %v1885, %v1889
    %1893 = vrot.lane.b32.xlu0 %v1891, 32
    %v1894 = vpop.permute.xlu0 %1893
    %v1896 = vadd.f32 %v1886, %v1894
    %v1897 = vtanh.pop %v1896
    %1899 = vrot.lane.b32.xlu0 %v1897, 64
    %v1900 = vpop.permute.xlu0 %1899
    %v1902 = vmul.f32 %v1885, %v1900
    %1904 = vrot.lane.b32.xlu0 %v1902, 32
    %v1905 = vpop.permute.xlu0 %1904
    %v1906 = vsel %vm269, %v1905, 0
    %1908 = vmatprep.subr.mxu0 0.0
    %1909 = vmatpush1.msra.mxu0 %v257
    %1910 = vmatprep.subr.mxu0 0.0
    %1911 = vmatpush1.msra.mxu0 %v258
    %1912 = vmatprep.subr.mxu0 0.0
    %1913 = vmatpush1.msra.mxu0 %v259
    %1914 = vmatprep.subr.mxu0 0.0
    %1915 = vmatpush1.msra.mxu0 %v260
    %1916 = vmatprep.subr.mxu0 0.0
    %1917 = vmatpush1.msra.mxu0 0.0
    %1918 = vmatprep.subr.mxu0 0.0
    %1919 = vmatpush1.msra.mxu0 0.0
    %1920 = vmatprep.subr.mxu0 0.0
    %1921 = vmatpush1.msra.mxu0 0.0
    %1922 = vmatprep.subr.mxu0 0.0
    %1923 = vmatpush1.msra.mxu0 0.0
    %1924 = vmatprep.subr.mxu0 0.0
    %1925 = vmatpush1.msra.mxu0 0.0
    %1926 = vmatprep.subr.mxu0 0.0
    %1927 = vmatpush1.msra.mxu0 0.0
    %1928 = vmatprep.subr.mxu0 0.0
    %1929 = vmatpush1.msra.mxu0 0.0
    %1930 = vmatprep.subr.mxu0 0.0
    %1931 = vmatpush1.msra.mxu0 0.0
    %1932 = vmatprep.subr.mxu0 0.0
    %1933 = vmatpush1.msra.mxu0 0.0
    %1934 = vmatprep.subr.mxu0 0.0
    %1935 = vmatpush1.msra.mxu0 0.0
    %1936 = vmatprep.subr.mxu0 0.0
    %1937 = vmatpush1.msra.mxu0 0.0
    %1938 = vmatprep.subr.mxu0 0.0
    %1939 = vmatpush1.msra.mxu0 0.0
    %1940 = vmatprep.subr.mxu0 0.0
    %1941 = vmatpush1.msra.mxu0 0.0
    %1942 = vmatprep.subr.mxu0 0.0
    %1943 = vmatpush1.msra.mxu0 0.0
    %1944 = vmatprep.subr.mxu0 0.0
    %1945 = vmatpush1.msra.mxu0 0.0
    %1946 = vmatprep.subr.mxu0 0.0
    %1947 = vmatpush1.msra.mxu0 0.0
    %1948 = vmatprep.subr.mxu0 0.0
    %1949 = vmatpush1.msra.mxu0 0.0
    %1950 = vmatprep.subr.mxu0 0.0
    %1951 = vmatpush1.msra.mxu0 0.0
    %1952 = vmatprep.subr.mxu0 0.0
    %1953 = vmatpush1.msra.mxu0 0.0
    %1954 = vmatprep.subr.mxu0 0.0
    %1955 = vmatpush1.msra.mxu0 0.0
    %1956 = vmatprep.subr.mxu0 0.0
    %1957 = vmatpush1.msra.mxu0 0.0
    %1958 = vmatprep.subr.mxu0 0.0
    %1959 = vmatpush1.msra.mxu0 0.0
    %1960 = vmatprep.subr.mxu0 0.0
    %1961 = vmatpush1.msra.mxu0 0.0
    %1962 = vmatprep.subr.mxu0 0.0
    %1963 = vmatpush1.msra.mxu0 0.0
    %1964 = vmatprep.subr.mxu0 0.0
    %1965 = vmatpush1.msra.mxu0 0.0
    %1966 = vmatprep.subr.mxu0 0.0
    %1967 = vmatpush1.msra.mxu0 0.0
    %1968 = vmatprep.subr.mxu0 0.0
    %1969 = vmatpush1.msra.mxu0 0.0
    %1970 = vmatprep.subr.mxu0 0.0
    %1971 = vmatpush1.msra.mxu0 0.0
    %1972 = vmatprep.mubr.f32.mxu0 0.0
    %1973 = vmatmul.mubr.f32.gmra.mrb[0].mxu0 %v1906
    %v1974 = vpop.f32.mrb[0].mxu0
    %v1975 = vadd.f32 %v266, %v1974
    %v1976 = vpop.f32.mrb[0].mxu0
    %1977 = vdwg.mxu0
    %s1978 = scalar_lea.vmem [#allocation3], 72
    %1979 = vst [vmem:[%s1978] sm:$0xff] %v1975
    %s1980 = scalar_lea.vmem [#allocation2], 80
    %v1981 = vld [vmem:[%s1980] sm:$0xff]
    %1982 = vmatprep.subr.mxu0 0.0
    %1983 = vmatpush1.msra.mxu0 %v253
    %1984 = vmatprep.subr.mxu0 0.0
    %1985 = vmatpush1.msra.mxu0 %v254
    %1986 = vmatprep.subr.mxu0 0.0
    %1987 = vmatpush1.msra.mxu0 %v255
    %1988 = vmatprep.subr.mxu0 0.0
    %1989 = vmatpush1.msra.mxu0 %v256
    %1990 = vmatprep.subr.mxu0 0.0
    %1991 = vmatpush1.msra.mxu0 0.0
    %1992 = vmatprep.subr.mxu0 0.0
    %1993 = vmatpush1.msra.mxu0 0.0
    %1994 = vmatprep.subr.mxu0 0.0
    %1995 = vmatpush1.msra.mxu0 0.0
    %1996 = vmatprep.subr.mxu0 0.0
    %1997 = vmatpush1.msra.mxu0 0.0
    %1998 = vmatprep.subr.mxu0 0.0
    %1999 = vmatpush1.msra.mxu0 0.0
    %2000 = vmatprep.subr.mxu0 0.0
    %2001 = vmatpush1.msra.mxu0 0.0
    %2002 = vmatprep.subr.mxu0 0.0
    %2003 = vmatpush1.msra.mxu0 0.0
    %2004 = vmatprep.subr.mxu0 0.0
    %2005 = vmatpush1.msra.mxu0 0.0
    %2006 = vmatprep.subr.mxu0 0.0
    %2007 = vmatpush1.msra.mxu0 0.0
    %2008 = vmatprep.subr.mxu0 0.0
    %2009 = vmatpush1.msra.mxu0 0.0
    %2010 = vmatprep.subr.mxu0 0.0
    %2011 = vmatpush1.msra.mxu0 0.0
    %2012 = vmatprep.subr.mxu0 0.0
    %2013 = vmatpush1.msra.mxu0 0.0
    %2014 = vmatprep.subr.mxu0 0.0
    %2015 = vmatpush1.msra.mxu0 0.0
    %2016 = vmatprep.subr.mxu0 0.0
    %2017 = vmatpush1.msra.mxu0 0.0
    %2018 = vmatprep.subr.mxu0 0.0
    %2019 = vmatpush1.msra.mxu0 0.0
    %2020 = vmatprep.subr.mxu0 0.0
    %2021 = vmatpush1.msra.mxu0 0.0
    %2022 = vmatprep.subr.mxu0 0.0
    %2023 = vmatpush1.msra.mxu0 0.0
    %2024 = vmatprep.subr.mxu0 0.0
    %2025 = vmatpush1.msra.mxu0 0.0
    %2026 = vmatprep.subr.mxu0 0.0
    %2027 = vmatpush1.msra.mxu0 0.0
    %2028 = vmatprep.subr.mxu0 0.0
    %2029 = vmatpush1.msra.mxu0 0.0
    %2030 = vmatprep.subr.mxu0 0.0
    %2031 = vmatpush1.msra.mxu0 0.0
    %2032 = vmatprep.subr.mxu0 0.0
    %2033 = vmatpush1.msra.mxu0 0.0
    %2034 = vmatprep.subr.mxu0 0.0
    %2035 = vmatpush1.msra.mxu0 0.0
    %2036 = vmatprep.subr.mxu0 0.0
    %2037 = vmatpush1.msra.mxu0 0.0
    %2038 = vmatprep.subr.mxu0 0.0
    %2039 = vmatpush1.msra.mxu0 0.0
    %2040 = vmatprep.subr.mxu0 0.0
    %2041 = vmatpush1.msra.mxu0 0.0
    %2042 = vmatprep.subr.mxu0 0.0
    %2043 = vmatpush1.msra.mxu0 0.0
    %2044 = vmatprep.subr.mxu0 0.0
    %2045 = vmatpush1.msra.mxu0 0.0
    %2046 = vmatprep.mubr.f32.mxu0 0.0
    %2047 = vmatmul.mubr.f32.gmra.mrb[0].mxu0 %v1906
    %v2048 = vpop.f32.mrb[0].mxu0
    %v2049 = vadd.f32 0.0, %v2048
    %v2050 = vpop.f32.mrb[0].mxu0
    %2051 = vdwg.mxu0
    %v2052 = vadd.f32 %v1981, %v2049
    %v2053 = vmul.f32 %v2052, %v32
    %v2054 = vtanh.pop %v2053
    %v2055 = vmul.f32 %v2054, %v32
    %v2056 = vadd.f32 %v2055, %v33
    %v2057 = vmul.f32 %v2056, %v1896
    %2059 = vrot.lane.b32.xlu0 %v2056, 64
    %v2060 = vpop.permute.xlu0 %2059
    %v2062 = vmul.f32 %v2056, %v2060
    %2064 = vrot.lane.b32.xlu0 %v2062, 32
    %v2065 = vpop.permute.xlu0 %2064
    %v2067 = vadd.f32 %v2057, %v2065
    %v2068 = vtanh.pop %v2067
    %2070 = vrot.lane.b32.xlu0 %v2068, 64
    %v2071 = vpop.permute.xlu0 %2070
    %v2073 = vmul.f32 %v2056, %v2071
    %2075 = vrot.lane.b32.xlu0 %v2073, 32
    %v2076 = vpop.permute.xlu0 %2075
    %v2077 = vsel %vm269, %v2076, 0
    %2079 = vmatprep.subr.mxu0 0.0
    %2080 = vmatpush1.msra.mxu0 %v257
    %2081 = vmatprep.subr.mxu0 0.0
    %2082 = vmatpush1.msra.mxu0 %v258
    %2083 = vmatprep.subr.mxu0 0.0
    %2084 = vmatpush1.msra.mxu0 %v259
    %2085 = vmatprep.subr.mxu0 0.0
    %2086 = vmatpush1.msra.mxu0 %v260
    %2087 = vmatprep.subr.mxu0 0.0
    %2088 = vmatpush1.msra.mxu0 0.0
    %2089 = vmatprep.subr.mxu0 0.0
    %2090 = vmatpush1.msra.mxu0 0.0
    %2091 = vmatprep.subr.mxu0 0.0
    %2092 = vmatpush1.msra.mxu0 0.0
    %2093 = vmatprep.subr.mxu0 0.0
    %2094 = vmatpush1.msra.mxu0 0.0
    %2095 = vmatprep.subr.mxu0 0.0
    %2096 = vmatpush1.msra.mxu0 0.0
    %2097 = vmatprep.subr.mxu0 0.0
    %2098 = vmatpush1.msra.mxu0 0.0
    %2099 = vmatprep.subr.mxu0 0.0
    %2100 = vmatpush1.msra.mxu0 0.0
    %2101 = vmatprep.subr.mxu0 0.0
    %2102 = vmatpush1.msra.mxu0 0.0
    %2103 = vmatprep.subr.mxu0 0.0
    %2104 = vmatpush1.msra.mxu0 0.0
    %2105 = vmatprep.subr.mxu0 0.0
    %2106 = vmatpush1.msra.mxu0 0.0
    %2107 = vmatprep.subr.mxu0 0.0
    %2108 = vmatpush1.msra.mxu0 0.0
    %2109 = vmatprep.subr.mxu0 0.0
    %2110 = vmatpush1.msra.mxu0 0.0
    %2111 = vmatprep.subr.mxu0 0.0
    %2112 = vmatpush1.msra.mxu0 0.0
    %2113 = vmatprep.subr.mxu0 0.0
    %2114 = vmatpush1.msra.mxu0 0.0
    %2115 = vmatprep.subr.mxu0 0.0
    %2116 = vmatpush1.msra.mxu0 0.0
    %2117 = vmatprep.subr.mxu0 0.0
    %2118 = vmatpush1.msra.mxu0 0.0
    %2119 = vmatprep.subr.mxu0 0.0
    %2120 = vmatpush1.msra.mxu0 0.0
    %2121 = vmatprep.subr.mxu0 0.0
    %2122 = vmatpush1.msra.mxu0 0.0
    %2123 = vmatprep.subr.mxu0 0.0
    %2124 = vmatpush1.msra.mxu0 0.0
    %2125 = vmatprep.subr.mxu0 0.0
    %2126 = vmatpush1.msra.mxu0 0.0
    %2127 = vmatprep.subr.mxu0 0.0
    %2128 = vmatpush1.msra.mxu0 0.0
    %2129 = vmatprep.subr.mxu0 0.0
    %2130 = vmatpush1.msra.mxu0 0.0
    %2131 = vmatprep.subr.mxu0 0.0
    %2132 = vmatpush1.msra.mxu0 0.0
    %2133 = vmatprep.subr.mxu0 0.0
    %2134 = vmatpush1.msra.mxu0 0.0
    %2135 = vmatprep.subr.mxu0 0.0
    %2136 = vmatpush1.msra.mxu0 0.0
    %2137 = vmatprep.subr.mxu0 0.0
    %2138 = vmatpush1.msra.mxu0 0.0
    %2139 = vmatprep.subr.mxu0 0.0
    %2140 = vmatpush1.msra.mxu0 0.0
    %2141 = vmatprep.subr.mxu0 0.0
    %2142 = vmatpush1.msra.mxu0 0.0
    %2143 = vmatprep.mubr.f32.mxu0 0.0
    %2144 = vmatmul.mubr.f32.gmra.mrb[0].mxu0 %v2077
    %v2145 = vpop.f32.mrb[0].mxu0
    %v2146 = vadd.f32 %v266, %v2145
    %v2147 = vpop.f32.mrb[0].mxu0
    %2148 = vdwg.mxu0
    %s2149 = scalar_lea.vmem [#allocation3], 80
    %2150 = vst [vmem:[%s2149] sm:$0xff] %v2146
    %s2151 = scalar_lea.vmem [#allocation2], 88
    %v2152 = vld [vmem:[%s2151] sm:$0xff]
    %2153 = vmatprep.subr.mxu0 0.0
    %2154 = vmatpush1.msra.mxu0 %v253
    %2155 = vmatprep.subr.mxu0 0.0
    %2156 = vmatpush1.msra.mxu0 %v254
    %2157 = vmatprep.subr.mxu0 0.0
    %2158 = vmatpush1.msra.mxu0 %v255
    %2159 = vmatprep.subr.mxu0 0.0
    %2160 = vmatpush1.msra.mxu0 %v256
    %2161 = vmatprep.subr.mxu0 0.0
    %2162 = vmatpush1.msra.mxu0 0.0
    %2163 = vmatprep.subr.mxu0 0.0
    %2164 = vmatpush1.msra.mxu0 0.0
    %2165 = vmatprep.subr.mxu0 0.0
    %2166 = vmatpush1.msra.mxu0 0.0
    %2167 = vmatprep.subr.mxu0 0.0
    %2168 = vmatpush1.msra.mxu0 0.0
    %2169 = vmatprep.subr.mxu0 0.0
    %2170 = vmatpush1.msra.mxu0 0.0
    %2171 = vmatprep.subr.mxu0 0.0
    %2172 = vmatpush1.msra.mxu0 0.0
    %2173 = vmatprep.subr.mxu0 0.0
    %2174 = vmatpush1.msra.mxu0 0.0
    %2175 = vmatprep.subr.mxu0 0.0
    %2176 = vmatpush1.msra.mxu0 0.0
    %2177 = vmatprep.subr.mxu0 0.0
    %2178 = vmatpush1.msra.mxu0 0.0
    %2179 = vmatprep.subr.mxu0 0.0
    %2180 = vmatpush1.msra.mxu0 0.0
    %2181 = vmatprep.subr.mxu0 0.0
    %2182 = vmatpush1.msra.mxu0 0.0
    %2183 = vmatprep.subr.mxu0 0.0
    %2184 = vmatpush1.msra.mxu0 0.0
    %2185 = vmatprep.subr.mxu0 0.0
    %2186 = vmatpush1.msra.mxu0 0.0
    %2187 = vmatprep.subr.mxu0 0.0
    %2188 = vmatpush1.msra.mxu0 0.0
    %2189 = vmatprep.subr.mxu0 0.0
    %2190 = vmatpush1.msra.mxu0 0.0
    %2191 = vmatprep.subr.mxu0 0.0
    %2192 = vmatpush1.msra.mxu0 0.0
    %2193 = vmatprep.subr.mxu0 0.0
    %2194 = vmatpush1.msra.mxu0 0.0
    %2195 = vmatprep.subr.mxu0 0.0
    %2196 = vmatpush1.msra.mxu0 0.0
    %2197 = vmatprep.subr.mxu0 0.0
    %2198 = vmatpush1.msra.mxu0 0.0
    %2199 = vmatprep.subr.mxu0 0.0
    %2200 = vmatpush1.msra.mxu0 0.0
    %2201 = vmatprep.subr.mxu0 0.0
    %2202 = vmatpush1.msra.mxu0 0.0
    %2203 = vmatprep.subr.mxu0 0.0
    %2204 = vmatpush1.msra.mxu0 0.0
    %2205 = vmatprep.subr.mxu0 0.0
    %2206 = vmatpush1.msra.mxu0 0.0
    %2207 = vmatprep.subr.mxu0 0.0
    %2208 = vmatpush1.msra.mxu0 0.0
    %2209 = vmatprep.subr.mxu0 0.0
    %2210 = vmatpush1.msra.mxu0 0.0
    %2211 = vmatprep.subr.mxu0 0.0
    %2212 = vmatpush1.msra.mxu0 0.0
    %2213 = vmatprep.subr.mxu0 0.0
    %2214 = vmatpush1.msra.mxu0 0.0
    %2215 = vmatprep.subr.mxu0 0.0
    %2216 = vmatpush1.msra.mxu0 0.0
    %2217 = vmatprep.mubr.f32.mxu0 0.0
    %2218 = vmatmul.mubr.f32.gmra.mrb[0].mxu0 %v2077
    %v2219 = vpop.f32.mrb[0].mxu0
    %v2220 = vadd.f32 0.0, %v2219
    %v2221 = vpop.f32.mrb[0].mxu0
    %2222 = vdwg.mxu0
    %v2223 = vadd.f32 %v2152, %v2220
    %v2224 = vmul.f32 %v2223, %v32
    %v2225 = vtanh.pop %v2224
    %v2226 = vmul.f32 %v2225, %v32
    %v2227 = vadd.f32 %v2226, %v33
    %v2228 = vmul.f32 %v2227, %v2067
    %2230 = vrot.lane.b32.xlu0 %v2227, 64
    %v2231 = vpop.permute.xlu0 %2230
    %v2233 = vmul.f32 %v2227, %v2231
    %2235 = vrot.lane.b32.xlu0 %v2233, 32
    %v2236 = vpop.permute.xlu0 %2235
    %v2238 = vadd.f32 %v2228, %v2236
    %v2239 = vtanh.pop %v2238
    %2241 = vrot.lane.b32.xlu0 %v2239, 64
    %v2242 = vpop.permute.xlu0 %2241
    %v2244 = vmul.f32 %v2227, %v2242
    %2246 = vrot.lane.b32.xlu0 %v2244, 32
    %v2247 = vpop.permute.xlu0 %2246
    %v2248 = vsel %vm269, %v2247, 0
    %2250 = vmatprep.subr.mxu0 0.0
    %2251 = vmatpush1.msra.mxu0 %v257
    %2252 = vmatprep.subr.mxu0 0.0
    %2253 = vmatpush1.msra.mxu0 %v258
    %2254 = vmatprep.subr.mxu0 0.0
    %2255 = vmatpush1.msra.mxu0 %v259
    %2256 = vmatprep.subr.mxu0 0.0
    %2257 = vmatpush1.msra.mxu0 %v260
    %2258 = vmatprep.subr.mxu0 0.0
    %2259 = vmatpush1.msra.mxu0 0.0
    %2260 = vmatprep.subr.mxu0 0.0
    %2261 = vmatpush1.msra.mxu0 0.0
    %2262 = vmatprep.subr.mxu0 0.0
    %2263 = vmatpush1.msra.mxu0 0.0
    %2264 = vmatprep.subr.mxu0 0.0
    %2265 = vmatpush1.msra.mxu0 0.0
    %2266 = vmatprep.subr.mxu0 0.0
    %2267 = vmatpush1.msra.mxu0 0.0
    %2268 = vmatprep.subr.mxu0 0.0
    %2269 = vmatpush1.msra.mxu0 0.0
    %2270 = vmatprep.subr.mxu0 0.0
    %2271 = vmatpush1.msra.mxu0 0.0
    %2272 = vmatprep.subr.mxu0 0.0
    %2273 = vmatpush1.msra.mxu0 0.0
    %2274 = vmatprep.subr.mxu0 0.0
    %2275 = vmatpush1.msra.mxu0 0.0
    %2276 = vmatprep.subr.mxu0 0.0
    %2277 = vmatpush1.msra.mxu0 0.0
    %2278 = vmatprep.subr.mxu0 0.0
    %2279 = vmatpush1.msra.mxu0 0.0
    %2280 = vmatprep.subr.mxu0 0.0
    %2281 = vmatpush1.msra.mxu0 0.0
    %2282 = vmatprep.subr.mxu0 0.0
    %2283 = vmatpush1.msra.mxu0 0.0
    %2284 = vmatprep.subr.mxu0 0.0
    %2285 = vmatpush1.msra.mxu0 0.0
    %2286 = vmatprep.subr.mxu0 0.0
    %2287 = vmatpush1.msra.mxu0 0.0
    %2288 = vmatprep.subr.mxu0 0.0
    %2289 = vmatpush1.msra.mxu0 0.0
    %2290 = vmatprep.subr.mxu0 0.0
    %2291 = vmatpush1.msra.mxu0 0.0
    %2292 = vmatprep.subr.mxu0 0.0
    %2293 = vmatpush1.msra.mxu0 0.0
    %2294 = vmatprep.subr.mxu0 0.0
    %2295 = vmatpush1.msra.mxu0 0.0
    %2296 = vmatprep.subr.mxu0 0.0
    %2297 = vmatpush1.msra.mxu0 0.0
    %2298 = vmatprep.subr.mxu0 0.0
    %2299 = vmatpush1.msra.mxu0 0.0
    %2300 = vmatprep.subr.mxu0 0.0
    %2301 = vmatpush1.msra.mxu0 0.0
    %2302 = vmatprep.subr.mxu0 0.0
    %2303 = vmatpush1.msra.mxu0 0.0
    %2304 = vmatprep.subr.mxu0 0.0
    %2305 = vmatpush1.msra.mxu0 0.0
    %2306 = vmatprep.subr.mxu0 0.0
    %2307 = vmatpush1.msra.mxu0 0.0
    %2308 = vmatprep.subr.mxu0 0.0
    %2309 = vmatpush1.msra.mxu0 0.0
    %2310 = vmatprep.subr.mxu0 0.0
    %2311 = vmatpush1.msra.mxu0 0.0
    %2312 = vmatprep.subr.mxu0 0.0
    %2313 = vmatpush1.msra.mxu0 0.0
    %2314 = vmatprep.mubr.f32.mxu0 0.0
    %2315 = vmatmul.mubr.f32.gmra.mrb[0].mxu0 %v2248
    %v2316 = vpop.f32.mrb[0].mxu0
    %v2317 = vadd.f32 %v266, %v2316
    %v2318 = vpop.f32.mrb[0].mxu0
    %2319 = vdwg.mxu0
    %s2320 = scalar_lea.vmem [#allocation3], 88
    %2321 = vst [vmem:[%s2320] sm:$0xff] %v2317
    %s2322 = scalar_lea.vmem [#allocation2], 96
    %v2323 = vld [vmem:[%s2322] sm:$0xff]
    %2324 = vmatprep.subr.mxu0 0.0
    %2325 = vmatpush1.msra.mxu0 %v253
    %2326 = vmatprep.subr.mxu0 0.0
    %2327 = vmatpush1.msra.mxu0 %v254
    %2328 = vmatprep.subr.mxu0 0.0
    %2329 = vmatpush1.msra.mxu0 %v255
    %2330 = vmatprep.subr.mxu0 0.0
    %2331 = vmatpush1.msra.mxu0 %v256
    %2332 = vmatprep.subr.mxu0 0.0
    %2333 = vmatpush1.msra.mxu0 0.0
    %2334 = vmatprep.subr.mxu0 0.0
    %2335 = vmatpush1.msra.mxu0 0.0
    %2336 = vmatprep.subr.mxu0 0.0
    %2337 = vmatpush1.msra.mxu0 0.0
    %2338 = vmatprep.subr.mxu0 0.0
    %2339 = vmatpush1.msra.mxu0 0.0
    %2340 = vmatprep.subr.mxu0 0.0
    %2341 = vmatpush1.msra.mxu0 0.0
    %2342 = vmatprep.subr.mxu0 0.0
    %2343 = vmatpush1.msra.mxu0 0.0
    %2344 = vmatprep.subr.mxu0 0.0
    %2345 = vmatpush1.msra.mxu0 0.0
    %2346 = vmatprep.subr.mxu0 0.0
    %2347 = vmatpush1.msra.mxu0 0.0
    %2348 = vmatprep.subr.mxu0 0.0
    %2349 = vmatpush1.msra.mxu0 0.0
    %2350 = vmatprep.subr.mxu0 0.0
    %2351 = vmatpush1.msra.mxu0 0.0
    %2352 = vmatprep.subr.mxu0 0.0
    %2353 = vmatpush1.msra.mxu0 0.0
    %2354 = vmatprep.subr.mxu0 0.0
    %2355 = vmatpush1.msra.mxu0 0.0
    %2356 = vmatprep.subr.mxu0 0.0
    %2357 = vmatpush1.msra.mxu0 0.0
    %2358 = vmatprep.subr.mxu0 0.0
    %2359 = vmatpush1.msra.mxu0 0.0
    %2360 = vmatprep.subr.mxu0 0.0
    %2361 = vmatpush1.msra.mxu0 0.0
    %2362 = vmatprep.subr.mxu0 0.0
    %2363 = vmatpush1.msra.mxu0 0.0
    %2364 = vmatprep.subr.mxu0 0.0
    %2365 = vmatpush1.msra.mxu0 0.0
    %2366 = vmatprep.subr.mxu0 0.0
    %2367 = vmatpush1.msra.mxu0 0.0
    %2368 = vmatprep.subr.mxu0 0.0
    %2369 = vmatpush1.msra.mxu0 0.0
    %2370 = vmatprep.subr.mxu0 0.0
    %2371 = vmatpush1.msra.mxu0 0.0
    %2372 = vmatprep.subr.mxu0 0.0
    %2373 = vmatpush1.msra.mxu0 0.0
    %2374 = vmatprep.subr.mxu0 0.0
    %2375 = vmatpush1.msra.mxu0 0.0
    %2376 = vmatprep.subr.mxu0 0.0
    %2377 = vmatpush1.msra.mxu0 0.0
    %2378 = vmatprep.subr.mxu0 0.0
    %2379 = vmatpush1.msra.mxu0 0.0
    %2380 = vmatprep.subr.mxu0 0.0
    %2381 = vmatpush1.msra.mxu0 0.0
    %2382 = vmatprep.subr.mxu0 0.0
    %2383 = vmatpush1.msra.mxu0 0.0
    %2384 = vmatprep.subr.mxu0 0.0
    %2385 = vmatpush1.msra.mxu0 0.0
    %2386 = vmatprep.subr.mxu0 0.0
    %2387 = vmatpush1.msra.mxu0 0.0
    %2388 = vmatprep.mubr.f32.mxu0 0.0
    %2389 = vmatmul.mubr.f32.gmra.mrb[0].mxu0 %v2248
    %v2390 = vpop.f32.mrb[0].mxu0
    %v2391 = vadd.f32 0.0, %v2390
    %v2392 = vpop.f32.mrb[0].mxu0
    %2393 = vdwg.mxu0
    %v2394 = vadd.f32 %v2323, %v2391
    %v2395 = vmul.f32 %v2394, %v32
    %v2396 = vtanh.pop %v2395
    %v2397 = vmul.f32 %v2396, %v32
    %v2398 = vadd.f32 %v2397, %v33
    %v2399 = vmul.f32 %v2398, %v2238
    %2401 = vrot.lane.b32.xlu0 %v2398, 64
    %v2402 = vpop.permute.xlu0 %2401
    %v2404 = vmul.f32 %v2398, %v2402
    %2406 = vrot.lane.b32.xlu0 %v2404, 32
    %v2407 = vpop.permute.xlu0 %2406
    %v2409 = vadd.f32 %v2399, %v2407
    %v2410 = vtanh.pop %v2409
    %2412 = vrot.lane.b32.xlu0 %v2410, 64
    %v2413 = vpop.permute.xlu0 %2412
    %v2415 = vmul.f32 %v2398, %v2413
    %2417 = vrot.lane.b32.xlu0 %v2415, 32
    %v2418 = vpop.permute.xlu0 %2417
    %v2419 = vsel %vm269, %v2418, 0
    %2421 = vmatprep.subr.mxu0 0.0
    %2422 = vmatpush1.msra.mxu0 %v257
    %2423 = vmatprep.subr.mxu0 0.0
    %2424 = vmatpush1.msra.mxu0 %v258
    %2425 = vmatprep.subr.mxu0 0.0
    %2426 = vmatpush1.msra.mxu0 %v259
    %2427 = vmatprep.subr.mxu0 0.0
    %2428 = vmatpush1.msra.mxu0 %v260
    %2429 = vmatprep.subr.mxu0 0.0
    %2430 = vmatpush1.msra.mxu0 0.0
    %2431 = vmatprep.subr.mxu0 0.0
    %2432 = vmatpush1.msra.mxu0 0.0
    %2433 = vmatprep.subr.mxu0 0.0
    %2434 = vmatpush1.msra.mxu0 0.0
    %2435 = vmatprep.subr.mxu0 0.0
    %2436 = vmatpush1.msra.mxu0 0.0
    %2437 = vmatprep.subr.mxu0 0.0
    %2438 = vmatpush1.msra.mxu0 0.0
    %2439 = vmatprep.subr.mxu0 0.0
    %2440 = vmatpush1.msra.mxu0 0.0
    %2441 = vmatprep.subr.mxu0 0.0
    %2442 = vmatpush1.msra.mxu0 0.0
    %2443 = vmatprep.subr.mxu0 0.0
    %2444 = vmatpush1.msra.mxu0 0.0
    %2445 = vmatprep.subr.mxu0 0.0
    %2446 = vmatpush1.msra.mxu0 0.0
    %2447 = vmatprep.subr.mxu0 0.0
    %2448 = vmatpush1.msra.mxu0 0.0
    %2449 = vmatprep.subr.mxu0 0.0
    %2450 = vmatpush1.msra.mxu0 0.0
    %2451 = vmatprep.subr.mxu0 0.0
    %2452 = vmatpush1.msra.mxu0 0.0
    %2453 = vmatprep.subr.mxu0 0.0
    %2454 = vmatpush1.msra.mxu0 0.0
    %2455 = vmatprep.subr.mxu0 0.0
    %2456 = vmatpush1.msra.mxu0 0.0
    %2457 = vmatprep.subr.mxu0 0.0
    %2458 = vmatpush1.msra.mxu0 0.0
    %2459 = vmatprep.subr.mxu0 0.0
    %2460 = vmatpush1.msra.mxu0 0.0
    %2461 = vmatprep.subr.mxu0 0.0
    %2462 = vmatpush1.msra.mxu0 0.0
    %2463 = vmatprep.subr.mxu0 0.0
    %2464 = vmatpush1.msra.mxu0 0.0
    %2465 = vmatprep.subr.mxu0 0.0
    %2466 = vmatpush1.msra.mxu0 0.0
    %2467 = vmatprep.subr.mxu0 0.0
    %2468 = vmatpush1.msra.mxu0 0.0
    %2469 = vmatprep.subr.mxu0 0.0
    %2470 = vmatpush1.msra.mxu0 0.0
    %2471 = vmatprep.subr.mxu0 0.0
    %2472 = vmatpush1.msra.mxu0 0.0
    %2473 = vmatprep.subr.mxu0 0.0
    %2474 = vmatpush1.msra.mxu0 0.0
    %2475 = vmatprep.subr.mxu0 0.0
    %2476 = vmatpush1.msra.mxu0 0.0
    %2477 = vmatprep.subr.mxu0 0.0
    %2478 = vmatpush1.msra.mxu0 0.0
    %2479 = vmatprep.subr.mxu0 0.0
    %2480 = vmatpush1.msra.mxu0 0.0
    %2481 = vmatprep.subr.mxu0 0.0
    %2482 = vmatpush1.msra.mxu0 0.0
    %2483 = vmatprep.subr.mxu0 0.0
    %2484 = vmatpush1.msra.mxu0 0.0
    %2485 = vmatprep.mubr.f32.mxu0 0.0
    %2486 = vmatmul.mubr.f32.gmra.mrb[0].mxu0 %v2419
    %v2487 = vpop.f32.mrb[0].mxu0
    %v2488 = vadd.f32 %v266, %v2487
    %v2489 = vpop.f32.mrb[0].mxu0
    %2490 = vdwg.mxu0
    %s2491 = scalar_lea.vmem [#allocation3], 96
    %2492 = vst [vmem:[%s2491] sm:$0xff] %v2488
    %s2493 = scalar_lea.vmem [#allocation2], 104
    %v2494 = vld [vmem:[%s2493] sm:$0xff]
    %2495 = vmatprep.subr.mxu0 0.0
    %2496 = vmatpush1.msra.mxu0 %v253
    %2497 = vmatprep.subr.mxu0 0.0
    %2498 = vmatpush1.msra.mxu0 %v254
    %2499 = vmatprep.subr.mxu0 0.0
    %2500 = vmatpush1.msra.mxu0 %v255
    %2501 = vmatprep.subr.mxu0 0.0
    %2502 = vmatpush1.msra.mxu0 %v256
    %2503 = vmatprep.subr.mxu0 0.0
    %2504 = vmatpush1.msra.mxu0 0.0
    %2505 = vmatprep.subr.mxu0 0.0
    %2506 = vmatpush1.msra.mxu0 0.0
    %2507 = vmatprep.subr.mxu0 0.0
    %2508 = vmatpush1.msra.mxu0 0.0
    %2509 = vmatprep.subr.mxu0 0.0
    %2510 = vmatpush1.msra.mxu0 0.0
    %2511 = vmatprep.subr.mxu0 0.0
    %2512 = vmatpush1.msra.mxu0 0.0
    %2513 = vmatprep.subr.mxu0 0.0
    %2514 = vmatpush1.msra.mxu0 0.0
    %2515 = vmatprep.subr.mxu0 0.0
    %2516 = vmatpush1.msra.mxu0 0.0
    %2517 = vmatprep.subr.mxu0 0.0
    %2518 = vmatpush1.msra.mxu0 0.0
    %2519 = vmatprep.subr.mxu0 0.0
    %2520 = vmatpush1.msra.mxu0 0.0
    %2521 = vmatprep.subr.mxu0 0.0
    %2522 = vmatpush1.msra.mxu0 0.0
    %2523 = vmatprep.subr.mxu0 0.0
    %2524 = vmatpush1.msra.mxu0 0.0
    %2525 = vmatprep.subr.mxu0 0.0
    %2526 = vmatpush1.msra.mxu0 0.0
    %2527 = vmatprep.subr.mxu0 0.0
    %2528 = vmatpush1.msra.mxu0 0.0
    %2529 = vmatprep.subr.mxu0 0.0
    %2530 = vmatpush1.msra.mxu0 0.0
    %2531 = vmatprep.subr.mxu0 0.0
    %2532 = vmatpush1.msra.mxu0 0.0
    %2533 = vmatprep.subr.mxu0 0.0
    %2534 = vmatpush1.msra.mxu0 0.0
    %2535 = vmatprep.subr.mxu0 0.0
    %2536 = vmatpush1.msra.mxu0 0.0
    %2537 = vmatprep.subr.mxu0 0.0
    %2538 = vmatpush1.msra.mxu0 0.0
    %2539 = vmatprep.subr.mxu0 0.0
    %2540 = vmatpush1.msra.mxu0 0.0
    %2541 = vmatprep.subr.mxu0 0.0
    %2542 = vmatpush1.msra.mxu0 0.0
    %2543 = vmatprep.subr.mxu0 0.0
    %2544 = vmatpush1.msra.mxu0 0.0
    %2545 = vmatprep.subr.mxu0 0.0
    %2546 = vmatpush1.msra.mxu0 0.0
    %2547 = vmatprep.subr.mxu0 0.0
    %2548 = vmatpush1.msra.mxu0 0.0
    %2549 = vmatprep.subr.mxu0 0.0
    %2550 = vmatpush1.msra.mxu0 0.0
    %2551 = vmatprep.subr.mxu0 0.0
    %2552 = vmatpush1.msra.mxu0 0.0
    %2553 = vmatprep.subr.mxu0 0.0
    %2554 = vmatpush1.msra.mxu0 0.0
    %2555 = vmatprep.subr.mxu0 0.0
    %2556 = vmatpush1.msra.mxu0 0.0
    %2557 = vmatprep.subr.mxu0 0.0
    %2558 = vmatpush1.msra.mxu0 0.0
    %2559 = vmatprep.mubr.f32.mxu0 0.0
    %2560 = vmatmul.mubr.f32.gmra.mrb[0].mxu0 %v2419
    %v2561 = vpop.f32.mrb[0].mxu0
    %v2562 = vadd.f32 0.0, %v2561
    %v2563 = vpop.f32.mrb[0].mxu0
    %2564 = vdwg.mxu0
    %v2565 = vadd.f32 %v2494, %v2562
    %v2566 = vmul.f32 %v2565, %v32
    %v2567 = vtanh.pop %v2566
    %v2568 = vmul.f32 %v2567, %v32
    %v2569 = vadd.f32 %v2568, %v33
    %v2570 = vmul.f32 %v2569, %v2409
    %2572 = vrot.lane.b32.xlu0 %v2569, 64
    %v2573 = vpop.permute.xlu0 %2572
    %v2575 = vmul.f32 %v2569, %v2573
    %2577 = vrot.lane.b32.xlu0 %v2575, 32
    %v2578 = vpop.permute.xlu0 %2577
    %v2580 = vadd.f32 %v2570, %v2578
    %v2581 = vtanh.pop %v2580
    %2583 = vrot.lane.b32.xlu0 %v2581, 64
    %v2584 = vpop.permute.xlu0 %2583
    %v2586 = vmul.f32 %v2569, %v2584
    %2588 = vrot.lane.b32.xlu0 %v2586, 32
    %v2589 = vpop.permute.xlu0 %2588
    %v2590 = vsel %vm269, %v2589, 0
    %2592 = vmatprep.subr.mxu0 0.0
    %2593 = vmatpush1.msra.mxu0 %v257
    %2594 = vmatprep.subr.mxu0 0.0
    %2595 = vmatpush1.msra.mxu0 %v258
    %2596 = vmatprep.subr.mxu0 0.0
    %2597 = vmatpush1.msra.mxu0 %v259
    %2598 = vmatprep.subr.mxu0 0.0
    %2599 = vmatpush1.msra.mxu0 %v260
    %2600 = vmatprep.subr.mxu0 0.0
    %2601 = vmatpush1.msra.mxu0 0.0
    %2602 = vmatprep.subr.mxu0 0.0
    %2603 = vmatpush1.msra.mxu0 0.0
    %2604 = vmatprep.subr.mxu0 0.0
    %2605 = vmatpush1.msra.mxu0 0.0
    %2606 = vmatprep.subr.mxu0 0.0
    %2607 = vmatpush1.msra.mxu0 0.0
    %2608 = vmatprep.subr.mxu0 0.0
    %2609 = vmatpush1.msra.mxu0 0.0
    %2610 = vmatprep.subr.mxu0 0.0
    %2611 = vmatpush1.msra.mxu0 0.0
    %2612 = vmatprep.subr.mxu0 0.0
    %2613 = vmatpush1.msra.mxu0 0.0
    %2614 = vmatprep.subr.mxu0 0.0
    %2615 = vmatpush1.msra.mxu0 0.0
    %2616 = vmatprep.subr.mxu0 0.0
    %2617 = vmatpush1.msra.mxu0 0.0
    %2618 = vmatprep.subr.mxu0 0.0
    %2619 = vmatpush1.msra.mxu0 0.0
    %2620 = vmatprep.subr.mxu0 0.0
    %2621 = vmatpush1.msra.mxu0 0.0
    %2622 = vmatprep.subr.mxu0 0.0
    %2623 = vmatpush1.msra.mxu0 0.0
    %2624 = vmatprep.subr.mxu0 0.0
    %2625 = vmatpush1.msra.mxu0 0.0
    %2626 = vmatprep.subr.mxu0 0.0
    %2627 = vmatpush1.msra.mxu0 0.0
    %2628 = vmatprep.subr.mxu0 0.0
    %2629 = vmatpush1.msra.mxu0 0.0
    %2630 = vmatprep.subr.mxu0 0.0
    %2631 = vmatpush1.msra.mxu0 0.0
    %2632 = vmatprep.subr.mxu0 0.0
    %2633 = vmatpush1.msra.mxu0 0.0
    %2634 = vmatprep.subr.mxu0 0.0
    %2635 = vmatpush1.msra.mxu0 0.0
    %2636 = vmatprep.subr.mxu0 0.0
    %2637 = vmatpush1.msra.mxu0 0.0
    %2638 = vmatprep.subr.mxu0 0.0
    %2639 = vmatpush1.msra.mxu0 0.0
    %2640 = vmatprep.subr.mxu0 0.0
    %2641 = vmatpush1.msra.mxu0 0.0
    %2642 = vmatprep.subr.mxu0 0.0
    %2643 = vmatpush1.msra.mxu0 0.0
    %2644 = vmatprep.subr.mxu0 0.0
    %2645 = vmatpush1.msra.mxu0 0.0
    %2646 = vmatprep.subr.mxu0 0.0
    %2647 = vmatpush1.msra.mxu0 0.0
    %2648 = vmatprep.subr.mxu0 0.0
    %2649 = vmatpush1.msra.mxu0 0.0
    %2650 = vmatprep.subr.mxu0 0.0
    %2651 = vmatpush1.msra.mxu0 0.0
    %2652 = vmatprep.subr.mxu0 0.0
    %2653 = vmatpush1.msra.mxu0 0.0
    %2654 = vmatprep.subr.mxu0 0.0
    %2655 = vmatpush1.msra.mxu0 0.0
    %2656 = vmatprep.mubr.f32.mxu0 0.0
    %2657 = vmatmul.mubr.f32.gmra.mrb[0].mxu0 %v2590
    %v2658 = vpop.f32.mrb[0].mxu0
    %v2659 = vadd.f32 %v266, %v2658
    %v2660 = vpop.f32.mrb[0].mxu0
    %2661 = vdwg.mxu0
    %s2662 = scalar_lea.vmem [#allocation3], 104
    %2663 = vst [vmem:[%s2662] sm:$0xff] %v2659
    %v2664 = vld [vmem:[%s6] sm:$0xff]
    %v2665 = vld [vmem:[%s6 + $0x8] sm:$0xff]
    %v2666 = vld [vmem:[%s6 + $0x10] sm:$0xff]
    %v2667 = vld [vmem:[%s6 + $0x18] sm:$0xff]
    %v2668 = vld [vmem:[#allocation3] sm:$0xff]
    %2669 = vmatprep.subr.mxu0 0.0
    %2670 = vmatpush1.msra.mxu0 %v2664
    %2671 = vmatprep.subr.mxu0 0.0
    %2672 = vmatpush1.msra.mxu0 %v2665
    %2673 = vmatprep.subr.mxu0 0.0
    %2674 = vmatpush1.msra.mxu0 %v2666
    %2675 = vmatprep.subr.mxu0 0.0
    %2676 = vmatpush1.msra.mxu0 %v2667
    %2677 = vmatprep.subr.mxu0 0.0
    %2678 = vmatpush1.msra.mxu0 0.0
    %2679 = vmatprep.subr.mxu0 0.0
    %2680 = vmatpush1.msra.mxu0 0.0
    %2681 = vmatprep.subr.mxu0 0.0
    %2682 = vmatpush1.msra.mxu0 0.0
    %2683 = vmatprep.subr.mxu0 0.0
    %2684 = vmatpush1.msra.mxu0 0.0
    %2685 = vmatprep.subr.mxu0 0.0
    %2686 = vmatpush1.msra.mxu0 0.0
    %2687 = vmatprep.subr.mxu0 0.0
    %2688 = vmatpush1.msra.mxu0 0.0
    %2689 = vmatprep.subr.mxu0 0.0
    %2690 = vmatpush1.msra.mxu0 0.0
    %2691 = vmatprep.subr.mxu0 0.0
    %2692 = vmatpush1.msra.mxu0 0.0
    %2693 = vmatprep.subr.mxu0 0.0
    %2694 = vmatpush1.msra.mxu0 0.0
    %2695 = vmatprep.subr.mxu0 0.0
    %2696 = vmatpush1.msra.mxu0 0.0
    %2697 = vmatprep.subr.mxu0 0.0
    %2698 = vmatpush1.msra.mxu0 0.0
    %2699 = vmatprep.subr.mxu0 0.0
    %2700 = vmatpush1.msra.mxu0 0.0
    %2701 = vmatprep.subr.mxu0 0.0
    %2702 = vmatpush1.msra.mxu0 0.0
    %2703 = vmatprep.subr.mxu0 0.0
    %2704 = vmatpush1.msra.mxu0 0.0
    %2705 = vmatprep.subr.mxu0 0.0
    %2706 = vmatpush1.msra.mxu0 0.0
    %2707 = vmatprep.subr.mxu0 0.0
    %2708 = vmatpush1.msra.mxu0 0.0
    %2709 = vmatprep.subr.mxu0 0.0
    %2710 = vmatpush1.msra.mxu0 0.0
    %2711 = vmatprep.subr.mxu0 0.0
    %2712 = vmatpush1.msra.mxu0 0.0
    %2713 = vmatprep.subr.mxu0 0.0
    %2714 = vmatpush1.msra.mxu0 0.0
    %2715 = vmatprep.subr.mxu0 0.0
    %2716 = vmatpush1.msra.mxu0 0.0
    %2717 = vmatprep.subr.mxu0 0.0
    %2718 = vmatpush1.msra.mxu0 0.0
    %2719 = vmatprep.subr.mxu0 0.0
    %2720 = vmatpush1.msra.mxu0 0.0
    %2721 = vmatprep.subr.mxu0 0.0
    %2722 = vmatpush1.msra.mxu0 0.0
    %2723 = vmatprep.subr.mxu0 0.0
    %2724 = vmatpush1.msra.mxu0 0.0
    %2725 = vmatprep.subr.mxu0 0.0
    %2726 = vmatpush1.msra.mxu0 0.0
    %2727 = vmatprep.subr.mxu0 0.0
    %2728 = vmatpush1.msra.mxu0 0.0
    %2729 = vmatprep.subr.mxu0 0.0
    %2730 = vmatpush1.msra.mxu0 0.0
    %2731 = vmatprep.subr.mxu0 0.0
    %2732 = vmatpush1.msra.mxu0 0.0
    %2733 = vmatprep.mubr.f32.mxu0 0.0
    %2734 = vmatmul.mubr.f32.gmra.mrb[0].mxu0 %v271
    %v2735 = vpop.f32.mrb[0].mxu0
    %v2736 = vadd.f32 0.0, %v2735
    %v2737 = vpop.f32.mrb[0].mxu0
    %2738 = vdwg.mxu0
    %v2739 = vadd.f32 %v2668, %v2736
    %v2740 = vmul.f32 %v2739, %v32
    %v2741 = vtanh.pop %v2740
    %v2742 = vmul.f32 %v2741, %v32
    %v2743 = vadd.f32 %v2742, %v33
    %v2744 = vmul.f32 %v2743, 0.0
    %2746 = vrot.lane.b32.xlu0 %v2743, 64
    %v2747 = vpop.permute.xlu0 %2746
    %v2749 = vmul.f32 %v2743, %v2747
    %2751 = vrot.lane.b32.xlu0 %v2749, 32
    %v2752 = vpop.permute.xlu0 %2751
    %v2754 = vadd.f32 %v2744, %v2752
    %v2755 = vtanh.pop %v2754
    %2757 = vrot.lane.b32.xlu0 %v2755, 64
    %v2758 = vpop.permute.xlu0 %2757
    %v2760 = vmul.f32 %v2743, %v2758
    %v2761 = vld [vmem:[%s610] sm:$0xff]
    %2763 = vrot.lane.b32.xlu0 %v2760, 32
    %v2764 = vpop.permute.xlu0 %2763
    %v2765 = vsel %vm269, %v2764, 0
    %2767 = vmatprep.subr.mxu0 0.0
    %2768 = vmatpush1.msra.mxu0 %v2664
    %2769 = vmatprep.subr.mxu0 0.0
    %2770 = vmatpush1.msra.mxu0 %v2665
    %2771 = vmatprep.subr.mxu0 0.0
    %2772 = vmatpush1.msra.mxu0 %v2666
    %2773 = vmatprep.subr.mxu0 0.0
    %2774 = vmatpush1.msra.mxu0 %v2667
    %2775 = vmatprep.subr.mxu0 0.0
    %2776 = vmatpush1.msra.mxu0 0.0
    %2777 = vmatprep.subr.mxu0 0.0
    %2778 = vmatpush1.msra.mxu0 0.0
    %2779 = vmatprep.subr.mxu0 0.0
    %2780 = vmatpush1.msra.mxu0 0.0
    %2781 = vmatprep.subr.mxu0 0.0
    %2782 = vmatpush1.msra.mxu0 0.0
    %2783 = vmatprep.subr.mxu0 0.0
    %2784 = vmatpush1.msra.mxu0 0.0
    %2785 = vmatprep.subr.mxu0 0.0
    %2786 = vmatpush1.msra.mxu0 0.0
    %2787 = vmatprep.subr.mxu0 0.0
    %2788 = vmatpush1.msra.mxu0 0.0
    %2789 = vmatprep.subr.mxu0 0.0
    %2790 = vmatpush1.msra.mxu0 0.0
    %2791 = vmatprep.subr.mxu0 0.0
    %2792 = vmatpush1.msra.mxu0 0.0
    %2793 = vmatprep.subr.mxu0 0.0
    %2794 = vmatpush1.msra.mxu0 0.0
    %2795 = vmatprep.subr.mxu0 0.0
    %2796 = vmatpush1.msra.mxu0 0.0
    %2797 = vmatprep.subr.mxu0 0.0
    %2798 = vmatpush1.msra.mxu0 0.0
    %2799 = vmatprep.subr.mxu0 0.0
    %2800 = vmatpush1.msra.mxu0 0.0
    %2801 = vmatprep.subr.mxu0 0.0
    %2802 = vmatpush1.msra.mxu0 0.0
    %2803 = vmatprep.subr.mxu0 0.0
    %2804 = vmatpush1.msra.mxu0 0.0
    %2805 = vmatprep.subr.mxu0 0.0
    %2806 = vmatpush1.msra.mxu0 0.0
    %2807 = vmatprep.subr.mxu0 0.0
    %2808 = vmatpush1.msra.mxu0 0.0
    %2809 = vmatprep.subr.mxu0 0.0
    %2810 = vmatpush1.msra.mxu0 0.0
    %2811 = vmatprep.subr.mxu0 0.0
    %2812 = vmatpush1.msra.mxu0 0.0
    %2813 = vmatprep.subr.mxu0 0.0
    %2814 = vmatpush1.msra.mxu0 0.0
    %2815 = vmatprep.subr.mxu0 0.0
    %2816 = vmatpush1.msra.mxu0 0.0
    %2817 = vmatprep.subr.mxu0 0.0
    %2818 = vmatpush1.msra.mxu0 0.0
    %2819 = vmatprep.subr.mxu0 0.0
    %2820 = vmatpush1.msra.mxu0 0.0
    %2821 = vmatprep.subr.mxu0 0.0
    %2822 = vmatpush1.msra.mxu0 0.0
    %2823 = vmatprep.subr.mxu0 0.0
    %2824 = vmatpush1.msra.mxu0 0.0
    %2825 = vmatprep.subr.mxu0 0.0
    %2826 = vmatpush1.msra.mxu0 0.0
    %2827 = vmatprep.subr.mxu0 0.0
    %2828 = vmatpush1.msra.mxu0 0.0
    %2829 = vmatprep.subr.mxu0 0.0
    %2830 = vmatpush1.msra.mxu0 0.0
    %2831 = vmatprep.mubr.f32.mxu0 0.0
    %2832 = vmatmul.mubr.f32.gmra.mrb[0].mxu0 %v2765
    %v2833 = vpop.f32.mrb[0].mxu0
    %v2834 = vadd.f32 0.0, %v2833
    %v2835 = vpop.f32.mrb[0].mxu0
    %2836 = vdwg.mxu0
    %v2837 = vadd.f32 %v2761, %v2834
    %v2838 = vmul.f32 %v2837, %v32
    %v2839 = vtanh.pop %v2838
    %v2840 = vmul.f32 %v2839, %v32
    %v2841 = vadd.f32 %v2840, %v33
    %v2842 = vmul.f32 %v2841, %v2754
    %2844 = vrot.lane.b32.xlu0 %v2841, 64
    %v2845 = vpop.permute.xlu0 %2844
    %v2847 = vmul.f32 %v2841, %v2845
    %2849 = vrot.lane.b32.xlu0 %v2847, 32
    %v2850 = vpop.permute.xlu0 %2849
    %v2852 = vadd.f32 %v2842, %v2850
    %v2853 = vtanh.pop %v2852
    %2855 = vrot.lane.b32.xlu0 %v2853, 64
    %v2856 = vpop.permute.xlu0 %2855
    %v2858 = vmul.f32 %v2841, %v2856
    %v2859 = vld [vmem:[%s781] sm:$0xff]
    %2861 = vrot.lane.b32.xlu0 %v2858, 32
    %v2862 = vpop.permute.xlu0 %2861
    %v2863 = vsel %vm269, %v2862, 0
    %2865 = vmatprep.subr.mxu0 0.0
    %2866 = vmatpush1.msra.mxu0 %v2664
    %2867 = vmatprep.subr.mxu0 0.0
    %2868 = vmatpush1.msra.mxu0 %v2665
    %2869 = vmatprep.subr.mxu0 0.0
    %2870 = vmatpush1.msra.mxu0 %v2666
    %2871 = vmatprep.subr.mxu0 0.0
    %2872 = vmatpush1.msra.mxu0 %v2667
    %2873 = vmatprep.subr.mxu0 0.0
    %2874 = vmatpush1.msra.mxu0 0.0
    %2875 = vmatprep.subr.mxu0 0.0
    %2876 = vmatpush1.msra.mxu0 0.0
    %2877 = vmatprep.subr.mxu0 0.0
    %2878 = vmatpush1.msra.mxu0 0.0
    %2879 = vmatprep.subr.mxu0 0.0
    %2880 = vmatpush1.msra.mxu0 0.0
    %2881 = vmatprep.subr.mxu0 0.0
    %2882 = vmatpush1.msra.mxu0 0.0
    %2883 = vmatprep.subr.mxu0 0.0
    %2884 = vmatpush1.msra.mxu0 0.0
    %2885 = vmatprep.subr.mxu0 0.0
    %2886 = vmatpush1.msra.mxu0 0.0
    %2887 = vmatprep.subr.mxu0 0.0
    %2888 = vmatpush1.msra.mxu0 0.0
    %2889 = vmatprep.subr.mxu0 0.0
    %2890 = vmatpush1.msra.mxu0 0.0
    %2891 = vmatprep.subr.mxu0 0.0
    %2892 = vmatpush1.msra.mxu0 0.0
    %2893 = vmatprep.subr.mxu0 0.0
    %2894 = vmatpush1.msra.mxu0 0.0
    %2895 = vmatprep.subr.mxu0 0.0
    %2896 = vmatpush1.msra.mxu0 0.0
    %2897 = vmatprep.subr.mxu0 0.0
    %2898 = vmatpush1.msra.mxu0 0.0
    %2899 = vmatprep.subr.mxu0 0.0
    %2900 = vmatpush1.msra.mxu0 0.0
    %2901 = vmatprep.subr.mxu0 0.0
    %2902 = vmatpush1.msra.mxu0 0.0
    %2903 = vmatprep.subr.mxu0 0.0
    %2904 = vmatpush1.msra.mxu0 0.0
    %2905 = vmatprep.subr.mxu0 0.0
    %2906 = vmatpush1.msra.mxu0 0.0
    %2907 = vmatprep.subr.mxu0 0.0
    %2908 = vmatpush1.msra.mxu0 0.0
    %2909 = vmatprep.subr.mxu0 0.0
    %2910 = vmatpush1.msra.mxu0 0.0
    %2911 = vmatprep.subr.mxu0 0.0
    %2912 = vmatpush1.msra.mxu0 0.0
    %2913 = vmatprep.subr.mxu0 0.0
    %2914 = vmatpush1.msra.mxu0 0.0
    %2915 = vmatprep.subr.mxu0 0.0
    %2916 = vmatpush1.msra.mxu0 0.0
    %2917 = vmatprep.subr.mxu0 0.0
    %2918 = vmatpush1.msra.mxu0 0.0
    %2919 = vmatprep.subr.mxu0 0.0
    %2920 = vmatpush1.msra.mxu0 0.0
    %2921 = vmatprep.subr.mxu0 0.0
    %2922 = vmatpush1.msra.mxu0 0.0
    %2923 = vmatprep.subr.mxu0 0.0
    %2924 = vmatpush1.msra.mxu0 0.0
    %2925 = vmatprep.subr.mxu0 0.0
    %2926 = vmatpush1.msra.mxu0 0.0
    %2927 = vmatprep.subr.mxu0 0.0
    %2928 = vmatpush1.msra.mxu0 0.0
    %2929 = vmatprep.mubr.f32.mxu0 0.0
    %2930 = vmatmul.mubr.f32.gmra.mrb[0].mxu0 %v2863
    %v2931 = vpop.f32.mrb[0].mxu0
    %v2932 = vadd.f32 0.0, %v2931
    %v2933 = vpop.f32.mrb[0].mxu0
    %2934 = vdwg.mxu0
    %v2935 = vadd.f32 %v2859, %v2932
    %v2936 = vmul.f32 %v2935, %v32
    %v2937 = vtanh.pop %v2936
    %v2938 = vmul.f32 %v2937, %v32
    %v2939 = vadd.f32 %v2938, %v33
    %v2940 = vmul.f32 %v2939, %v2852
    %2942 = vrot.lane.b32.xlu0 %v2939, 64
    %v2943 = vpop.permute.xlu0 %2942
    %v2945 = vmul.f32 %v2939, %v2943
    %2947 = vrot.lane.b32.xlu0 %v2945, 32
    %v2948 = vpop.permute.xlu0 %2947
    %v2950 = vadd.f32 %v2940, %v2948
    %v2951 = vtanh.pop %v2950
    %2953 = vrot.lane.b32.xlu0 %v2951, 64
    %v2954 = vpop.permute.xlu0 %2953
    %v2956 = vmul.f32 %v2939, %v2954
    %v2957 = vld [vmem:[%s952] sm:$0xff]
    %2959 = vrot.lane.b32.xlu0 %v2956, 32
    %v2960 = vpop.permute.xlu0 %2959
    %v2961 = vsel %vm269, %v2960, 0
    %2963 = vmatprep.subr.mxu0 0.0
    %2964 = vmatpush1.msra.mxu0 %v2664
    %2965 = vmatprep.subr.mxu0 0.0
    %2966 = vmatpush1.msra.mxu0 %v2665
    %2967 = vmatprep.subr.mxu0 0.0
    %2968 = vmatpush1.msra.mxu0 %v2666
    %2969 = vmatprep.subr.mxu0 0.0
    %2970 = vmatpush1.msra.mxu0 %v2667
    %2971 = vmatprep.subr.mxu0 0.0
    %2972 = vmatpush1.msra.mxu0 0.0
    %2973 = vmatprep.subr.mxu0 0.0
    %2974 = vmatpush1.msra.mxu0 0.0
    %2975 = vmatprep.subr.mxu0 0.0
    %2976 = vmatpush1.msra.mxu0 0.0
    %2977 = vmatprep.subr.mxu0 0.0
    %2978 = vmatpush1.msra.mxu0 0.0
    %2979 = vmatprep.subr.mxu0 0.0
    %2980 = vmatpush1.msra.mxu0 0.0
    %2981 = vmatprep.subr.mxu0 0.0
    %2982 = vmatpush1.msra.mxu0 0.0
    %2983 = vmatprep.subr.mxu0 0.0
    %2984 = vmatpush1.msra.mxu0 0.0
    %2985 = vmatprep.subr.mxu0 0.0
    %2986 = vmatpush1.msra.mxu0 0.0
    %2987 = vmatprep.subr.mxu0 0.0
    %2988 = vmatpush1.msra.mxu0 0.0
    %2989 = vmatprep.subr.mxu0 0.0
    %2990 = vmatpush1.msra.mxu0 0.0
    %2991 = vmatprep.subr.mxu0 0.0
    %2992 = vmatpush1.msra.mxu0 0.0
    %2993 = vmatprep.subr.mxu0 0.0
    %2994 = vmatpush1.msra.mxu0 0.0
    %2995 = vmatprep.subr.mxu0 0.0
    %2996 = vmatpush1.msra.mxu0 0.0
    %2997 = vmatprep.subr.mxu0 0.0
    %2998 = vmatpush1.msra.mxu0 0.0
    %2999 = vmatprep.subr.mxu0 0.0
    %3000 = vmatpush1.msra.mxu0 0.0
    %3001 = vmatprep.subr.mxu0 0.0
    %3002 = vmatpush1.msra.mxu0 0.0
    %3003 = vmatprep.subr.mxu0 0.0
    %3004 = vmatpush1.msra.mxu0 0.0
    %3005 = vmatprep.subr.mxu0 0.0
    %3006 = vmatpush1.msra.mxu0 0.0
    %3007 = vmatprep.subr.mxu0 0.0
    %3008 = vmatpush1.msra.mxu0 0.0
    %3009 = vmatprep.subr.mxu0 0.0
    %3010 = vmatpush1.msra.mxu0 0.0
    %3011 = vmatprep.subr.mxu0 0.0
    %3012 = vmatpush1.msra.mxu0 0.0
    %3013 = vmatprep.subr.mxu0 0.0
    %3014 = vmatpush1.msra.mxu0 0.0
    %3015 = vmatprep.subr.mxu0 0.0
    %3016 = vmatpush1.msra.mxu0 0.0
    %3017 = vmatprep.subr.mxu0 0.0
    %3018 = vmatpush1.msra.mxu0 0.0
    %3019 = vmatprep.subr.mxu0 0.0
    %3020 = vmatpush1.msra.mxu0 0.0
    %3021 = vmatprep.subr.mxu0 0.0
    %3022 = vmatpush1.msra.mxu0 0.0
    %3023 = vmatprep.subr.mxu0 0.0
    %3024 = vmatpush1.msra.mxu0 0.0
    %3025 = vmatprep.subr.mxu0 0.0
    %3026 = vmatpush1.msra.mxu0 0.0
    %3027 = vmatprep.mubr.f32.mxu0 0.0
    %3028 = vmatmul.mubr.f32.gmra.mrb[0].mxu0 %v2961
    %v3029 = vpop.f32.mrb[0].mxu0
    %v3030 = vadd.f32 0.0, %v3029
    %v3031 = vpop.f32.mrb[0].mxu0
    %3032 = vdwg.mxu0
    %v3033 = vadd.f32 %v2957, %v3030
    %v3034 = vmul.f32 %v3033, %v32
    %v3035 = vtanh.pop %v3034
    %v3036 = vmul.f32 %v3035, %v32
    %v3037 = vadd.f32 %v3036, %v33
    %v3038 = vmul.f32 %v3037, %v2950
    %3040 = vrot.lane.b32.xlu0 %v3037, 64
    %v3041 = vpop.permute.xlu0 %3040
    %v3043 = vmul.f32 %v3037, %v3041
    %3045 = vrot.lane.b32.xlu0 %v3043, 32
    %v3046 = vpop.permute.xlu0 %3045
    %v3048 = vadd.f32 %v3038, %v3046
    %v3049 = vtanh.pop %v3048
    %3051 = vrot.lane.b32.xlu0 %v3049, 64
    %v3052 = vpop.permute.xlu0 %3051
    %v3054 = vmul.f32 %v3037, %v3052
    %v3055 = vld [vmem:[%s1123] sm:$0xff]
    %3057 = vrot.lane.b32.xlu0 %v3054, 32
    %v3058 = vpop.permute.xlu0 %3057
    %v3059 = vsel %vm269, %v3058, 0
    %3061 = vmatprep.subr.mxu0 0.0
    %3062 = vmatpush1.msra.mxu0 %v2664
    %3063 = vmatprep.subr.mxu0 0.0
    %3064 = vmatpush1.msra.mxu0 %v2665
    %3065 = vmatprep.subr.mxu0 0.0
    %3066 = vmatpush1.msra.mxu0 %v2666
    %3067 = vmatprep.subr.mxu0 0.0
    %3068 = vmatpush1.msra.mxu0 %v2667
    %3069 = vmatprep.subr.mxu0 0.0
    %3070 = vmatpush1.msra.mxu0 0.0
    %3071 = vmatprep.subr.mxu0 0.0
    %3072 = vmatpush1.msra.mxu0 0.0
    %3073 = vmatprep.subr.mxu0 0.0
    %3074 = vmatpush1.msra.mxu0 0.0
    %3075 = vmatprep.subr.mxu0 0.0
    %3076 = vmatpush1.msra.mxu0 0.0
    %3077 = vmatprep.subr.mxu0 0.0
    %3078 = vmatpush1.msra.mxu0 0.0
    %3079 = vmatprep.subr.mxu0 0.0
    %3080 = vmatpush1.msra.mxu0 0.0
    %3081 = vmatprep.subr.mxu0 0.0
    %3082 = vmatpush1.msra.mxu0 0.0
    %3083 = vmatprep.subr.mxu0 0.0
    %3084 = vmatpush1.msra.mxu0 0.0
    %3085 = vmatprep.subr.mxu0 0.0
    %3086 = vmatpush1.msra.mxu0 0.0
    %3087 = vmatprep.subr.mxu0 0.0
    %3088 = vmatpush1.msra.mxu0 0.0
    %3089 = vmatprep.subr.mxu0 0.0
    %3090 = vmatpush1.msra.mxu0 0.0
    %3091 = vmatprep.subr.mxu0 0.0
    %3092 = vmatpush1.msra.mxu0 0.0
    %3093 = vmatprep.subr.mxu0 0.0
    %3094 = vmatpush1.msra.mxu0 0.0
    %3095 = vmatprep.subr.mxu0 0.0
    %3096 = vmatpush1.msra.mxu0 0.0
    %3097 = vmatprep.subr.mxu0 0.0
    %3098 = vmatpush1.msra.mxu0 0.0
    %3099 = vmatprep.subr.mxu0 0.0
    %3100 = vmatpush1.msra.mxu0 0.0
    %3101 = vmatprep.subr.mxu0 0.0
    %3102 = vmatpush1.msra.mxu0 0.0
    %3103 = vmatprep.subr.mxu0 0.0
    %3104 = vmatpush1.msra.mxu0 0.0
    %3105 = vmatprep.subr.mxu0 0.0
    %3106 = vmatpush1.msra.mxu0 0.0
    %3107 = vmatprep.subr.mxu0 0.0
    %3108 = vmatpush1.msra.mxu0 0.0
    %3109 = vmatprep.subr.mxu0 0.0
    %3110 = vmatpush1.msra.mxu0 0.0
    %3111 = vmatprep.subr.mxu0 0.0
    %3112 = vmatpush1.msra.mxu0 0.0
    %3113 = vmatprep.subr.mxu0 0.0
    %3114 = vmatpush1.msra.mxu0 0.0
    %3115 = vmatprep.subr.mxu0 0.0
    %3116 = vmatpush1.msra.mxu0 0.0
    %3117 = vmatprep.subr.mxu0 0.0
    %3118 = vmatpush1.msra.mxu0 0.0
    %3119 = vmatprep.subr.mxu0 0.0
    %3120 = vmatpush1.msra.mxu0 0.0
    %3121 = vmatprep.subr.mxu0 0.0
    %3122 = vmatpush1.msra.mxu0 0.0
    %3123 = vmatprep.subr.mxu0 0.0
    %3124 = vmatpush1.msra.mxu0 0.0
    %3125 = vmatprep.mubr.f32.mxu0 0.0
    %3126 = vmatmul.mubr.f32.gmra.mrb[0].mxu0 %v3059
    %v3127 = vpop.f32.mrb[0].mxu0
    %v3128 = vadd.f32 0.0, %v3127
    %v3129 = vpop.f32.mrb[0].mxu0
    %3130 = vdwg.mxu0
    %v3131 = vadd.f32 %v3055, %v3128
    %v3132 = vmul.f32 %v3131, %v32
    %v3133 = vtanh.pop %v3132
    %v3134 = vmul.f32 %v3133, %v32
    %v3135 = vadd.f32 %v3134, %v33
    %v3136 = vmul.f32 %v3135, %v3048
    %3138 = vrot.lane.b32.xlu0 %v3135, 64
    %v3139 = vpop.permute.xlu0 %3138
    %v3141 = vmul.f32 %v3135, %v3139
    %3143 = vrot.lane.b32.xlu0 %v3141, 32
    %v3144 = vpop.permute.xlu0 %3143
    %v3146 = vadd.f32 %v3136, %v3144
    %v3147 = vtanh.pop %v3146
    %3149 = vrot.lane.b32.xlu0 %v3147, 64
    %v3150 = vpop.permute.xlu0 %3149
    %v3152 = vmul.f32 %v3135, %v3150
    %v3153 = vld [vmem:[%s1294] sm:$0xff]
    %3155 = vrot.lane.b32.xlu0 %v3152, 32
    %v3156 = vpop.permute.xlu0 %3155
    %v3157 = vsel %vm269, %v3156, 0
    %3159 = vmatprep.subr.mxu0 0.0
    %3160 = vmatpush1.msra.mxu0 %v2664
    %3161 = vmatprep.subr.mxu0 0.0
    %3162 = vmatpush1.msra.mxu0 %v2665
    %3163 = vmatprep.subr.mxu0 0.0
    %3164 = vmatpush1.msra.mxu0 %v2666
    %3165 = vmatprep.subr.mxu0 0.0
    %3166 = vmatpush1.msra.mxu0 %v2667
    %3167 = vmatprep.subr.mxu0 0.0
    %3168 = vmatpush1.msra.mxu0 0.0
    %3169 = vmatprep.subr.mxu0 0.0
    %3170 = vmatpush1.msra.mxu0 0.0
    %3171 = vmatprep.subr.mxu0 0.0
    %3172 = vmatpush1.msra.mxu0 0.0
    %3173 = vmatprep.subr.mxu0 0.0
    %3174 = vmatpush1.msra.mxu0 0.0
    %3175 = vmatprep.subr.mxu0 0.0
    %3176 = vmatpush1.msra.mxu0 0.0
    %3177 = vmatprep.subr.mxu0 0.0
    %3178 = vmatpush1.msra.mxu0 0.0
    %3179 = vmatprep.subr.mxu0 0.0
    %3180 = vmatpush1.msra.mxu0 0.0
    %3181 = vmatprep.subr.mxu0 0.0
    %3182 = vmatpush1.msra.mxu0 0.0
    %3183 = vmatprep.subr.mxu0 0.0
    %3184 = vmatpush1.msra.mxu0 0.0
    %3185 = vmatprep.subr.mxu0 0.0
    %3186 = vmatpush1.msra.mxu0 0.0
    %3187 = vmatprep.subr.mxu0 0.0
    %3188 = vmatpush1.msra.mxu0 0.0
    %3189 = vmatprep.subr.mxu0 0.0
    %3190 = vmatpush1.msra.mxu0 0.0
    %3191 = vmatprep.subr.mxu0 0.0
    %3192 = vmatpush1.msra.mxu0 0.0
    %3193 = vmatprep.subr.mxu0 0.0
    %3194 = vmatpush1.msra.mxu0 0.0
    %3195 = vmatprep.subr.mxu0 0.0
    %3196 = vmatpush1.msra.mxu0 0.0
    %3197 = vmatprep.subr.mxu0 0.0
    %3198 = vmatpush1.msra.mxu0 0.0
    %3199 = vmatprep.subr.mxu0 0.0
    %3200 = vmatpush1.msra.mxu0 0.0
    %3201 = vmatprep.subr.mxu0 0.0
    %3202 = vmatpush1.msra.mxu0 0.0
    %3203 = vmatprep.subr.mxu0 0.0
    %3204 = vmatpush1.msra.mxu0 0.0
    %3205 = vmatprep.subr.mxu0 0.0
    %3206 = vmatpush1.msra.mxu0 0.0
    %3207 = vmatprep.subr.mxu0 0.0
    %3208 = vmatpush1.msra.mxu0 0.0
    %3209 = vmatprep.subr.mxu0 0.0
    %3210 = vmatpush1.msra.mxu0 0.0
    %3211 = vmatprep.subr.mxu0 0.0
    %3212 = vmatpush1.msra.mxu0 0.0
    %3213 = vmatprep.subr.mxu0 0.0
    %3214 = vmatpush1.msra.mxu0 0.0
    %3215 = vmatprep.subr.mxu0 0.0
    %3216 = vmatpush1.msra.mxu0 0.0
    %3217 = vmatprep.subr.mxu0 0.0
    %3218 = vmatpush1.msra.mxu0 0.0
    %3219 = vmatprep.subr.mxu0 0.0
    %3220 = vmatpush1.msra.mxu0 0.0
    %3221 = vmatprep.subr.mxu0 0.0
    %3222 = vmatpush1.msra.mxu0 0.0
    %3223 = vmatprep.mubr.f32.mxu0 0.0
    %3224 = vmatmul.mubr.f32.gmra.mrb[0].mxu0 %v3157
    %v3225 = vpop.f32.mrb[0].mxu0
    %v3226 = vadd.f32 0.0, %v3225
    %v3227 = vpop.f32.mrb[0].mxu0
    %3228 = vdwg.mxu0
    %v3229 = vadd.f32 %v3153, %v3226
    %v3230 = vmul.f32 %v3229, %v32
    %v3231 = vtanh.pop %v3230
    %v3232 = vmul.f32 %v3231, %v32
    %v3233 = vadd.f32 %v3232, %v33
    %v3234 = vmul.f32 %v3233, %v3146
    %3236 = vrot.lane.b32.xlu0 %v3233, 64
    %v3237 = vpop.permute.xlu0 %3236
    %v3239 = vmul.f32 %v3233, %v3237
    %3241 = vrot.lane.b32.xlu0 %v3239, 32
    %v3242 = vpop.permute.xlu0 %3241
    %v3244 = vadd.f32 %v3234, %v3242
    %v3245 = vtanh.pop %v3244
    %3247 = vrot.lane.b32.xlu0 %v3245, 64
    %v3248 = vpop.permute.xlu0 %3247
    %v3250 = vmul.f32 %v3233, %v3248
    %v3251 = vld [vmem:[%s1465] sm:$0xff]
    %3253 = vrot.lane.b32.xlu0 %v3250, 32
    %v3254 = vpop.permute.xlu0 %3253
    %v3255 = vsel %vm269, %v3254, 0
    %3257 = vmatprep.subr.mxu0 0.0
    %3258 = vmatpush1.msra.mxu0 %v2664
    %3259 = vmatprep.subr.mxu0 0.0
    %3260 = vmatpush1.msra.mxu0 %v2665
    %3261 = vmatprep.subr.mxu0 0.0
    %3262 = vmatpush1.msra.mxu0 %v2666
    %3263 = vmatprep.subr.mxu0 0.0
    %3264 = vmatpush1.msra.mxu0 %v2667
    %3265 = vmatprep.subr.mxu0 0.0
    %3266 = vmatpush1.msra.mxu0 0.0
    %3267 = vmatprep.subr.mxu0 0.0
    %3268 = vmatpush1.msra.mxu0 0.0
    %3269 = vmatprep.subr.mxu0 0.0
    %3270 = vmatpush1.msra.mxu0 0.0
    %3271 = vmatprep.subr.mxu0 0.0
    %3272 = vmatpush1.msra.mxu0 0.0
    %3273 = vmatprep.subr.mxu0 0.0
    %3274 = vmatpush1.msra.mxu0 0.0
    %3275 = vmatprep.subr.mxu0 0.0
    %3276 = vmatpush1.msra.mxu0 0.0
    %3277 = vmatprep.subr.mxu0 0.0
    %3278 = vmatpush1.msra.mxu0 0.0
    %3279 = vmatprep.subr.mxu0 0.0
    %3280 = vmatpush1.msra.mxu0 0.0
    %3281 = vmatprep.subr.mxu0 0.0
    %3282 = vmatpush1.msra.mxu0 0.0
    %3283 = vmatprep.subr.mxu0 0.0
    %3284 = vmatpush1.msra.mxu0 0.0
    %3285 = vmatprep.subr.mxu0 0.0
    %3286 = vmatpush1.msra.mxu0 0.0
    %3287 = vmatprep.subr.mxu0 0.0
    %3288 = vmatpush1.msra.mxu0 0.0
    %3289 = vmatprep.subr.mxu0 0.0
    %3290 = vmatpush1.msra.mxu0 0.0
    %3291 = vmatprep.subr.mxu0 0.0
    %3292 = vmatpush1.msra.mxu0 0.0
    %3293 = vmatprep.subr.mxu0 0.0
    %3294 = vmatpush1.msra.mxu0 0.0
    %3295 = vmatprep.subr.mxu0 0.0
    %3296 = vmatpush1.msra.mxu0 0.0
    %3297 = vmatprep.subr.mxu0 0.0
    %3298 = vmatpush1.msra.mxu0 0.0
    %3299 = vmatprep.subr.mxu0 0.0
    %3300 = vmatpush1.msra.mxu0 0.0
    %3301 = vmatprep.subr.mxu0 0.0
    %3302 = vmatpush1.msra.mxu0 0.0
    %3303 = vmatprep.subr.mxu0 0.0
    %3304 = vmatpush1.msra.mxu0 0.0
    %3305 = vmatprep.subr.mxu0 0.0
    %3306 = vmatpush1.msra.mxu0 0.0
    %3307 = vmatprep.subr.mxu0 0.0
    %3308 = vmatpush1.msra.mxu0 0.0
    %3309 = vmatprep.subr.mxu0 0.0
    %3310 = vmatpush1.msra.mxu0 0.0
    %3311 = vmatprep.subr.mxu0 0.0
    %3312 = vmatpush1.msra.mxu0 0.0
    %3313 = vmatprep.subr.mxu0 0.0
    %3314 = vmatpush1.msra.mxu0 0.0
    %3315 = vmatprep.subr.mxu0 0.0
    %3316 = vmatpush1.msra.mxu0 0.0
    %3317 = vmatprep.subr.mxu0 0.0
    %3318 = vmatpush1.msra.mxu0 0.0
    %3319 = vmatprep.subr.mxu0 0.0
    %3320 = vmatpush1.msra.mxu0 0.0
    %3321 = vmatprep.mubr.f32.mxu0 0.0
    %3322 = vmatmul.mubr.f32.gmra.mrb[0].mxu0 %v3255
    %v3323 = vpop.f32.mrb[0].mxu0
    %v3324 = vadd.f32 0.0, %v3323
    %v3325 = vpop.f32.mrb[0].mxu0
    %3326 = vdwg.mxu0
    %v3327 = vadd.f32 %v3251, %v3324
    %v3328 = vmul.f32 %v3327, %v32
    %v3329 = vtanh.pop %v3328
    %v3330 = vmul.f32 %v3329, %v32
    %v3331 = vadd.f32 %v3330, %v33
    %v3332 = vmul.f32 %v3331, %v3244
    %3334 = vrot.lane.b32.xlu0 %v3331, 64
    %v3335 = vpop.permute.xlu0 %3334
    %v3337 = vmul.f32 %v3331, %v3335
    %3339 = vrot.lane.b32.xlu0 %v3337, 32
    %v3340 = vpop.permute.xlu0 %3339
    %v3342 = vadd.f32 %v3332, %v3340
    %v3343 = vtanh.pop %v3342
    %3345 = vrot.lane.b32.xlu0 %v3343, 64
    %v3346 = vpop.permute.xlu0 %3345
    %v3348 = vmul.f32 %v3331, %v3346
    %v3349 = vld [vmem:[%s1636] sm:$0xff]
    %3351 = vrot.lane.b32.xlu0 %v3348, 32
    %v3352 = vpop.permute.xlu0 %3351
    %v3353 = vsel %vm269, %v3352, 0
    %3355 = vmatprep.subr.mxu0 0.0
    %3356 = vmatpush1.msra.mxu0 %v2664
    %3357 = vmatprep.subr.mxu0 0.0
    %3358 = vmatpush1.msra.mxu0 %v2665
    %3359 = vmatprep.subr.mxu0 0.0
    %3360 = vmatpush1.msra.mxu0 %v2666
    %3361 = vmatprep.subr.mxu0 0.0
    %3362 = vmatpush1.msra.mxu0 %v2667
    %3363 = vmatprep.subr.mxu0 0.0
    %3364 = vmatpush1.msra.mxu0 0.0
    %3365 = vmatprep.subr.mxu0 0.0
    %3366 = vmatpush1.msra.mxu0 0.0
    %3367 = vmatprep.subr.mxu0 0.0
    %3368 = vmatpush1.msra.mxu0 0.0
    %3369 = vmatprep.subr.mxu0 0.0
    %3370 = vmatpush1.msra.mxu0 0.0
    %3371 = vmatprep.subr.mxu0 0.0
    %3372 = vmatpush1.msra.mxu0 0.0
    %3373 = vmatprep.subr.mxu0 0.0
    %3374 = vmatpush1.msra.mxu0 0.0
    %3375 = vmatprep.subr.mxu0 0.0
    %3376 = vmatpush1.msra.mxu0 0.0
    %3377 = vmatprep.subr.mxu0 0.0
    %3378 = vmatpush1.msra.mxu0 0.0
    %3379 = vmatprep.subr.mxu0 0.0
    %3380 = vmatpush1.msra.mxu0 0.0
    %3381 = vmatprep.subr.mxu0 0.0
    %3382 = vmatpush1.msra.mxu0 0.0
    %3383 = vmatprep.subr.mxu0 0.0
    %3384 = vmatpush1.msra.mxu0 0.0
    %3385 = vmatprep.subr.mxu0 0.0
    %3386 = vmatpush1.msra.mxu0 0.0
    %3387 = vmatprep.subr.mxu0 0.0
    %3388 = vmatpush1.msra.mxu0 0.0
    %3389 = vmatprep.subr.mxu0 0.0
    %3390 = vmatpush1.msra.mxu0 0.0
    %3391 = vmatprep.subr.mxu0 0.0
    %3392 = vmatpush1.msra.mxu0 0.0
    %3393 = vmatprep.subr.mxu0 0.0
    %3394 = vmatpush1.msra.mxu0 0.0
    %3395 = vmatprep.subr.mxu0 0.0
    %3396 = vmatpush1.msra.mxu0 0.0
    %3397 = vmatprep.subr.mxu0 0.0
    %3398 = vmatpush1.msra.mxu0 0.0
    %3399 = vmatprep.subr.mxu0 0.0
    %3400 = vmatpush1.msra.mxu0 0.0
    %3401 = vmatprep.subr.mxu0 0.0
    %3402 = vmatpush1.msra.mxu0 0.0
    %3403 = vmatprep.subr.mxu0 0.0
    %3404 = vmatpush1.msra.mxu0 0.0
    %3405 = vmatprep.subr.mxu0 0.0
    %3406 = vmatpush1.msra.mxu0 0.0
    %3407 = vmatprep.subr.mxu0 0.0
    %3408 = vmatpush1.msra.mxu0 0.0
    %3409 = vmatprep.subr.mxu0 0.0
    %3410 = vmatpush1.msra.mxu0 0.0
    %3411 = vmatprep.subr.mxu0 0.0
    %3412 = vmatpush1.msra.mxu0 0.0
    %3413 = vmatprep.subr.mxu0 0.0
    %3414 = vmatpush1.msra.mxu0 0.0
    %3415 = vmatprep.subr.mxu0 0.0
    %3416 = vmatpush1.msra.mxu0 0.0
    %3417 = vmatprep.subr.mxu0 0.0
    %3418 = vmatpush1.msra.mxu0 0.0
    %3419 = vmatprep.mubr.f32.mxu0 0.0
    %3420 = vmatmul.mubr.f32.gmra.mrb[0].mxu0 %v3353
    %v3421 = vpop.f32.mrb[0].mxu0
    %v3422 = vadd.f32 0.0, %v3421
    %v3423 = vpop.f32.mrb[0].mxu0
    %3424 = vdwg.mxu0
    %v3425 = vadd.f32 %v3349, %v3422
    %v3426 = vmul.f32 %v3425, %v32
    %v3427 = vtanh.pop %v3426
    %v3428 = vmul.f32 %v3427, %v32
    %v3429 = vadd.f32 %v3428, %v33
    %v3430 = vmul.f32 %v3429, %v3342
    %3432 = vrot.lane.b32.xlu0 %v3429, 64
    %v3433 = vpop.permute.xlu0 %3432
    %v3435 = vmul.f32 %v3429, %v3433
    %3437 = vrot.lane.b32.xlu0 %v3435, 32
    %v3438 = vpop.permute.xlu0 %3437
    %v3440 = vadd.f32 %v3430, %v3438
    %v3441 = vtanh.pop %v3440
    %3443 = vrot.lane.b32.xlu0 %v3441, 64
    %v3444 = vpop.permute.xlu0 %3443
    %v3446 = vmul.f32 %v3429, %v3444
    %v3447 = vld [vmem:[%s1807] sm:$0xff]
    %3449 = vrot.lane.b32.xlu0 %v3446, 32
    %v3450 = vpop.permute.xlu0 %3449
    %v3451 = vsel %vm269, %v3450, 0
    %3453 = vmatprep.subr.mxu0 0.0
    %3454 = vmatpush1.msra.mxu0 %v2664
    %3455 = vmatprep.subr.mxu0 0.0
    %3456 = vmatpush1.msra.mxu0 %v2665
    %3457 = vmatprep.subr.mxu0 0.0
    %3458 = vmatpush1.msra.mxu0 %v2666
    %3459 = vmatprep.subr.mxu0 0.0
    %3460 = vmatpush1.msra.mxu0 %v2667
    %3461 = vmatprep.subr.mxu0 0.0
    %3462 = vmatpush1.msra.mxu0 0.0
    %3463 = vmatprep.subr.mxu0 0.0
    %3464 = vmatpush1.msra.mxu0 0.0
    %3465 = vmatprep.subr.mxu0 0.0
    %3466 = vmatpush1.msra.mxu0 0.0
    %3467 = vmatprep.subr.mxu0 0.0
    %3468 = vmatpush1.msra.mxu0 0.0
    %3469 = vmatprep.subr.mxu0 0.0
    %3470 = vmatpush1.msra.mxu0 0.0
    %3471 = vmatprep.subr.mxu0 0.0
    %3472 = vmatpush1.msra.mxu0 0.0
    %3473 = vmatprep.subr.mxu0 0.0
    %3474 = vmatpush1.msra.mxu0 0.0
    %3475 = vmatprep.subr.mxu0 0.0
    %3476 = vmatpush1.msra.mxu0 0.0
    %3477 = vmatprep.subr.mxu0 0.0
    %3478 = vmatpush1.msra.mxu0 0.0
    %3479 = vmatprep.subr.mxu0 0.0
    %3480 = vmatpush1.msra.mxu0 0.0
    %3481 = vmatprep.subr.mxu0 0.0
    %3482 = vmatpush1.msra.mxu0 0.0
    %3483 = vmatprep.subr.mxu0 0.0
    %3484 = vmatpush1.msra.mxu0 0.0
    %3485 = vmatprep.subr.mxu0 0.0
    %3486 = vmatpush1.msra.mxu0 0.0
    %3487 = vmatprep.subr.mxu0 0.0
    %3488 = vmatpush1.msra.mxu0 0.0
    %3489 = vmatprep.subr.mxu0 0.0
    %3490 = vmatpush1.msra.mxu0 0.0
    %3491 = vmatprep.subr.mxu0 0.0
    %3492 = vmatpush1.msra.mxu0 0.0
    %3493 = vmatprep.subr.mxu0 0.0
    %3494 = vmatpush1.msra.mxu0 0.0
    %3495 = vmatprep.subr.mxu0 0.0
    %3496 = vmatpush1.msra.mxu0 0.0
    %3497 = vmatprep.subr.mxu0 0.0
    %3498 = vmatpush1.msra.mxu0 0.0
    %3499 = vmatprep.subr.mxu0 0.0
    %3500 = vmatpush1.msra.mxu0 0.0
    %3501 = vmatprep.subr.mxu0 0.0
    %3502 = vmatpush1.msra.mxu0 0.0
    %3503 = vmatprep.subr.mxu0 0.0
    %3504 = vmatpush1.msra.mxu0 0.0
    %3505 = vmatprep.subr.mxu0 0.0
    %3506 = vmatpush1.msra.mxu0 0.0
    %3507 = vmatprep.subr.mxu0 0.0
    %3508 = vmatpush1.msra.mxu0 0.0
    %3509 = vmatprep.subr.mxu0 0.0
    %3510 = vmatpush1.msra.mxu0 0.0
    %3511 = vmatprep.subr.mxu0 0.0
    %3512 = vmatpush1.msra.mxu0 0.0
    %3513 = vmatprep.subr.mxu0 0.0
    %3514 = vmatpush1.msra.mxu0 0.0
    %3515 = vmatprep.subr.mxu0 0.0
    %3516 = vmatpush1.msra.mxu0 0.0
    %3517 = vmatprep.mubr.f32.mxu0 0.0
    %3518 = vmatmul.mubr.f32.gmra.mrb[0].mxu0 %v3451
    %v3519 = vpop.f32.mrb[0].mxu0
    %v3520 = vadd.f32 0.0, %v3519
    %v3521 = vpop.f32.mrb[0].mxu0
    %3522 = vdwg.mxu0
    %v3523 = vadd.f32 %v3447, %v3520
    %v3524 = vmul.f32 %v3523, %v32
    %v3525 = vtanh.pop %v3524
    %v3526 = vmul.f32 %v3525, %v32
    %v3527 = vadd.f32 %v3526, %v33
    %v3528 = vmul.f32 %v3527, %v3440
    %3530 = vrot.lane.b32.xlu0 %v3527, 64
    %v3531 = vpop.permute.xlu0 %3530
    %v3533 = vmul.f32 %v3527, %v3531
    %3535 = vrot.lane.b32.xlu0 %v3533, 32
    %v3536 = vpop.permute.xlu0 %3535
    %v3538 = vadd.f32 %v3528, %v3536
    %v3539 = vtanh.pop %v3538
    %3541 = vrot.lane.b32.xlu0 %v3539, 64
    %v3542 = vpop.permute.xlu0 %3541
    %v3544 = vmul.f32 %v3527, %v3542
    %v3545 = vld [vmem:[%s1978] sm:$0xff]
    %3547 = vrot.lane.b32.xlu0 %v3544, 32
    %v3548 = vpop.permute.xlu0 %3547
    %v3549 = vsel %vm269, %v3548, 0
    %3551 = vmatprep.subr.mxu0 0.0
    %3552 = vmatpush1.msra.mxu0 %v2664
    %3553 = vmatprep.subr.mxu0 0.0
    %3554 = vmatpush1.msra.mxu0 %v2665
    %3555 = vmatprep.subr.mxu0 0.0
    %3556 = vmatpush1.msra.mxu0 %v2666
    %3557 = vmatprep.subr.mxu0 0.0
    %3558 = vmatpush1.msra.mxu0 %v2667
    %3559 = vmatprep.subr.mxu0 0.0
    %3560 = vmatpush1.msra.mxu0 0.0
    %3561 = vmatprep.subr.mxu0 0.0
    %3562 = vmatpush1.msra.mxu0 0.0
    %3563 = vmatprep.subr.mxu0 0.0
    %3564 = vmatpush1.msra.mxu0 0.0
    %3565 = vmatprep.subr.mxu0 0.0
    %3566 = vmatpush1.msra.mxu0 0.0
    %3567 = vmatprep.subr.mxu0 0.0
    %3568 = vmatpush1.msra.mxu0 0.0
    %3569 = vmatprep.subr.mxu0 0.0
    %3570 = vmatpush1.msra.mxu0 0.0
    %3571 = vmatprep.subr.mxu0 0.0
    %3572 = vmatpush1.msra.mxu0 0.0
    %3573 = vmatprep.subr.mxu0 0.0
    %3574 = vmatpush1.msra.mxu0 0.0
    %3575 = vmatprep.subr.mxu0 0.0
    %3576 = vmatpush1.msra.mxu0 0.0
    %3577 = vmatprep.subr.mxu0 0.0
    %3578 = vmatpush1.msra.mxu0 0.0
    %3579 = vmatprep.subr.mxu0 0.0
    %3580 = vmatpush1.msra.mxu0 0.0
    %3581 = vmatprep.subr.mxu0 0.0
    %3582 = vmatpush1.msra.mxu0 0.0
    %3583 = vmatprep.subr.mxu0 0.0
    %3584 = vmatpush1.msra.mxu0 0.0
    %3585 = vmatprep.subr.mxu0 0.0
    %3586 = vmatpush1.msra.mxu0 0.0
    %3587 = vmatprep.subr.mxu0 0.0
    %3588 = vmatpush1.msra.mxu0 0.0
    %3589 = vmatprep.subr.mxu0 0.0
    %3590 = vmatpush1.msra.mxu0 0.0
    %3591 = vmatprep.subr.mxu0 0.0
    %3592 = vmatpush1.msra.mxu0 0.0
    %3593 = vmatprep.subr.mxu0 0.0
    %3594 = vmatpush1.msra.mxu0 0.0
    %3595 = vmatprep.subr.mxu0 0.0
    %3596 = vmatpush1.msra.mxu0 0.0
    %3597 = vmatprep.subr.mxu0 0.0
    %3598 = vmatpush1.msra.mxu0 0.0
    %3599 = vmatprep.subr.mxu0 0.0
    %3600 = vmatpush1.msra.mxu0 0.0
    %3601 = vmatprep.subr.mxu0 0.0
    %3602 = vmatpush1.msra.mxu0 0.0
    %3603 = vmatprep.subr.mxu0 0.0
    %3604 = vmatpush1.msra.mxu0 0.0
    %3605 = vmatprep.subr.mxu0 0.0
    %3606 = vmatpush1.msra.mxu0 0.0
    %3607 = vmatprep.subr.mxu0 0.0
    %3608 = vmatpush1.msra.mxu0 0.0
    %3609 = vmatprep.subr.mxu0 0.0
    %3610 = vmatpush1.msra.mxu0 0.0
    %3611 = vmatprep.subr.mxu0 0.0
    %3612 = vmatpush1.msra.mxu0 0.0
    %3613 = vmatprep.subr.mxu0 0.0
    %3614 = vmatpush1.msra.mxu0 0.0
    %3615 = vmatprep.mubr.f32.mxu0 0.0
    %3616 = vmatmul.mubr.f32.gmra.mrb[0].mxu0 %v3549
    %v3617 = vpop.f32.mrb[0].mxu0
    %v3618 = vadd.f32 0.0, %v3617
    %v3619 = vpop.f32.mrb[0].mxu0
    %3620 = vdwg.mxu0
    %v3621 = vadd.f32 %v3545, %v3618
    %v3622 = vmul.f32 %v3621, %v32
    %v3623 = vtanh.pop %v3622
    %v3624 = vmul.f32 %v3623, %v32
    %v3625 = vadd.f32 %v3624, %v33
    %v3626 = vmul.f32 %v3625, %v3538
    %3628 = vrot.lane.b32.xlu0 %v3625, 64
    %v3629 = vpop.permute.xlu0 %3628
    %v3631 = vmul.f32 %v3625, %v3629
    %3633 = vrot.lane.b32.xlu0 %v3631, 32
    %v3634 = vpop.permute.xlu0 %3633
    %v3636 = vadd.f32 %v3626, %v3634
    %v3637 = vtanh.pop %v3636
    %3639 = vrot.lane.b32.xlu0 %v3637, 64
    %v3640 = vpop.permute.xlu0 %3639
    %v3642 = vmul.f32 %v3625, %v3640
    %v3643 = vld [vmem:[%s2149] sm:$0xff]
    %3645 = vrot.lane.b32.xlu0 %v3642, 32
    %v3646 = vpop.permute.xlu0 %3645
    %v3647 = vsel %vm269, %v3646, 0
    %3649 = vmatprep.subr.mxu0 0.0
    %3650 = vmatpush1.msra.mxu0 %v2664
    %3651 = vmatprep.subr.mxu0 0.0
    %3652 = vmatpush1.msra.mxu0 %v2665
    %3653 = vmatprep.subr.mxu0 0.0
    %3654 = vmatpush1.msra.mxu0 %v2666
    %3655 = vmatprep.subr.mxu0 0.0
    %3656 = vmatpush1.msra.mxu0 %v2667
    %3657 = vmatprep.subr.mxu0 0.0
    %3658 = vmatpush1.msra.mxu0 0.0
    %3659 = vmatprep.subr.mxu0 0.0
    %3660 = vmatpush1.msra.mxu0 0.0
    %3661 = vmatprep.subr.mxu0 0.0
    %3662 = vmatpush1.msra.mxu0 0.0
    %3663 = vmatprep.subr.mxu0 0.0
    %3664 = vmatpush1.msra.mxu0 0.0
    %3665 = vmatprep.subr.mxu0 0.0
    %3666 = vmatpush1.msra.mxu0 0.0
    %3667 = vmatprep.subr.mxu0 0.0
    %3668 = vmatpush1.msra.mxu0 0.0
    %3669 = vmatprep.subr.mxu0 0.0
    %3670 = vmatpush1.msra.mxu0 0.0
    %3671 = vmatprep.subr.mxu0 0.0
    %3672 = vmatpush1.msra.mxu0 0.0
    %3673 = vmatprep.subr.mxu0 0.0
    %3674 = vmatpush1.msra.mxu0 0.0
    %3675 = vmatprep.subr.mxu0 0.0
    %3676 = vmatpush1.msra.mxu0 0.0
    %3677 = vmatprep.subr.mxu0 0.0
    %3678 = vmatpush1.msra.mxu0 0.0
    %3679 = vmatprep.subr.mxu0 0.0
    %3680 = vmatpush1.msra.mxu0 0.0
    %3681 = vmatprep.subr.mxu0 0.0
    %3682 = vmatpush1.msra.mxu0 0.0
    %3683 = vmatprep.subr.mxu0 0.0
    %3684 = vmatpush1.msra.mxu0 0.0
    %3685 = vmatprep.subr.mxu0 0.0
    %3686 = vmatpush1.msra.mxu0 0.0
    %3687 = vmatprep.subr.mxu0 0.0
    %3688 = vmatpush1.msra.mxu0 0.0
    %3689 = vmatprep.subr.mxu0 0.0
    %3690 = vmatpush1.msra.mxu0 0.0
    %3691 = vmatprep.subr.mxu0 0.0
    %3692 = vmatpush1.msra.mxu0 0.0
    %3693 = vmatprep.subr.mxu0 0.0
    %3694 = vmatpush1.msra.mxu0 0.0
    %3695 = vmatprep.subr.mxu0 0.0
    %3696 = vmatpush1.msra.mxu0 0.0
    %3697 = vmatprep.subr.mxu0 0.0
    %3698 = vmatpush1.msra.mxu0 0.0
    %3699 = vmatprep.subr.mxu0 0.0
    %3700 = vmatpush1.msra.mxu0 0.0
    %3701 = vmatprep.subr.mxu0 0.0
    %3702 = vmatpush1.msra.mxu0 0.0
    %3703 = vmatprep.subr.mxu0 0.0
    %3704 = vmatpush1.msra.mxu0 0.0
    %3705 = vmatprep.subr.mxu0 0.0
    %3706 = vmatpush1.msra.mxu0 0.0
    %3707 = vmatprep.subr.mxu0 0.0
    %3708 = vmatpush1.msra.mxu0 0.0
    %3709 = vmatprep.subr.mxu0 0.0
    %3710 = vmatpush1.msra.mxu0 0.0
    %3711 = vmatprep.subr.mxu0 0.0
    %3712 = vmatpush1.msra.mxu0 0.0
    %3713 = vmatprep.mubr.f32.mxu0 0.0
    %3714 = vmatmul.mubr.f32.gmra.mrb[0].mxu0 %v3647
    %v3715 = vpop.f32.mrb[0].mxu0
    %v3716 = vadd.f32 0.0, %v3715
    %v3717 = vpop.f32.mrb[0].mxu0
    %3718 = vdwg.mxu0
    %v3719 = vadd.f32 %v3643, %v3716
    %v3720 = vmul.f32 %v3719, %v32
    %v3721 = vtanh.pop %v3720
    %v3722 = vmul.f32 %v3721, %v32
    %v3723 = vadd.f32 %v3722, %v33
    %v3724 = vmul.f32 %v3723, %v3636
    %3726 = vrot.lane.b32.xlu0 %v3723, 64
    %v3727 = vpop.permute.xlu0 %3726
    %v3729 = vmul.f32 %v3723, %v3727
    %3731 = vrot.lane.b32.xlu0 %v3729, 32
    %v3732 = vpop.permute.xlu0 %3731
    %v3734 = vadd.f32 %v3724, %v3732
    %v3735 = vtanh.pop %v3734
    %3737 = vrot.lane.b32.xlu0 %v3735, 64
    %v3738 = vpop.permute.xlu0 %3737
    %v3740 = vmul.f32 %v3723, %v3738
    %v3741 = vld [vmem:[%s2320] sm:$0xff]
    %3743 = vrot.lane.b32.xlu0 %v3740, 32
    %v3744 = vpop.permute.xlu0 %3743
    %v3745 = vsel %vm269, %v3744, 0
    %3747 = vmatprep.subr.mxu0 0.0
    %3748 = vmatpush1.msra.mxu0 %v2664
    %3749 = vmatprep.subr.mxu0 0.0
    %3750 = vmatpush1.msra.mxu0 %v2665
    %3751 = vmatprep.subr.mxu0 0.0
    %3752 = vmatpush1.msra.mxu0 %v2666
    %3753 = vmatprep.subr.mxu0 0.0
    %3754 = vmatpush1.msra.mxu0 %v2667
    %3755 = vmatprep.subr.mxu0 0.0
    %3756 = vmatpush1.msra.mxu0 0.0
    %3757 = vmatprep.subr.mxu0 0.0
    %3758 = vmatpush1.msra.mxu0 0.0
    %3759 = vmatprep.subr.mxu0 0.0
    %3760 = vmatpush1.msra.mxu0 0.0
    %3761 = vmatprep.subr.mxu0 0.0
    %3762 = vmatpush1.msra.mxu0 0.0
    %3763 = vmatprep.subr.mxu0 0.0
    %3764 = vmatpush1.msra.mxu0 0.0
    %3765 = vmatprep.subr.mxu0 0.0
    %3766 = vmatpush1.msra.mxu0 0.0
    %3767 = vmatprep.subr.mxu0 0.0
    %3768 = vmatpush1.msra.mxu0 0.0
    %3769 = vmatprep.subr.mxu0 0.0
    %3770 = vmatpush1.msra.mxu0 0.0
    %3771 = vmatprep.subr.mxu0 0.0
    %3772 = vmatpush1.msra.mxu0 0.0
    %3773 = vmatprep.subr.mxu0 0.0
    %3774 = vmatpush1.msra.mxu0 0.0
    %3775 = vmatprep.subr.mxu0 0.0
    %3776 = vmatpush1.msra.mxu0 0.0
    %3777 = vmatprep.subr.mxu0 0.0
    %3778 = vmatpush1.msra.mxu0 0.0
    %3779 = vmatprep.subr.mxu0 0.0
    %3780 = vmatpush1.msra.mxu0 0.0
    %3781 = vmatprep.subr.mxu0 0.0
    %3782 = vmatpush1.msra.mxu0 0.0
    %3783 = vmatprep.subr.mxu0 0.0
    %3784 = vmatpush1.msra.mxu0 0.0
    %3785 = vmatprep.subr.mxu0 0.0
    %3786 = vmatpush1.msra.mxu0 0.0
    %3787 = vmatprep.subr.mxu0 0.0
    %3788 = vmatpush1.msra.mxu0 0.0
    %3789 = vmatprep.subr.mxu0 0.0
    %3790 = vmatpush1.msra.mxu0 0.0
    %3791 = vmatprep.subr.mxu0 0.0
    %3792 = vmatpush1.msra.mxu0 0.0
    %3793 = vmatprep.subr.mxu0 0.0
    %3794 = vmatpush1.msra.mxu0 0.0
    %3795 = vmatprep.subr.mxu0 0.0
    %3796 = vmatpush1.msra.mxu0 0.0
    %3797 = vmatprep.subr.mxu0 0.0
    %3798 = vmatpush1.msra.mxu0 0.0
    %3799 = vmatprep.subr.mxu0 0.0
    %3800 = vmatpush1.msra.mxu0 0.0
    %3801 = vmatprep.subr.mxu0 0.0
    %3802 = vmatpush1.msra.mxu0 0.0
    %3803 = vmatprep.subr.mxu0 0.0
    %3804 = vmatpush1.msra.mxu0 0.0
    %3805 = vmatprep.subr.mxu0 0.0
    %3806 = vmatpush1.msra.mxu0 0.0
    %3807 = vmatprep.subr.mxu0 0.0
    %3808 = vmatpush1.msra.mxu0 0.0
    %3809 = vmatprep.subr.mxu0 0.0
    %3810 = vmatpush1.msra.mxu0 0.0
    %3811 = vmatprep.mubr.f32.mxu0 0.0
    %3812 = vmatmul.mubr.f32.gmra.mrb[0].mxu0 %v3745
    %v3813 = vpop.f32.mrb[0].mxu0
    %v3814 = vadd.f32 0.0, %v3813
    %v3815 = vpop.f32.mrb[0].mxu0
    %3816 = vdwg.mxu0
    %v3817 = vadd.f32 %v3741, %v3814
    %v3818 = vmul.f32 %v3817, %v32
    %v3819 = vtanh.pop %v3818
    %v3820 = vmul.f32 %v3819, %v32
    %v3821 = vadd.f32 %v3820, %v33
    %v3822 = vmul.f32 %v3821, %v3734
    %3824 = vrot.lane.b32.xlu0 %v3821, 64
    %v3825 = vpop.permute.xlu0 %3824
    %v3827 = vmul.f32 %v3821, %v3825
    %3829 = vrot.lane.b32.xlu0 %v3827, 32
    %v3830 = vpop.permute.xlu0 %3829
    %v3832 = vadd.f32 %v3822, %v3830
    %v3833 = vtanh.pop %v3832
    %3835 = vrot.lane.b32.xlu0 %v3833, 64
    %v3836 = vpop.permute.xlu0 %3835
    %v3838 = vmul.f32 %v3821, %v3836
    %v3839 = vld [vmem:[%s2491] sm:$0xff]
    %3841 = vrot.lane.b32.xlu0 %v3838, 32
    %v3842 = vpop.permute.xlu0 %3841
    %v3843 = vsel %vm269, %v3842, 0
    %3845 = vmatprep.subr.mxu0 0.0
    %3846 = vmatpush1.msra.mxu0 %v2664
    %3847 = vmatprep.subr.mxu0 0.0
    %3848 = vmatpush1.msra.mxu0 %v2665
    %3849 = vmatprep.subr.mxu0 0.0
    %3850 = vmatpush1.msra.mxu0 %v2666
    %3851 = vmatprep.subr.mxu0 0.0
    %3852 = vmatpush1.msra.mxu0 %v2667
    %3853 = vmatprep.subr.mxu0 0.0
    %3854 = vmatpush1.msra.mxu0 0.0
    %3855 = vmatprep.subr.mxu0 0.0
    %3856 = vmatpush1.msra.mxu0 0.0
    %3857 = vmatprep.subr.mxu0 0.0
    %3858 = vmatpush1.msra.mxu0 0.0
    %3859 = vmatprep.subr.mxu0 0.0
    %3860 = vmatpush1.msra.mxu0 0.0
    %3861 = vmatprep.subr.mxu0 0.0
    %3862 = vmatpush1.msra.mxu0 0.0
    %3863 = vmatprep.subr.mxu0 0.0
    %3864 = vmatpush1.msra.mxu0 0.0
    %3865 = vmatprep.subr.mxu0 0.0
    %3866 = vmatpush1.msra.mxu0 0.0
    %3867 = vmatprep.subr.mxu0 0.0
    %3868 = vmatpush1.msra.mxu0 0.0
    %3869 = vmatprep.subr.mxu0 0.0
    %3870 = vmatpush1.msra.mxu0 0.0
    %3871 = vmatprep.subr.mxu0 0.0
    %3872 = vmatpush1.msra.mxu0 0.0
    %3873 = vmatprep.subr.mxu0 0.0
    %3874 = vmatpush1.msra.mxu0 0.0
    %3875 = vmatprep.subr.mxu0 0.0
    %3876 = vmatpush1.msra.mxu0 0.0
    %3877 = vmatprep.subr.mxu0 0.0
    %3878 = vmatpush1.msra.mxu0 0.0
    %3879 = vmatprep.subr.mxu0 0.0
    %3880 = vmatpush1.msra.mxu0 0.0
    %3881 = vmatprep.subr.mxu0 0.0
    %3882 = vmatpush1.msra.mxu0 0.0
    %3883 = vmatprep.subr.mxu0 0.0
    %3884 = vmatpush1.msra.mxu0 0.0
    %3885 = vmatprep.subr.mxu0 0.0
    %3886 = vmatpush1.msra.mxu0 0.0
    %3887 = vmatprep.subr.mxu0 0.0
    %3888 = vmatpush1.msra.mxu0 0.0
    %3889 = vmatprep.subr.mxu0 0.0
    %3890 = vmatpush1.msra.mxu0 0.0
    %3891 = vmatprep.subr.mxu0 0.0
    %3892 = vmatpush1.msra.mxu0 0.0
    %3893 = vmatprep.subr.mxu0 0.0
    %3894 = vmatpush1.msra.mxu0 0.0
    %3895 = vmatprep.subr.mxu0 0.0
    %3896 = vmatpush1.msra.mxu0 0.0
    %3897 = vmatprep.subr.mxu0 0.0
    %3898 = vmatpush1.msra.mxu0 0.0
    %3899 = vmatprep.subr.mxu0 0.0
    %3900 = vmatpush1.msra.mxu0 0.0
    %3901 = vmatprep.subr.mxu0 0.0
    %3902 = vmatpush1.msra.mxu0 0.0
    %3903 = vmatprep.subr.mxu0 0.0
    %3904 = vmatpush1.msra.mxu0 0.0
    %3905 = vmatprep.subr.mxu0 0.0
    %3906 = vmatpush1.msra.mxu0 0.0
    %3907 = vmatprep.subr.mxu0 0.0
    %3908 = vmatpush1.msra.mxu0 0.0
    %3909 = vmatprep.mubr.f32.mxu0 0.0
    %3910 = vmatmul.mubr.f32.gmra.mrb[0].mxu0 %v3843
    %v3911 = vpop.f32.mrb[0].mxu0
    %v3912 = vadd.f32 0.0, %v3911
    %v3913 = vpop.f32.mrb[0].mxu0
    %3914 = vdwg.mxu0
    %v3915 = vadd.f32 %v3839, %v3912
    %v3916 = vmul.f32 %v3915, %v32
    %v3917 = vtanh.pop %v3916
    %v3918 = vmul.f32 %v3917, %v32
    %v3919 = vadd.f32 %v3918, %v33
    %v3920 = vmul.f32 %v3919, %v3832
    %3922 = vrot.lane.b32.xlu0 %v3919, 64
    %v3923 = vpop.permute.xlu0 %3922
    %v3925 = vmul.f32 %v3919, %v3923
    %3927 = vrot.lane.b32.xlu0 %v3925, 32
    %v3928 = vpop.permute.xlu0 %3927
    %v3930 = vadd.f32 %v3920, %v3928
    %v3931 = vtanh.pop %v3930
    %3933 = vrot.lane.b32.xlu0 %v3931, 64
    %v3934 = vpop.permute.xlu0 %3933
    %v3936 = vmul.f32 %v3919, %v3934
    %v3937 = vld [vmem:[%s2662] sm:$0xff]
    %3939 = vrot.lane.b32.xlu0 %v3936, 32
    %v3940 = vpop.permute.xlu0 %3939
    %v3941 = vsel %vm269, %v3940, 0
    %3943 = vmatprep.subr.mxu0 0.0
    %3944 = vmatpush1.msra.mxu0 %v2664
    %3945 = vmatprep.subr.mxu0 0.0
    %3946 = vmatpush1.msra.mxu0 %v2665
    %3947 = vmatprep.subr.mxu0 0.0
    %3948 = vmatpush1.msra.mxu0 %v2666
    %3949 = vmatprep.subr.mxu0 0.0
    %3950 = vmatpush1.msra.mxu0 %v2667
    %3951 = vmatprep.subr.mxu0 0.0
    %3952 = vmatpush1.msra.mxu0 0.0
    %3953 = vmatprep.subr.mxu0 0.0
    %3954 = vmatpush1.msra.mxu0 0.0
    %3955 = vmatprep.subr.mxu0 0.0
    %3956 = vmatpush1.msra.mxu0 0.0
    %3957 = vmatprep.subr.mxu0 0.0
    %3958 = vmatpush1.msra.mxu0 0.0
    %3959 = vmatprep.subr.mxu0 0.0
    %3960 = vmatpush1.msra.mxu0 0.0
    %3961 = vmatprep.subr.mxu0 0.0
    %3962 = vmatpush1.msra.mxu0 0.0
    %3963 = vmatprep.subr.mxu0 0.0
    %3964 = vmatpush1.msra.mxu0 0.0
    %3965 = vmatprep.subr.mxu0 0.0
    %3966 = vmatpush1.msra.mxu0 0.0
    %3967 = vmatprep.subr.mxu0 0.0
    %3968 = vmatpush1.msra.mxu0 0.0
    %3969 = vmatprep.subr.mxu0 0.0
    %3970 = vmatpush1.msra.mxu0 0.0
    %3971 = vmatprep.subr.mxu0 0.0
    %3972 = vmatpush1.msra.mxu0 0.0
    %3973 = vmatprep.subr.mxu0 0.0
    %3974 = vmatpush1.msra.mxu0 0.0
    %3975 = vmatprep.subr.mxu0 0.0
    %3976 = vmatpush1.msra.mxu0 0.0
    %3977 = vmatprep.subr.mxu0 0.0
    %3978 = vmatpush1.msra.mxu0 0.0
    %3979 = vmatprep.subr.mxu0 0.0
    %3980 = vmatpush1.msra.mxu0 0.0
    %3981 = vmatprep.subr.mxu0 0.0
    %3982 = vmatpush1.msra.mxu0 0.0
    %3983 = vmatprep.subr.mxu0 0.0
    %3984 = vmatpush1.msra.mxu0 0.0
    %3985 = vmatprep.subr.mxu0 0.0
    %3986 = vmatpush1.msra.mxu0 0.0
    %3987 = vmatprep.subr.mxu0 0.0
    %3988 = vmatpush1.msra.mxu0 0.0
    %3989 = vmatprep.subr.mxu0 0.0
    %3990 = vmatpush1.msra.mxu0 0.0
    %3991 = vmatprep.subr.mxu0 0.0
    %3992 = vmatpush1.msra.mxu0 0.0
    %3993 = vmatprep.subr.mxu0 0.0
    %3994 = vmatpush1.msra.mxu0 0.0
    %3995 = vmatprep.subr.mxu0 0.0
    %3996 = vmatpush1.msra.mxu0 0.0
    %3997 = vmatprep.subr.mxu0 0.0
    %3998 = vmatpush1.msra.mxu0 0.0
    %3999 = vmatprep.subr.mxu0 0.0
    %4000 = vmatpush1.msra.mxu0 0.0
    %4001 = vmatprep.subr.mxu0 0.0
    %4002 = vmatpush1.msra.mxu0 0.0
    %4003 = vmatprep.subr.mxu0 0.0
    %4004 = vmatpush1.msra.mxu0 0.0
    %4005 = vmatprep.subr.mxu0 0.0
    %4006 = vmatpush1.msra.mxu0 0.0
    %4007 = vmatprep.mubr.f32.mxu0 0.0
    %4008 = vmatmul.mubr.f32.gmra.mrb[0].mxu0 %v3941
    %v4009 = vpop.f32.mrb[0].mxu0
    %v4010 = vadd.f32 0.0, %v4009
    %v4011 = vpop.f32.mrb[0].mxu0
    %4012 = vdwg.mxu0
    %v4013 = vadd.f32 %v3937, %v4010
    %v4014 = vmul.f32 %v4013, %v32
    %v4015 = vtanh.pop %v4014
    %v4016 = vmul.f32 %v4015, %v32
    %v4017 = vadd.f32 %v4016, %v33
    %v4018 = vmul.f32 %v4017, %v3930
    %4020 = vrot.lane.b32.xlu0 %v4017, 64
    %v4021 = vpop.permute.xlu0 %4020
    %v4023 = vmul.f32 %v4017, %v4021
    %4025 = vrot.lane.b32.xlu0 %v4023, 32
    %v4026 = vpop.permute.xlu0 %4025
    %v4028 = vadd.f32 %v4018, %v4026
    %v4029 = vtanh.pop %v4028
    %4031 = vrot.lane.b32.xlu0 %v4029, 64
    %v4032 = vpop.permute.xlu0 %4031
    %v4034 = vmul.f32 %v4017, %v4032
    %4036 = vrot.lane.b32.xlu0 %v4034, 32
    %v4037 = vpop.permute.xlu0 %4036
    %4039 = vst.msk [vmem:[#allocation4] sm:$0xff] %vm269, %v4037
    // Predicated region
    $region30: #{tpu_custom_call.1} parent=1 // pred_check
      _
    $region31: #{tpu_custom_call.1} parent=1 // pred_check_branch
      %4041 = sbr.rel (0) target = $region33
    $region32: #{tpu_custom_call.1} parent=1 // pred_region
      %s4043 = ssub.s32 128, 128
      %4044 = vsyncadd [#allocation5], %s4043
      %s4046 = sshll.u32 [#allocation4], 4
      %s4047 = int_to_ptr.vmem [resolvable:$true] %s4046
      %4049 = dma.vmem_to_hbm [thread:$0]  %s4047, 128, %s7, [#allocation5]
    $region33: #{tpu_custom_call.1} parent=1 // pred_fallthru
      _
    // Predicated region
    $region34: #{tpu_custom_call.1} parent=1 // pred_check
      _
    $region35: #{tpu_custom_call.1} parent=1 // pred_check_branch
      %4051 = sbr.rel (0) target = $region37
    $region36: #{tpu_custom_call.1} parent=1 // pred_region
      %4052 = dma.done [#allocation5], 128
    $region37: #{tpu_custom_call.1} parent=1 // pred_fallthru
      _
    %4053 = vsyncpa [#allocation5], 1

</llo_original>
